<compile_context>
chip_gen: v7x
topology: tpu7x:2x2x1
jax: 0.10.0
libtpu: 0.0.40
codegen_flags: <defaults>
</compile_context>

<pallas_src>
import functools

import numpy as np
import jax
import jax.numpy as jnp
from jax import lax
from jax.experimental import pallas as pl
from jax.experimental.pallas import tpu as pltpu


def _tm_kernel(x_ref, w_ref, o_ref, *, S, T, ds, t_out):
    """One (channel_block, batch) tile.

    x_ref: (ci_blk, T*S)           input block, lanes = flattened (T, H*W)
    w_ref: (3, co_blk, ci_blk)     dense per-tap weights (diagonal group block)
    o_ref: (co_blk, t_out*S)       pooled output, lanes = flattened (t_out, H*W)
    """
    f32 = jnp.float32
    # Hoist the three tap-weight loads out of the frame loop.
    w_prev = w_ref[0]   # multiplies x[t-1]  (torch cross-correlation tap order)
    w_cent = w_ref[1]   # multiplies x[t]
    w_next = w_ref[2]   # multiplies x[t+1]

    outs = []
    for win in range(t_out):
        t0 = win * ds
        n_valid = min(ds, T - t0)          # ceil_mode: last window may be clipped
        m = None
        for j in range(n_valid):
            t = t0 + j
            # Conv output frame t from static lane slices of the x block
            # (ref slicing is free); temporal edges drop the missing tap.
            z = jnp.dot(w_cent, x_ref[:, t * S:(t + 1) * S],
                        preferred_element_type=f32)
            if t > 0:
                z = z + jnp.dot(w_prev, x_ref[:, (t - 1) * S:t * S],
                                preferred_element_type=f32)
            if t < T - 1:
                z = z + jnp.dot(w_next, x_ref[:, (t + 1) * S:(t + 2) * S],
                                preferred_element_type=f32)
            # Fused ceil-mode temporal max pool: plain running max over the
            # per-frame matmul outputs (no lane slicing of a conv slab).
            m = z if m is None else jnp.maximum(m, z)
        outs.append(m)

    # Single lane-dense full-tile store (last dim == full output last dim).
    o_ref[...] = jnp.concatenate(outs, axis=1).astype(o_ref.dtype)


def _tpu_generation():
    """Best-effort (mxu_k_tile, has_two_tensorcores) from the device kind."""
    try:
        kind = jax.devices()[0].device_kind.lower()
    except Exception:
        return 128, False
    k_tile = 256 if any(t in kind for t in ("v6", "v7")) else 128
    two_tc = any(t in kind for t in ("v4", "v5p", "v7"))
    return k_tile, two_tc


def _choose_channel_split(C_in, C_out, groups, n_batch, k_tile, two_tc):
    """Smallest group-aligned channel split whose contraction block fits one
    MXU K-tile; bumped to 2 on 2-TC chips when the grid would otherwise have a
    single step (N == 1)."""
    def ok(d):
        if groups % d or C_in % d or C_out % d:
            return False
        if d > 1 and ((C_in // d) % 8 or (C_out // d) % 8):
            return False       # keep sublane-tiled block shapes legal
        return True

    cands = [d for d in range(1, groups + 1) if ok(d)]
    cs = next((d for d in cands if C_in // d <= k_tile), cands[-1])
    if n_batch == 1 and cs == 1 and two_tc and ok(2):
        cs = 2                 # give the second TensorCore some work
    return cs


def _dense_tap_blocks(w_group, C_in, groups, cs):
    """(C_out, C_in//groups, 3) grouped Conv3d weight -> (cs, 3, co_blk, ci_blk)
    dense per-tap weights, one block-diagonal (group-aligned) diagonal block per
    channel split.  The group mask is a compile-time constant; the rest is
    traced jnp (jit-safe, no host round trip)."""
    C_out, Cig, _ = w_group.shape
    cog = C_out // groups
    mask = (np.arange(C_in)[None, :] // Cig) == (np.arange(C_out)[:, None] // cog)
    tiled = jnp.tile(w_group, (1, groups, 1))                     # (C_out, C_in, 3)
    dense = jnp.where(jnp.asarray(mask)[:, :, None], tiled, 0.0)
    dense = jnp.transpose(dense, (2, 0, 1))                       # (3, C_out, C_in)
    co_blk, ci_blk = C_out // cs, C_in // cs
    blocks = [dense[:, j * co_blk:(j + 1) * co_blk, j * ci_blk:(j + 1) * ci_blk]
              for j in range(cs)]
    return jnp.stack(blocks, axis=0)                              # (cs, 3, co, ci)


def temporal_modulation(x, w_group, groups=32, downsample_scale=8):
    """x: (N, C_in, T, H, W); w_group: (C_out, C_in//groups, 3) Conv3d weight
    (the trailing (1,1) spatial kernel dims are squeezed)."""
    N, C_in, T, H, W = x.shape
    C_out, Cig, K = w_group.shape
    assert K == 3 and C_in % groups == 0 and C_out % groups == 0
    assert Cig == C_in // groups
    S = H * W
    TS = T * S
    ds = downsample_scale
    t_out = -(-T // ds)                                           # ceil_mode

    k_tile, two_tc = _tpu_generation()
    cs = _choose_channel_split(C_in, C_out, groups, N, k_tile, two_tc)
    ci_blk, co_blk = C_in // cs, C_out // cs

    # Dense per-tap diagonal weight blocks, kept in the input dtype (no upcast
    # of MXU operands; pass bf16 x to get bf16 matmuls).
    w_blocks = _dense_tap_blocks(w_group, C_in, groups, cs).astype(x.dtype)
    x_r = x.reshape(N, C_in, TS)                                  # free reshape

    # Explicit scoped-VMEM budget: double-buffered x / out / weight blocks plus
    # headroom for the per-frame f32 temporaries.
    itemsize = jnp.dtype(x.dtype).itemsize
    est = 2 * (ci_blk * TS * itemsize
               + co_blk * t_out * S * itemsize
               + 3 * co_blk * ci_blk * itemsize) + 8 * co_blk * S * 4
    vmem_limit = int(min(64 * 2 ** 20, max(32 * 2 ** 20, 2 * est)))

    kernel = functools.partial(_tm_kernel, S=S, T=T, ds=ds, t_out=t_out)
    out = pl.pallas_call(
        kernel,
        out_shape=jax.ShapeDtypeStruct((N, C_out, t_out * S), x.dtype),
        # Channel block on the slow axis -> the weight block index is constant
        # across the inner batch loop, so it is DMA'd once and stays resident.
        grid=(cs, N),
        in_specs=[
            pl.BlockSpec((None, ci_blk, TS), lambda j, n: (n, j, 0)),
            pl.BlockSpec((None, 3, co_blk, ci_blk), lambda j, n: (j, 0, 0, 0)),
        ],
        out_specs=pl.BlockSpec((None, co_blk, t_out * S), lambda j, n: (n, j, 0)),
        compiler_params=pltpu.CompilerParams(
            dimension_semantics=("parallel", "parallel"),
            vmem_limit_bytes=vmem_limit),
    )(x_r, w_blocks)
    return out.reshape(N, C_out, t_out, H, W)


def _reference(x, w_group, groups, downsample_scale):
    # Pure-JAX reference: grouped conv3d + ceil-mode temporal maxpool.
    N, C_in, T, H, W = x.shape
    C_out, Cig, _ = w_group.shape
    y = lax.conv_general_dilated(
        x.astype(jnp.float32),
        w_group.reshape(C_out, Cig, 3, 1, 1).astype(jnp.float32),
        window_strides=(1, 1, 1),
        padding=((1, 1), (0, 0), (0, 0)),
        dimension_numbers=("NCDHW", "OIDHW", "NCDHW"),
        feature_group_count=groups,
    )
    t_out = -(-T // downsample_scale)
    pad = t_out * downsample_scale - T
    y = jnp.pad(y, ((0, 0), (0, 0), (0, pad), (0, 0), (0, 0)),
                constant_values=-jnp.inf)
    y = y.reshape(N, C_out, t_out, downsample_scale, H, W).max(axis=3)
    return y


if __name__ == "__main__":
    # Small shapes consistent with the module (groups=32 => channels % 32 == 0).
    N, C_in, C_out, T, H, W = 2, 64, 64, 8, 4, 4
    groups = 32
    downsample_scale = 3   # exercises ceil_mode (last window is clipped)

    key = jax.random.PRNGKey(0)
    kx, kw = jax.random.split(key)
    x = jax.random.normal(kx, (N, C_in, T, H, W), jnp.float32)
    w_group = 0.1 * jax.random.normal(kw, (C_out, C_in // groups, 3), jnp.float32)

    tm = jax.jit(functools.partial(temporal_modulation, groups=groups,
                                   downsample_scale=downsample_scale))
    out = jax.block_until_ready(tm(x, w_group))

    ref = _reference(x, w_group, groups, downsample_scale)
    np.testing.assert_allclose(np.asarray(out), np.asarray(ref),
                               rtol=1e-2, atol=1e-2)
    print("KERNEL_OK")
</pallas_src>

<mosaic_0001>
module attributes {stable_mosaic.version = 11 : i64} {
  func.func @_tm_kernel(%arg0: i32, %arg1: i32, %arg2: memref<1x64x128xf32, #tpu.memory_space<vmem>>, %arg3: memref<1x3x64x64xf32, #tpu.memory_space<vmem>>, %arg4: memref<1x64x48xf32, #tpu.memory_space<vmem>>) attributes {dimension_semantics = [#tpu.dimension_semantics<parallel>, #tpu.dimension_semantics<parallel>], iteration_bounds = array<i64: 1, 2>, scalar_prefetch = 0 : i64, scratch_operands = 0 : i64, tpu.core_type = #tpu.core_type<tc>, window_params = [{transform_indices = @transform_0, window_bounds = array<i64: 1, 64, 128>}, {transform_indices = @transform_1, window_bounds = array<i64: 1, 3, 64, 64>}, {transform_indices = @transform_2, window_bounds = array<i64: 1, 64, 48>}]} {
    %c0 = arith.constant 0 : index
    %c0_0 = arith.constant 0 : index
    %c0_1 = arith.constant 0 : index
    %c0_2 = arith.constant 0 : index
    %0 = vector.load %arg3[%c0, %c0_0, %c0_1, %c0_2] : memref<1x3x64x64xf32, #tpu.memory_space<vmem>>, vector<1x1x64x64xf32>
    %1 = vector.shape_cast %0 : vector<1x1x64x64xf32> to vector<64x64xf32>
    %c0_3 = arith.constant 0 : index
    %c1 = arith.constant 1 : index
    %c0_4 = arith.constant 0 : index
    %c0_5 = arith.constant 0 : index
    %2 = vector.load %arg3[%c0_3, %c1, %c0_4, %c0_5] : memref<1x3x64x64xf32, #tpu.memory_space<vmem>>, vector<1x1x64x64xf32>
    %3 = vector.shape_cast %2 : vector<1x1x64x64xf32> to vector<64x64xf32>
    %c0_6 = arith.constant 0 : index
    %c2 = arith.constant 2 : index
    %c0_7 = arith.constant 0 : index
    %c0_8 = arith.constant 0 : index
    %4 = vector.load %arg3[%c0_6, %c2, %c0_7, %c0_8] : memref<1x3x64x64xf32, #tpu.memory_space<vmem>>, vector<1x1x64x64xf32>
    %5 = vector.shape_cast %4 : vector<1x1x64x64xf32> to vector<64x64xf32>
    %c0_9 = arith.constant 0 : index
    %c0_10 = arith.constant 0 : index
    %c0_11 = arith.constant 0 : index
    %6 = vector.load %arg2[%c0_9, %c0_10, %c0_11] : memref<1x64x128xf32, #tpu.memory_space<vmem>>, vector<1x64x16xf32>
    %7 = vector.shape_cast %6 : vector<1x64x16xf32> to vector<64x16xf32>
    %cst = arith.constant dense<0.000000e+00> : vector<64x16xf32>
    %8 = tpu.matmul %3, %7, %cst {dimension_numbers = #tpu.dot_dimension_numbers<[1], [0], [0], [1], [0, 0, 1, 1], [], []>} : vector<64x64xf32>, vector<64x16xf32>, vector<64x16xf32> -> vector<64x16xf32>
    %c0_12 = arith.constant 0 : index
    %c0_13 = arith.constant 0 : index
    %c16 = arith.constant 16 : index
    %9 = vector.load %arg2[%c0_12, %c0_13, %c16] : memref<1x64x128xf32, #tpu.memory_space<vmem>>, vector<1x64x16xf32>
    %10 = vector.shape_cast %9 : vector<1x64x16xf32> to vector<64x16xf32>
    %cst_14 = arith.constant dense<0.000000e+00> : vector<64x16xf32>
    %11 = tpu.matmul %5, %10, %cst_14 {dimension_numbers = #tpu.dot_dimension_numbers<[1], [0], [0], [1], [0, 0, 1, 1], [], []>} : vector<64x64xf32>, vector<64x16xf32>, vector<64x16xf32> -> vector<64x16xf32>
    %12 = arith.addf %8, %11 : vector<64x16xf32>
    %c0_15 = arith.constant 0 : index
    %c0_16 = arith.constant 0 : index
    %c16_17 = arith.constant 16 : index
    %13 = vector.load %arg2[%c0_15, %c0_16, %c16_17] : memref<1x64x128xf32, #tpu.memory_space<vmem>>, vector<1x64x16xf32>
    %14 = vector.shape_cast %13 : vector<1x64x16xf32> to vector<64x16xf32>
    %cst_18 = arith.constant dense<0.000000e+00> : vector<64x16xf32>
    %15 = tpu.matmul %3, %14, %cst_18 {dimension_numbers = #tpu.dot_dimension_numbers<[1], [0], [0], [1], [0, 0, 1, 1], [], []>} : vector<64x64xf32>, vector<64x16xf32>, vector<64x16xf32> -> vector<64x16xf32>
    %c0_19 = arith.constant 0 : index
    %c0_20 = arith.constant 0 : index
    %c0_21 = arith.constant 0 : index
    %16 = vector.load %arg2[%c0_19, %c0_20, %c0_21] : memref<1x64x128xf32, #tpu.memory_space<vmem>>, vector<1x64x16xf32>
    %17 = vector.shape_cast %16 : vector<1x64x16xf32> to vector<64x16xf32>
    %cst_22 = arith.constant dense<0.000000e+00> : vector<64x16xf32>
    %18 = tpu.matmul %1, %17, %cst_22 {dimension_numbers = #tpu.dot_dimension_numbers<[1], [0], [0], [1], [0, 0, 1, 1], [], []>} : vector<64x64xf32>, vector<64x16xf32>, vector<64x16xf32> -> vector<64x16xf32>
    %19 = arith.addf %15, %18 : vector<64x16xf32>
    %c0_23 = arith.constant 0 : index
    %c0_24 = arith.constant 0 : index
    %c32 = arith.constant 32 : index
    %20 = vector.load %arg2[%c0_23, %c0_24, %c32] : memref<1x64x128xf32, #tpu.memory_space<vmem>>, vector<1x64x16xf32>
    %21 = vector.shape_cast %20 : vector<1x64x16xf32> to vector<64x16xf32>
    %cst_25 = arith.constant dense<0.000000e+00> : vector<64x16xf32>
    %22 = tpu.matmul %5, %21, %cst_25 {dimension_numbers = #tpu.dot_dimension_numbers<[1], [0], [0], [1], [0, 0, 1, 1], [], []>} : vector<64x64xf32>, vector<64x16xf32>, vector<64x16xf32> -> vector<64x16xf32>
    %23 = arith.addf %19, %22 : vector<64x16xf32>
    %24 = arith.maximumf %12, %23 : vector<64x16xf32>
    %c0_26 = arith.constant 0 : index
    %c0_27 = arith.constant 0 : index
    %c32_28 = arith.constant 32 : index
    %25 = vector.load %arg2[%c0_26, %c0_27, %c32_28] : memref<1x64x128xf32, #tpu.memory_space<vmem>>, vector<1x64x16xf32>
    %26 = vector.shape_cast %25 : vector<1x64x16xf32> to vector<64x16xf32>
    %cst_29 = arith.constant dense<0.000000e+00> : vector<64x16xf32>
    %27 = tpu.matmul %3, %26, %cst_29 {dimension_numbers = #tpu.dot_dimension_numbers<[1], [0], [0], [1], [0, 0, 1, 1], [], []>} : vector<64x64xf32>, vector<64x16xf32>, vector<64x16xf32> -> vector<64x16xf32>
    %c0_30 = arith.constant 0 : index
    %c0_31 = arith.constant 0 : index
    %c16_32 = arith.constant 16 : index
    %28 = vector.load %arg2[%c0_30, %c0_31, %c16_32] : memref<1x64x128xf32, #tpu.memory_space<vmem>>, vector<1x64x16xf32>
    %29 = vector.shape_cast %28 : vector<1x64x16xf32> to vector<64x16xf32>
    %cst_33 = arith.constant dense<0.000000e+00> : vector<64x16xf32>
    %30 = tpu.matmul %1, %29, %cst_33 {dimension_numbers = #tpu.dot_dimension_numbers<[1], [0], [0], [1], [0, 0, 1, 1], [], []>} : vector<64x64xf32>, vector<64x16xf32>, vector<64x16xf32> -> vector<64x16xf32>
    %31 = arith.addf %27, %30 : vector<64x16xf32>
    %c0_34 = arith.constant 0 : index
    %c0_35 = arith.constant 0 : index
    %c48 = arith.constant 48 : index
    %32 = vector.load %arg2[%c0_34, %c0_35, %c48] : memref<1x64x128xf32, #tpu.memory_space<vmem>>, vector<1x64x16xf32>
    %33 = vector.shape_cast %32 : vector<1x64x16xf32> to vector<64x16xf32>
    %cst_36 = arith.constant dense<0.000000e+00> : vector<64x16xf32>
    %34 = tpu.matmul %5, %33, %cst_36 {dimension_numbers = #tpu.dot_dimension_numbers<[1], [0], [0], [1], [0, 0, 1, 1], [], []>} : vector<64x64xf32>, vector<64x16xf32>, vector<64x16xf32> -> vector<64x16xf32>
    %35 = arith.addf %31, %34 : vector<64x16xf32>
    %36 = arith.maximumf %24, %35 : vector<64x16xf32>
    %c0_37 = arith.constant 0 : index
    %c0_38 = arith.constant 0 : index
    %c48_39 = arith.constant 48 : index
    %37 = vector.load %arg2[%c0_37, %c0_38, %c48_39] : memref<1x64x128xf32, #tpu.memory_space<vmem>>, vector<1x64x16xf32>
    %38 = vector.shape_cast %37 : vector<1x64x16xf32> to vector<64x16xf32>
    %cst_40 = arith.constant dense<0.000000e+00> : vector<64x16xf32>
    %39 = tpu.matmul %3, %38, %cst_40 {dimension_numbers = #tpu.dot_dimension_numbers<[1], [0], [0], [1], [0, 0, 1, 1], [], []>} : vector<64x64xf32>, vector<64x16xf32>, vector<64x16xf32> -> vector<64x16xf32>
    %c0_41 = arith.constant 0 : index
    %c0_42 = arith.constant 0 : index
    %c32_43 = arith.constant 32 : index
    %40 = vector.load %arg2[%c0_41, %c0_42, %c32_43] : memref<1x64x128xf32, #tpu.memory_space<vmem>>, vector<1x64x16xf32>
    %41 = vector.shape_cast %40 : vector<1x64x16xf32> to vector<64x16xf32>
    %cst_44 = arith.constant dense<0.000000e+00> : vector<64x16xf32>
    %42 = tpu.matmul %1, %41, %cst_44 {dimension_numbers = #tpu.dot_dimension_numbers<[1], [0], [0], [1], [0, 0, 1, 1], [], []>} : vector<64x64xf32>, vector<64x16xf32>, vector<64x16xf32> -> vector<64x16xf32>
    %43 = arith.addf %39, %42 : vector<64x16xf32>
    %c0_45 = arith.constant 0 : index
    %c0_46 = arith.constant 0 : index
    %c64 = arith.constant 64 : index
    %44 = vector.load %arg2[%c0_45, %c0_46, %c64] : memref<1x64x128xf32, #tpu.memory_space<vmem>>, vector<1x64x16xf32>
    %45 = vector.shape_cast %44 : vector<1x64x16xf32> to vector<64x16xf32>
    %cst_47 = arith.constant dense<0.000000e+00> : vector<64x16xf32>
    %46 = tpu.matmul %5, %45, %cst_47 {dimension_numbers = #tpu.dot_dimension_numbers<[1], [0], [0], [1], [0, 0, 1, 1], [], []>} : vector<64x64xf32>, vector<64x16xf32>, vector<64x16xf32> -> vector<64x16xf32>
    %47 = arith.addf %43, %46 : vector<64x16xf32>
    %c0_48 = arith.constant 0 : index
    %c0_49 = arith.constant 0 : index
    %c64_50 = arith.constant 64 : index
    %48 = vector.load %arg2[%c0_48, %c0_49, %c64_50] : memref<1x64x128xf32, #tpu.memory_space<vmem>>, vector<1x64x16xf32>
    %49 = vector.shape_cast %48 : vector<1x64x16xf32> to vector<64x16xf32>
    %cst_51 = arith.constant dense<0.000000e+00> : vector<64x16xf32>
    %50 = tpu.matmul %3, %49, %cst_51 {dimension_numbers = #tpu.dot_dimension_numbers<[1], [0], [0], [1], [0, 0, 1, 1], [], []>} : vector<64x64xf32>, vector<64x16xf32>, vector<64x16xf32> -> vector<64x16xf32>
    %c0_52 = arith.constant 0 : index
    %c0_53 = arith.constant 0 : index
    %c48_54 = arith.constant 48 : index
    %51 = vector.load %arg2[%c0_52, %c0_53, %c48_54] : memref<1x64x128xf32, #tpu.memory_space<vmem>>, vector<1x64x16xf32>
    %52 = vector.shape_cast %51 : vector<1x64x16xf32> to vector<64x16xf32>
    %cst_55 = arith.constant dense<0.000000e+00> : vector<64x16xf32>
    %53 = tpu.matmul %1, %52, %cst_55 {dimension_numbers = #tpu.dot_dimension_numbers<[1], [0], [0], [1], [0, 0, 1, 1], [], []>} : vector<64x64xf32>, vector<64x16xf32>, vector<64x16xf32> -> vector<64x16xf32>
    %54 = arith.addf %50, %53 : vector<64x16xf32>
    %c0_56 = arith.constant 0 : index
    %c0_57 = arith.constant 0 : index
    %c80 = arith.constant 80 : index
    %55 = vector.load %arg2[%c0_56, %c0_57, %c80] : memref<1x64x128xf32, #tpu.memory_space<vmem>>, vector<1x64x16xf32>
    %56 = vector.shape_cast %55 : vector<1x64x16xf32> to vector<64x16xf32>
    %cst_58 = arith.constant dense<0.000000e+00> : vector<64x16xf32>
    %57 = tpu.matmul %5, %56, %cst_58 {dimension_numbers = #tpu.dot_dimension_numbers<[1], [0], [0], [1], [0, 0, 1, 1], [], []>} : vector<64x64xf32>, vector<64x16xf32>, vector<64x16xf32> -> vector<64x16xf32>
    %58 = arith.addf %54, %57 : vector<64x16xf32>
    %59 = arith.maximumf %47, %58 : vector<64x16xf32>
    %c0_59 = arith.constant 0 : index
    %c0_60 = arith.constant 0 : index
    %c80_61 = arith.constant 80 : index
    %60 = vector.load %arg2[%c0_59, %c0_60, %c80_61] : memref<1x64x128xf32, #tpu.memory_space<vmem>>, vector<1x64x16xf32>
    %61 = vector.shape_cast %60 : vector<1x64x16xf32> to vector<64x16xf32>
    %cst_62 = arith.constant dense<0.000000e+00> : vector<64x16xf32>
    %62 = tpu.matmul %3, %61, %cst_62 {dimension_numbers = #tpu.dot_dimension_numbers<[1], [0], [0], [1], [0, 0, 1, 1], [], []>} : vector<64x64xf32>, vector<64x16xf32>, vector<64x16xf32> -> vector<64x16xf32>
    %c0_63 = arith.constant 0 : index
    %c0_64 = arith.constant 0 : index
    %c64_65 = arith.constant 64 : index
    %63 = vector.load %arg2[%c0_63, %c0_64, %c64_65] : memref<1x64x128xf32, #tpu.memory_space<vmem>>, vector<1x64x16xf32>
    %64 = vector.shape_cast %63 : vector<1x64x16xf32> to vector<64x16xf32>
    %cst_66 = arith.constant dense<0.000000e+00> : vector<64x16xf32>
    %65 = tpu.matmul %1, %64, %cst_66 {dimension_numbers = #tpu.dot_dimension_numbers<[1], [0], [0], [1], [0, 0, 1, 1], [], []>} : vector<64x64xf32>, vector<64x16xf32>, vector<64x16xf32> -> vector<64x16xf32>
    %66 = arith.addf %62, %65 : vector<64x16xf32>
    %c0_67 = arith.constant 0 : index
    %c0_68 = arith.constant 0 : index
    %c96 = arith.constant 96 : index
    %67 = vector.load %arg2[%c0_67, %c0_68, %c96] : memref<1x64x128xf32, #tpu.memory_space<vmem>>, vector<1x64x16xf32>
    %68 = vector.shape_cast %67 : vector<1x64x16xf32> to vector<64x16xf32>
    %cst_69 = arith.constant dense<0.000000e+00> : vector<64x16xf32>
    %69 = tpu.matmul %5, %68, %cst_69 {dimension_numbers = #tpu.dot_dimension_numbers<[1], [0], [0], [1], [0, 0, 1, 1], [], []>} : vector<64x64xf32>, vector<64x16xf32>, vector<64x16xf32> -> vector<64x16xf32>
    %70 = arith.addf %66, %69 : vector<64x16xf32>
    %71 = arith.maximumf %59, %70 : vector<64x16xf32>
    %c0_70 = arith.constant 0 : index
    %c0_71 = arith.constant 0 : index
    %c96_72 = arith.constant 96 : index
    %72 = vector.load %arg2[%c0_70, %c0_71, %c96_72] : memref<1x64x128xf32, #tpu.memory_space<vmem>>, vector<1x64x16xf32>
    %73 = vector.shape_cast %72 : vector<1x64x16xf32> to vector<64x16xf32>
    %cst_73 = arith.constant dense<0.000000e+00> : vector<64x16xf32>
    %74 = tpu.matmul %3, %73, %cst_73 {dimension_numbers = #tpu.dot_dimension_numbers<[1], [0], [0], [1], [0, 0, 1, 1], [], []>} : vector<64x64xf32>, vector<64x16xf32>, vector<64x16xf32> -> vector<64x16xf32>
    %c0_74 = arith.constant 0 : index
    %c0_75 = arith.constant 0 : index
    %c80_76 = arith.constant 80 : index
    %75 = vector.load %arg2[%c0_74, %c0_75, %c80_76] : memref<1x64x128xf32, #tpu.memory_space<vmem>>, vector<1x64x16xf32>
    %76 = vector.shape_cast %75 : vector<1x64x16xf32> to vector<64x16xf32>
    %cst_77 = arith.constant dense<0.000000e+00> : vector<64x16xf32>
    %77 = tpu.matmul %1, %76, %cst_77 {dimension_numbers = #tpu.dot_dimension_numbers<[1], [0], [0], [1], [0, 0, 1, 1], [], []>} : vector<64x64xf32>, vector<64x16xf32>, vector<64x16xf32> -> vector<64x16xf32>
    %78 = arith.addf %74, %77 : vector<64x16xf32>
    %c0_78 = arith.constant 0 : index
    %c0_79 = arith.constant 0 : index
    %c112 = arith.constant 112 : index
    %79 = vector.load %arg2[%c0_78, %c0_79, %c112] : memref<1x64x128xf32, #tpu.memory_space<vmem>>, vector<1x64x16xf32>
    %80 = vector.shape_cast %79 : vector<1x64x16xf32> to vector<64x16xf32>
    %cst_80 = arith.constant dense<0.000000e+00> : vector<64x16xf32>
    %81 = tpu.matmul %5, %80, %cst_80 {dimension_numbers = #tpu.dot_dimension_numbers<[1], [0], [0], [1], [0, 0, 1, 1], [], []>} : vector<64x64xf32>, vector<64x16xf32>, vector<64x16xf32> -> vector<64x16xf32>
    %82 = arith.addf %78, %81 : vector<64x16xf32>
    %c0_81 = arith.constant 0 : index
    %c0_82 = arith.constant 0 : index
    %c112_83 = arith.constant 112 : index
    %83 = vector.load %arg2[%c0_81, %c0_82, %c112_83] : memref<1x64x128xf32, #tpu.memory_space<vmem>>, vector<1x64x16xf32>
    %84 = vector.shape_cast %83 : vector<1x64x16xf32> to vector<64x16xf32>
    %cst_84 = arith.constant dense<0.000000e+00> : vector<64x16xf32>
    %85 = tpu.matmul %3, %84, %cst_84 {dimension_numbers = #tpu.dot_dimension_numbers<[1], [0], [0], [1], [0, 0, 1, 1], [], []>} : vector<64x64xf32>, vector<64x16xf32>, vector<64x16xf32> -> vector<64x16xf32>
    %c0_85 = arith.constant 0 : index
    %c0_86 = arith.constant 0 : index
    %c96_87 = arith.constant 96 : index
    %86 = vector.load %arg2[%c0_85, %c0_86, %c96_87] : memref<1x64x128xf32, #tpu.memory_space<vmem>>, vector<1x64x16xf32>
    %87 = vector.shape_cast %86 : vector<1x64x16xf32> to vector<64x16xf32>
    %cst_88 = arith.constant dense<0.000000e+00> : vector<64x16xf32>
    %88 = tpu.matmul %1, %87, %cst_88 {dimension_numbers = #tpu.dot_dimension_numbers<[1], [0], [0], [1], [0, 0, 1, 1], [], []>} : vector<64x64xf32>, vector<64x16xf32>, vector<64x16xf32> -> vector<64x16xf32>
    %89 = arith.addf %85, %88 : vector<64x16xf32>
    %90 = arith.maximumf %82, %89 : vector<64x16xf32>
    %91 = tpu.concatenate %36, %71, %90 in 1 : vector<64x16xf32>, vector<64x16xf32>, vector<64x16xf32> -> vector<64x48xf32>
    %c0_89 = arith.constant 0 : index
    %c0_90 = arith.constant 0 : index
    %c0_91 = arith.constant 0 : index
    %92 = vector.load %arg4[%c0_89, %c0_90, %c0_91] : memref<1x64x48xf32, #tpu.memory_space<vmem>>, vector<1x64x48xf32>
    %93 = vector.shape_cast %92 : vector<1x64x48xf32> to vector<64x48xf32>
    %94 = vector.shape_cast %91 : vector<64x48xf32> to vector<1x64x48xf32>
    tpu.vector_store %arg4[%c0_89, %c0_90, %c0_91], %94 {strides = array<i32>} : memref<1x64x48xf32, #tpu.memory_space<vmem>>, vector<1x64x48xf32>,
    return
  }
  func.func @transform_0(%arg0: i32, %arg1: i32) -> (i32, i32, i32) {
    %c0_i32 = arith.constant 0 : i32
    %c0_i32_0 = arith.constant 0 : i32
    return %arg1, %arg0, %c0_i32 : i32, i32, i32
  }
  func.func @transform_1(%arg0: i32, %arg1: i32) -> (i32, i32, i32, i32) {
    %c0_i32 = arith.constant 0 : i32
    %c0_i32_0 = arith.constant 0 : i32
    %c0_i32_1 = arith.constant 0 : i32
    %c0_i32_2 = arith.constant 0 : i32
    return %arg0, %c0_i32, %c0_i32_0, %c0_i32_1 : i32, i32, i32, i32
  }
  func.func @transform_2(%arg0: i32, %arg1: i32) -> (i32, i32, i32) {
    %c0_i32 = arith.constant 0 : i32
    %c0_i32_0 = arith.constant 0 : i32
    return %arg1, %arg0, %c0_i32 : i32, i32, i32
  }
}

</mosaic_0001>

<llo_original>
// kernel: temporal_modulation.1
$region0: #{temporal_modulation.1}
  #allocation0 [shape = 'u32[]', space=smem, size = 0x4, offset = 0x4, fixed_abs, tag = 'smem constant byte address 0x4 - core index']
  #allocation1 [shape = 'u32[144,128]{1,0:T(1,128)}', space=vmem, size = 0x12000, scoped, tag = 'internal scratch']
  %s0 = inlined_call_operand.vmem [shape: f32[2,64,128], index: 0, kind: input, shape index: {}]
  %s1 = inlined_call_operand.vmem [shape: f32[1,3,64,64], index: 1, kind: input, shape index: {}]
  %s2 = inlined_call_operand.vmem [shape: f32[2,64,48], index: 2, kind: output, shape index: {}]
  %s3 = sld [smem:[#allocation0]]
  $region41: #{temporal_modulation.1} parent=0
    _
  %s5 = ssub.s32 1, %s3
  %s6 = scalar_select 0, %s5, %s3
  loop: start=0, step=1, limit=4
  $region2: #{temporal_modulation.1} parent=0 // loop_pre_header
    _
  $region3: #{temporal_modulation.1} parent=0 // loop_header
    %s8 = sphi 0, %s12
    %p9 = scmp.ge.s32.totalorder %s8, 4
    %s15 = sphi 0, %s27
    %s16 = sphi 0, %s23
    %s17 = sphi 0, %s15
    %s18 = sphi 0, %s16
    %s19 = sphi 0, %s17
    %s20 = sphi 0, %s18
    %s32 = sphi 0, %s34
    %s35 = sphi 0, %s32
    %s36 = sphi 0, %s35
    %s52 = sphi 0, %s36
    %s58 = sphi 0, %s60
    %s61 = sphi 0, %s58
    %s62 = sphi 0, %s61
    %s78 = sphi 0, %s62
    %s86 = sphi 0, %s88
    %s89 = sphi 0, %s86
    %s90 = sphi 0, %s89
    %s106 = sphi 0, %s90
  $region4: #{temporal_modulation.1} parent=0 // loop_header_branch
    %11 = sbr.rel (%p9) target = $region8
  $region5: #{temporal_modulation.1} parent=0 // loop_body
    %s13 = ssub.s32 %s8, 1
    %s14 = ssub.s32 %s8, 2
    %s21 = sadd.s32 1, %s16
    %p22 = scmp.ge.s32.totalorder %s21, 2
    %s23 = scalar_select %p22, 0, %s21
    %s24 = sadd.s32 1, %s15
    %s25 = scalar_select %p22, %s24, %s15
    %p26 = scmp.ge.s32.totalorder %s25, 1
    %s27 = scalar_select %p26, 0, %s25
    %s28 = ssub.s32 %s16, %s23
    %s29 = ssub.s32 %s15, %s27
    %s30 = sor.u32 %s28, %s29
    %p31 = scmp.eq.s32.totalorder %s30, 0
    %s33 = sadd.s32 %s32, 1
    %s34 = scalar_select %p31, %s32, %s33
    %p37 = pneg %p31
    %p38 = scmp.eq.s32.totalorder %s8, 1
    %p39 = por %p37, %p38
    %p40 = scmp.ne.s32.totalorder %s32, %s35
    %p41 = scmp.eq.s32.totalorder %s8, 0
    %p42 = por %p40, %p41
    %p43 = scmp.ne.s32.totalorder %s32, %s35
    %p44 = scmp.eq.s32.totalorder %s13, 1
    %p45 = por %p43, %p44
    %p46 = scmp.ne.s32.totalorder %s35, %s36
    %p47 = scmp.eq.s32.totalorder %s13, 0
    %p48 = por %p46, %p47
    %p49 = scmp.ne.s32.totalorder %s35, %s36
    %p50 = scmp.eq.s32.totalorder %s14, 1
    %p51 = por %p49, %p50
    %p53 = scmp.ne.s32.totalorder %s36, %s52
    %p54 = scmp.eq.s32.totalorder %s14, 0
    %p55 = por %p53, %p54
    %s56 = ssub.s32 %s15, %s27
    %p57 = scmp.eq.s32.totalorder %s56, 0
    %s59 = sadd.s32 %s58, 1
    %s60 = scalar_select %p57, %s58, %s59
    %p63 = pneg %p57
    %p64 = scmp.eq.s32.totalorder %s8, 1
    %p65 = por %p63, %p64
    %p66 = scmp.ne.s32.totalorder %s58, %s61
    %p67 = scmp.eq.s32.totalorder %s8, 0
    %p68 = por %p66, %p67
    %p69 = scmp.ne.s32.totalorder %s58, %s61
    %p70 = scmp.eq.s32.totalorder %s13, 1
    %p71 = por %p69, %p70
    %p72 = scmp.ne.s32.totalorder %s61, %s62
    %p73 = scmp.eq.s32.totalorder %s13, 0
    %p74 = por %p72, %p73
    %p75 = scmp.ne.s32.totalorder %s61, %s62
    %p76 = scmp.eq.s32.totalorder %s14, 1
    %p77 = por %p75, %p76
    %p79 = scmp.ne.s32.totalorder %s62, %s78
    %p80 = scmp.eq.s32.totalorder %s14, 0
    %p81 = por %p79, %p80
    %s82 = ssub.s32 %s16, %s23
    %s83 = ssub.s32 %s15, %s27
    %s84 = sor.u32 %s82, %s83
    %p85 = scmp.eq.s32.totalorder %s84, 0
    %s87 = sadd.s32 %s86, 1
    %s88 = scalar_select %p85, %s86, %s87
    %p91 = pneg %p85
    %p92 = scmp.eq.s32.totalorder %s8, 1
    %p93 = por %p91, %p92
    %p94 = scmp.ne.s32.totalorder %s86, %s89
    %p95 = scmp.eq.s32.totalorder %s8, 0
    %p96 = por %p94, %p95
    %p97 = scmp.ne.s32.totalorder %s86, %s89
    %p98 = scmp.eq.s32.totalorder %s13, 1
    %p99 = por %p97, %p98
    %p100 = scmp.ne.s32.totalorder %s89, %s90
    %p101 = scmp.eq.s32.totalorder %s13, 0
    %p102 = por %p100, %p101
    %p103 = scmp.ne.s32.totalorder %s89, %s90
    %p104 = scmp.eq.s32.totalorder %s14, 1
    %p105 = por %p103, %p104
    %p107 = scmp.ne.s32.totalorder %s90, %s106
    %p108 = scmp.eq.s32.totalorder %s14, 0
    %p109 = por %p107, %p108
    %p110 = scmp.le.s32.totalorder 1, %s8
    %p111 = scmp.lt.s32.totalorder %s8, 3
    %p112 = pnand %p110, %p111
    %p113 = pneg %p112
    // Predicated region
    $region9: #{temporal_modulation.1} parent=5 // pred_check
      _
    $region10: #{temporal_modulation.1} parent=5 // pred_check_branch
      %115 = sbr.rel (%p112) target = $region12
    $region11: #{temporal_modulation.1} parent=5 // pred_region
      %s116 = ssub.s32 %s8, 1
      // Predicated region
      $region13: #{temporal_modulation.1} parent=11 // pred_check
        %p117 = pneg %p74
      $region14: #{temporal_modulation.1} parent=11 // pred_check_branch
        %119 = sbr.rel (%p117) target = $region16
      $region15: #{temporal_modulation.1} parent=11 // pred_region
        %p120 = scmp.lt.s32.totalorder %s17, 0
        %s121 = scalar_select %p120, %s17, 0
        %s122 = smul.addr %s121, 24
        %s123 = smul.addr %s122, 8
        %s124 = scalar_lea.vmem %s1, %s123
      $region16: #{temporal_modulation.1} parent=11 // pred_fallthru
        _
    $region12: #{temporal_modulation.1} parent=5 // pred_fallthru
      _
    %p125 = scmp.lt.s32.totalorder %s8, 2
    // Predicated region
    $region17: #{temporal_modulation.1} parent=5 // pred_check
      %p126 = pneg %p125
    $region18: #{temporal_modulation.1} parent=5 // pred_check_branch
      %128 = sbr.rel (%p126) target = $region20
    $region19: #{temporal_modulation.1} parent=5 // pred_region
      // Predicated region
      $region21: #{temporal_modulation.1} parent=19 // pred_check
        %p129 = pneg %p42
      $region22: #{temporal_modulation.1} parent=19 // pred_check_branch
        %131 = sbr.rel (%p129) target = $region24
      $region23: #{temporal_modulation.1} parent=19 // pred_region
        %s132 = smul.u32 8, %s15
        %p133 = scmp.lt.s32.totalorder %s16, 1
        %s134 = scalar_select %p133, %s16, 1
        %p135 = scmp.lt.s32.totalorder %s132, 7
        %s136 = scalar_select %p135, %s132, 7
        %s137 = smul.addr %s134, 8
        %s138 = sadd.s32 %s136, %s137
        %s139 = smul.addr %s138, 8
        %s140 = scalar_lea.vmem %s0, %s139
        %s141 = smul.u32 8, %s15
      $region24: #{temporal_modulation.1} parent=19 // pred_fallthru
        _
    $region20: #{temporal_modulation.1} parent=5 // pred_fallthru
      _
    %p142 = scmp.le.s32.totalorder 1, %s8
    %p143 = scmp.lt.s32.totalorder %s8, 3
    %p144 = pnand %p142, %p143
    %p145 = pneg %p144
    // Predicated region
    $region25: #{temporal_modulation.1} parent=5 // pred_check
      _
    $region26: #{temporal_modulation.1} parent=5 // pred_check_branch
      %147 = sbr.rel (%p144) target = $region28
    $region27: #{temporal_modulation.1} parent=5 // pred_region
      %s148 = ssub.s32 %s8, 1
      %s149 = smul.u32 8, %s17
      %p150 = scmp.lt.s32.totalorder %s18, 1
      %s151 = scalar_select %p150, %s18, 1
      %p152 = scmp.lt.s32.totalorder %s149, 7
      %s153 = scalar_select %p152, %s149, 7
      %s154 = smul.addr %s151, 8
      %s155 = sadd.s32 %s153, %s154
      %s156 = smul.addr %s155, 8
      %s157 = scalar_lea.vmem %s0, %s156
      %p158 = pneg %p48
      %p159 = pneg %p45
      %p160 = scmp.lt.s32.totalorder %s17, 0
      %s161 = scalar_select %p160, %s17, 0
      %s162 = smul.addr %s161, 24
      %s163 = smul.addr %s162, 8
      %s164 = scalar_lea.vmem %s1, %s163
      %p165 = pneg %p74
      %p166 = pneg %p71
      %p167 = pneg %p102
      %p168 = pneg %p99
      %s169 = smul.u32 8, %s17
      %p170 = scmp.lt.s32.totalorder %s18, 1
      %s171 = scalar_select %p170, %s18, 1
      %p172 = scmp.lt.s32.totalorder %s169, 7
      %s173 = scalar_select %p172, %s169, 7
      %s174 = smul.addr %s171, 8
      %s175 = sadd.s32 %s173, %s174
      %s176 = smul.addr %s175, 8
      %s177 = scalar_lea.vmem %s2, %s176
      %s178 = smul.u32 8, %s17
      %p179 = scmp.lt.s32.totalorder %s18, 1
      %s180 = scalar_select %p179, %s18, 1
      %p181 = scmp.lt.s32.totalorder %s178, 7
      %s182 = scalar_select %p181, %s178, 7
      %s183 = smul.addr %s180, 8
      %s184 = sadd.s32 %s182, %s183
      %s185 = smul.addr %s184, 8
      %s186 = scalar_lea.vmem %s0, %s185
      %s187 = smul.u32 8, %s17
      %p188 = scmp.lt.s32.totalorder %s17, 0
      %s189 = scalar_select %p188, %s17, 0
      %s190 = smul.addr %s189, 24
      %s191 = smul.addr %s190, 8
      %s192 = scalar_lea.vmem %s1, %s191
      %s193 = smul.u32 8, %s17
      %p194 = scmp.lt.s32.totalorder %s18, 1
      %s195 = scalar_select %p194, %s18, 1
      %p196 = scmp.lt.s32.totalorder %s193, 7
      %s197 = scalar_select %p196, %s193, 7
      %s198 = smul.addr %s195, 8
      %s199 = sadd.s32 %s197, %s198
      %s200 = smul.addr %s199, 8
      %s201 = scalar_lea.vmem %s2, %s200
      %s202 = smul.u32 8, %s17
      %v203 = vld [vmem:[%s192] sm:$0xff]
      %v204 = vld [vmem:[%s192 + $0x8] sm:$0xff]
      %v205 = vld [vmem:[%s192 + $0x10] sm:$0xff]
      %v206 = vld [vmem:[%s192 + $0x18] sm:$0xff]
      %v207 = vld [vmem:[%s192 + $0x20] sm:$0xff]
      %v208 = vld [vmem:[%s192 + $0x28] sm:$0xff]
      %v209 = vld [vmem:[%s192 + $0x30] sm:$0xff]
      %v210 = vld [vmem:[%s192 + $0x38] sm:$0xff]
      %s211 = scalar_lea.vmem %s192, 64
      %v212 = vld [vmem:[%s211] sm:$0xff]
      %v213 = vld [vmem:[%s211 + $0x8] sm:$0xff]
      %v214 = vld [vmem:[%s211 + $0x10] sm:$0xff]
      %v215 = vld [vmem:[%s211 + $0x18] sm:$0xff]
      %v216 = vld [vmem:[%s211 + $0x20] sm:$0xff]
      %v217 = vld [vmem:[%s211 + $0x28] sm:$0xff]
      %v218 = vld [vmem:[%s211 + $0x30] sm:$0xff]
      %v219 = vld [vmem:[%s211 + $0x38] sm:$0xff]
      %s220 = scalar_lea.vmem %s192, 128
      %v221 = vld [vmem:[%s220] sm:$0xff]
      %v222 = vld [vmem:[%s220 + $0x8] sm:$0xff]
      %v223 = vld [vmem:[%s220 + $0x10] sm:$0xff]
      %v224 = vld [vmem:[%s220 + $0x18] sm:$0xff]
      %v225 = vld [vmem:[%s220 + $0x20] sm:$0xff]
      %v226 = vld [vmem:[%s220 + $0x28] sm:$0xff]
      %v227 = vld [vmem:[%s220 + $0x30] sm:$0xff]
      %v228 = vld [vmem:[%s220 + $0x38] sm:$0xff]
      %v229 = vld [vmem:[%s186] sm:$0xff]
      %v230 = vld [vmem:[%s186 + $0x8] sm:$0xff]
      %v231 = vld [vmem:[%s186 + $0x10] sm:$0xff]
      %v232 = vld [vmem:[%s186 + $0x18] sm:$0xff]
      %v233 = vld [vmem:[%s186 + $0x20] sm:$0xff]
      %v234 = vld [vmem:[%s186 + $0x28] sm:$0xff]
      %v235 = vld [vmem:[%s186 + $0x30] sm:$0xff]
      %v236 = vld [vmem:[%s186 + $0x38] sm:$0xff]
      %245 = vrot.lane.b32.xlu0 %v229, 112
      %v246 = vpop.permute.xlu0 %245
      %247 = vrot.lane.b32.xlu0 %v230, 112
      %v248 = vpop.permute.xlu0 %247
      %249 = vrot.lane.b32.xlu0 %v231, 112
      %v250 = vpop.permute.xlu0 %249
      %251 = vrot.lane.b32.xlu0 %v232, 112
      %v252 = vpop.permute.xlu0 %251
      %253 = vrot.lane.b32.xlu0 %v233, 112
      %v254 = vpop.permute.xlu0 %253
      %255 = vrot.lane.b32.xlu0 %v234, 112
      %v256 = vpop.permute.xlu0 %255
      %257 = vrot.lane.b32.xlu0 %v235, 112
      %v258 = vpop.permute.xlu0 %257
      %259 = vrot.lane.b32.xlu0 %v236, 112
      %v260 = vpop.permute.xlu0 %259
      %vm269 = vcmask 523264
      %v271 = vsel %vm269, %v221, 0
      %v274 = vsel %vm269, %v222, 0
      %v277 = vsel %vm269, %v223, 0
      %v280 = vsel %vm269, %v224, 0
      %v283 = vsel %vm269, %v225, 0
      %v286 = vsel %vm269, %v226, 0
      %v289 = vsel %vm269, %v227, 0
      %v292 = vsel %vm269, %v228, 0
      %294 = vmatprep.subr.mxu0 0.0
      %295 = vmatpush1.msra.mxu0 %v246
      %296 = vmatprep.subr.mxu0 0.0
      %297 = vmatpush1.msra.mxu0 %v248
      %298 = vmatprep.subr.mxu0 0.0
      %299 = vmatpush1.msra.mxu0 %v250
      %300 = vmatprep.subr.mxu0 0.0
      %301 = vmatpush1.msra.mxu0 %v252
      %302 = vmatprep.subr.mxu0 0.0
      %303 = vmatpush1.msra.mxu0 %v254
      %304 = vmatprep.subr.mxu0 0.0
      %305 = vmatpush1.msra.mxu0 %v256
      %306 = vmatprep.subr.mxu0 0.0
      %307 = vmatpush1.msra.mxu0 %v258
      %308 = vmatprep.subr.mxu0 0.0
      %309 = vmatpush1.msra.mxu0 %v260
      %310 = vmatprep.subr.mxu0 0.0
      %311 = vmatpush1.msra.mxu0 0.0
      %312 = vmatprep.subr.mxu0 0.0
      %313 = vmatpush1.msra.mxu0 0.0
      %314 = vmatprep.subr.mxu0 0.0
      %315 = vmatpush1.msra.mxu0 0.0
      %316 = vmatprep.subr.mxu0 0.0
      %317 = vmatpush1.msra.mxu0 0.0
      %318 = vmatprep.subr.mxu0 0.0
      %319 = vmatpush1.msra.mxu0 0.0
      %320 = vmatprep.subr.mxu0 0.0
      %321 = vmatpush1.msra.mxu0 0.0
      %322 = vmatprep.subr.mxu0 0.0
      %323 = vmatpush1.msra.mxu0 0.0
      %324 = vmatprep.subr.mxu0 0.0
      %325 = vmatpush1.msra.mxu0 0.0
      %326 = vmatprep.subr.mxu0 0.0
      %327 = vmatpush1.msra.mxu0 0.0
      %328 = vmatprep.subr.mxu0 0.0
      %329 = vmatpush1.msra.mxu0 0.0
      %330 = vmatprep.subr.mxu0 0.0
      %331 = vmatpush1.msra.mxu0 0.0
      %332 = vmatprep.subr.mxu0 0.0
      %333 = vmatpush1.msra.mxu0 0.0
      %334 = vmatprep.subr.mxu0 0.0
      %335 = vmatpush1.msra.mxu0 0.0
      %336 = vmatprep.subr.mxu0 0.0
      %337 = vmatpush1.msra.mxu0 0.0
      %338 = vmatprep.subr.mxu0 0.0
      %339 = vmatpush1.msra.mxu0 0.0
      %340 = vmatprep.subr.mxu0 0.0
      %341 = vmatpush1.msra.mxu0 0.0
      %342 = vmatprep.subr.mxu0 0.0
      %343 = vmatpush1.msra.mxu0 0.0
      %344 = vmatprep.subr.mxu0 0.0
      %345 = vmatpush1.msra.mxu0 0.0
      %346 = vmatprep.subr.mxu0 0.0
      %347 = vmatpush1.msra.mxu0 0.0
      %348 = vmatprep.subr.mxu0 0.0
      %349 = vmatpush1.msra.mxu0 0.0
      %350 = vmatprep.subr.mxu0 0.0
      %351 = vmatpush1.msra.mxu0 0.0
      %352 = vmatprep.subr.mxu0 0.0
      %353 = vmatpush1.msra.mxu0 0.0
      %354 = vmatprep.subr.mxu0 0.0
      %355 = vmatpush1.msra.mxu0 0.0
      %356 = vmatprep.subr.mxu0 0.0
      %357 = vmatpush1.msra.mxu0 0.0
      %358 = vmatprep.mubr.f32.mxu0 0.0
      %359 = vmatmul.mubr.f32.gmra.mrb[0].mxu0 %v271
      %v360 = vpop.f32.mrb[0].mxu0
      %v361 = vadd.f32 0.0, %v360
      %v362 = vpop.f32.mrb[0].mxu0
      %363 = vmatprep.mubr.f32.mxu0 0.0
      %364 = vmatmul.mubr.f32.gmra.mrb[0].mxu0 %v274
      %v365 = vpop.f32.mrb[0].mxu0
      %v366 = vadd.f32 0.0, %v365
      %v367 = vpop.f32.mrb[0].mxu0
      %368 = vmatprep.mubr.f32.mxu0 0.0
      %369 = vmatmul.mubr.f32.gmra.mrb[0].mxu0 %v277
      %v370 = vpop.f32.mrb[0].mxu0
      %v371 = vadd.f32 0.0, %v370
      %v372 = vpop.f32.mrb[0].mxu0
      %373 = vmatprep.mubr.f32.mxu0 0.0
      %374 = vmatmul.mubr.f32.gmra.mrb[0].mxu0 %v280
      %v375 = vpop.f32.mrb[0].mxu0
      %v376 = vadd.f32 0.0, %v375
      %v377 = vpop.f32.mrb[0].mxu0
      %378 = vmatprep.mubr.f32.mxu0 0.0
      %379 = vmatmul.mubr.f32.gmra.mrb[0].mxu0 %v283
      %v380 = vpop.f32.mrb[0].mxu0
      %v381 = vadd.f32 0.0, %v380
      %v382 = vpop.f32.mrb[0].mxu0
      %383 = vmatprep.mubr.f32.mxu0 0.0
      %384 = vmatmul.mubr.f32.gmra.mrb[0].mxu0 %v286
      %v385 = vpop.f32.mrb[0].mxu0
      %v386 = vadd.f32 0.0, %v385
      %v387 = vpop.f32.mrb[0].mxu0
      %388 = vmatprep.mubr.f32.mxu0 0.0
      %389 = vmatmul.mubr.f32.gmra.mrb[0].mxu0 %v289
      %v390 = vpop.f32.mrb[0].mxu0
      %v391 = vadd.f32 0.0, %v390
      %v392 = vpop.f32.mrb[0].mxu0
      %393 = vmatprep.mubr.f32.mxu0 0.0
      %394 = vmatmul.mubr.f32.gmra.mrb[0].mxu0 %v292
      %v395 = vpop.f32.mrb[0].mxu0
      %v396 = vadd.f32 0.0, %v395
      %v397 = vpop.f32.mrb[0].mxu0
      %398 = vdwg.mxu0
      %v400 = vsel %vm269, %v212, 0
      %v403 = vsel %vm269, %v213, 0
      %v406 = vsel %vm269, %v214, 0
      %v409 = vsel %vm269, %v215, 0
      %v412 = vsel %vm269, %v216, 0
      %v415 = vsel %vm269, %v217, 0
      %v418 = vsel %vm269, %v218, 0
      %v421 = vsel %vm269, %v219, 0
      %423 = vmatprep.subr.mxu0 0.0
      %424 = vmatpush1.msra.mxu0 %v229
      %425 = vmatprep.subr.mxu0 0.0
      %426 = vmatpush1.msra.mxu0 %v230
      %427 = vmatprep.subr.mxu0 0.0
      %428 = vmatpush1.msra.mxu0 %v231
      %429 = vmatprep.subr.mxu0 0.0
      %430 = vmatpush1.msra.mxu0 %v232
      %431 = vmatprep.subr.mxu0 0.0
      %432 = vmatpush1.msra.mxu0 %v233
      %433 = vmatprep.subr.mxu0 0.0
      %434 = vmatpush1.msra.mxu0 %v234
      %435 = vmatprep.subr.mxu0 0.0
      %436 = vmatpush1.msra.mxu0 %v235
      %437 = vmatprep.subr.mxu0 0.0
      %438 = vmatpush1.msra.mxu0 %v236
      %439 = vmatprep.subr.mxu0 0.0
      %440 = vmatpush1.msra.mxu0 0.0
      %441 = vmatprep.subr.mxu0 0.0
      %442 = vmatpush1.msra.mxu0 0.0
      %443 = vmatprep.subr.mxu0 0.0
      %444 = vmatpush1.msra.mxu0 0.0
      %445 = vmatprep.subr.mxu0 0.0
      %446 = vmatpush1.msra.mxu0 0.0
      %447 = vmatprep.subr.mxu0 0.0
      %448 = vmatpush1.msra.mxu0 0.0
      %449 = vmatprep.subr.mxu0 0.0
      %450 = vmatpush1.msra.mxu0 0.0
      %451 = vmatprep.subr.mxu0 0.0
      %452 = vmatpush1.msra.mxu0 0.0
      %453 = vmatprep.subr.mxu0 0.0
      %454 = vmatpush1.msra.mxu0 0.0
      %455 = vmatprep.subr.mxu0 0.0
      %456 = vmatpush1.msra.mxu0 0.0
      %457 = vmatprep.subr.mxu0 0.0
      %458 = vmatpush1.msra.mxu0 0.0
      %459 = vmatprep.subr.mxu0 0.0
      %460 = vmatpush1.msra.mxu0 0.0
      %461 = vmatprep.subr.mxu0 0.0
      %462 = vmatpush1.msra.mxu0 0.0
      %463 = vmatprep.subr.mxu0 0.0
      %464 = vmatpush1.msra.mxu0 0.0
      %465 = vmatprep.subr.mxu0 0.0
      %466 = vmatpush1.msra.mxu0 0.0
      %467 = vmatprep.subr.mxu0 0.0
      %468 = vmatpush1.msra.mxu0 0.0
      %469 = vmatprep.subr.mxu0 0.0
      %470 = vmatpush1.msra.mxu0 0.0
      %471 = vmatprep.subr.mxu0 0.0
      %472 = vmatpush1.msra.mxu0 0.0
      %473 = vmatprep.subr.mxu0 0.0
      %474 = vmatpush1.msra.mxu0 0.0
      %475 = vmatprep.subr.mxu0 0.0
      %476 = vmatpush1.msra.mxu0 0.0
      %477 = vmatprep.subr.mxu0 0.0
      %478 = vmatpush1.msra.mxu0 0.0
      %479 = vmatprep.subr.mxu0 0.0
      %480 = vmatpush1.msra.mxu0 0.0
      %481 = vmatprep.subr.mxu0 0.0
      %482 = vmatpush1.msra.mxu0 0.0
      %483 = vmatprep.subr.mxu0 0.0
      %484 = vmatpush1.msra.mxu0 0.0
      %485 = vmatprep.subr.mxu0 0.0
      %486 = vmatpush1.msra.mxu0 0.0
      %487 = vmatprep.mubr.f32.mxu0 0.0
      %488 = vmatmul.mubr.f32.gmra.mrb[0].mxu0 %v400
      %v489 = vpop.f32.mrb[0].mxu0
      %v490 = vadd.f32 %v361, %v489
      %v491 = vpop.f32.mrb[0].mxu0
      %492 = vmatprep.mubr.f32.mxu0 0.0
      %493 = vmatmul.mubr.f32.gmra.mrb[0].mxu0 %v403
      %v494 = vpop.f32.mrb[0].mxu0
      %v495 = vadd.f32 %v366, %v494
      %v496 = vpop.f32.mrb[0].mxu0
      %497 = vmatprep.mubr.f32.mxu0 0.0
      %498 = vmatmul.mubr.f32.gmra.mrb[0].mxu0 %v406
      %v499 = vpop.f32.mrb[0].mxu0
      %v500 = vadd.f32 %v371, %v499
      %v501 = vpop.f32.mrb[0].mxu0
      %502 = vmatprep.mubr.f32.mxu0 0.0
      %503 = vmatmul.mubr.f32.gmra.mrb[0].mxu0 %v409
      %v504 = vpop.f32.mrb[0].mxu0
      %v505 = vadd.f32 %v376, %v504
      %v506 = vpop.f32.mrb[0].mxu0
      %507 = vmatprep.mubr.f32.mxu0 0.0
      %508 = vmatmul.mubr.f32.gmra.mrb[0].mxu0 %v412
      %v509 = vpop.f32.mrb[0].mxu0
      %v510 = vadd.f32 %v381, %v509
      %v511 = vpop.f32.mrb[0].mxu0
      %512 = vmatprep.mubr.f32.mxu0 0.0
      %513 = vmatmul.mubr.f32.gmra.mrb[0].mxu0 %v415
      %v514 = vpop.f32.mrb[0].mxu0
      %v515 = vadd.f32 %v386, %v514
      %v516 = vpop.f32.mrb[0].mxu0
      %517 = vmatprep.mubr.f32.mxu0 0.0
      %518 = vmatmul.mubr.f32.gmra.mrb[0].mxu0 %v418
      %v519 = vpop.f32.mrb[0].mxu0
      %v520 = vadd.f32 %v391, %v519
      %v521 = vpop.f32.mrb[0].mxu0
      %522 = vmatprep.mubr.f32.mxu0 0.0
      %523 = vmatmul.mubr.f32.gmra.mrb[0].mxu0 %v421
      %v524 = vpop.f32.mrb[0].mxu0
      %v525 = vadd.f32 %v396, %v524
      %v526 = vpop.f32.mrb[0].mxu0
      %527 = vdwg.mxu0
      %v529 = vsel %vm269, %v203, 0
      %v532 = vsel %vm269, %v204, 0
      %v535 = vsel %vm269, %v205, 0
      %v538 = vsel %vm269, %v206, 0
      %v541 = vsel %vm269, %v207, 0
      %v544 = vsel %vm269, %v208, 0
      %v547 = vsel %vm269, %v209, 0
      %v550 = vsel %vm269, %v210, 0
      %552 = vmatprep.subr.mxu0 0.0
      %553 = vmatpush1.msra.mxu0 %v229
      %554 = vmatprep.subr.mxu0 0.0
      %555 = vmatpush1.msra.mxu0 %v230
      %556 = vmatprep.subr.mxu0 0.0
      %557 = vmatpush1.msra.mxu0 %v231
      %558 = vmatprep.subr.mxu0 0.0
      %559 = vmatpush1.msra.mxu0 %v232
      %560 = vmatprep.subr.mxu0 0.0
      %561 = vmatpush1.msra.mxu0 %v233
      %562 = vmatprep.subr.mxu0 0.0
      %563 = vmatpush1.msra.mxu0 %v234
      %564 = vmatprep.subr.mxu0 0.0
      %565 = vmatpush1.msra.mxu0 %v235
      %566 = vmatprep.subr.mxu0 0.0
      %567 = vmatpush1.msra.mxu0 %v236
      %568 = vmatprep.subr.mxu0 0.0
      %569 = vmatpush1.msra.mxu0 0.0
      %570 = vmatprep.subr.mxu0 0.0
      %571 = vmatpush1.msra.mxu0 0.0
      %572 = vmatprep.subr.mxu0 0.0
      %573 = vmatpush1.msra.mxu0 0.0
      %574 = vmatprep.subr.mxu0 0.0
      %575 = vmatpush1.msra.mxu0 0.0
      %576 = vmatprep.subr.mxu0 0.0
      %577 = vmatpush1.msra.mxu0 0.0
      %578 = vmatprep.subr.mxu0 0.0
      %579 = vmatpush1.msra.mxu0 0.0
      %580 = vmatprep.subr.mxu0 0.0
      %581 = vmatpush1.msra.mxu0 0.0
      %582 = vmatprep.subr.mxu0 0.0
      %583 = vmatpush1.msra.mxu0 0.0
      %584 = vmatprep.subr.mxu0 0.0
      %585 = vmatpush1.msra.mxu0 0.0
      %586 = vmatprep.subr.mxu0 0.0
      %587 = vmatpush1.msra.mxu0 0.0
      %588 = vmatprep.subr.mxu0 0.0
      %589 = vmatpush1.msra.mxu0 0.0
      %590 = vmatprep.subr.mxu0 0.0
      %591 = vmatpush1.msra.mxu0 0.0
      %592 = vmatprep.subr.mxu0 0.0
      %593 = vmatpush1.msra.mxu0 0.0
      %594 = vmatprep.subr.mxu0 0.0
      %595 = vmatpush1.msra.mxu0 0.0
      %596 = vmatprep.subr.mxu0 0.0
      %597 = vmatpush1.msra.mxu0 0.0
      %598 = vmatprep.subr.mxu0 0.0
      %599 = vmatpush1.msra.mxu0 0.0
      %600 = vmatprep.subr.mxu0 0.0
      %601 = vmatpush1.msra.mxu0 0.0
      %602 = vmatprep.subr.mxu0 0.0
      %603 = vmatpush1.msra.mxu0 0.0
      %604 = vmatprep.subr.mxu0 0.0
      %605 = vmatpush1.msra.mxu0 0.0
      %606 = vmatprep.subr.mxu0 0.0
      %607 = vmatpush1.msra.mxu0 0.0
      %608 = vmatprep.subr.mxu0 0.0
      %609 = vmatpush1.msra.mxu0 0.0
      %610 = vmatprep.subr.mxu0 0.0
      %611 = vmatpush1.msra.mxu0 0.0
      %612 = vmatprep.subr.mxu0 0.0
      %613 = vmatpush1.msra.mxu0 0.0
      %614 = vmatprep.subr.mxu0 0.0
      %615 = vmatpush1.msra.mxu0 0.0
      %616 = vmatprep.mubr.f32.mxu0 0.0
      %617 = vmatmul.mubr.f32.gmra.mrb[0].mxu0 %v529
      %v618 = vpop.f32.mrb[0].mxu0
      %v619 = vadd.f32 0.0, %v618
      %v620 = vpop.f32.mrb[0].mxu0
      %621 = vmatprep.mubr.f32.mxu0 0.0
      %622 = vmatmul.mubr.f32.gmra.mrb[0].mxu0 %v532
      %v623 = vpop.f32.mrb[0].mxu0
      %v624 = vadd.f32 0.0, %v623
      %v625 = vpop.f32.mrb[0].mxu0
      %626 = vmatprep.mubr.f32.mxu0 0.0
      %627 = vmatmul.mubr.f32.gmra.mrb[0].mxu0 %v535
      %v628 = vpop.f32.mrb[0].mxu0
      %v629 = vadd.f32 0.0, %v628
      %v630 = vpop.f32.mrb[0].mxu0
      %631 = vmatprep.mubr.f32.mxu0 0.0
      %632 = vmatmul.mubr.f32.gmra.mrb[0].mxu0 %v538
      %v633 = vpop.f32.mrb[0].mxu0
      %v634 = vadd.f32 0.0, %v633
      %v635 = vpop.f32.mrb[0].mxu0
      %636 = vmatprep.mubr.f32.mxu0 0.0
      %637 = vmatmul.mubr.f32.gmra.mrb[0].mxu0 %v541
      %v638 = vpop.f32.mrb[0].mxu0
      %v639 = vadd.f32 0.0, %v638
      %v640 = vpop.f32.mrb[0].mxu0
      %641 = vmatprep.mubr.f32.mxu0 0.0
      %642 = vmatmul.mubr.f32.gmra.mrb[0].mxu0 %v544
      %v643 = vpop.f32.mrb[0].mxu0
      %v644 = vadd.f32 0.0, %v643
      %v645 = vpop.f32.mrb[0].mxu0
      %646 = vmatprep.mubr.f32.mxu0 0.0
      %647 = vmatmul.mubr.f32.gmra.mrb[0].mxu0 %v547
      %v648 = vpop.f32.mrb[0].mxu0
      %v649 = vadd.f32 0.0, %v648
      %v650 = vpop.f32.mrb[0].mxu0
      %651 = vmatprep.mubr.f32.mxu0 0.0
      %652 = vmatmul.mubr.f32.gmra.mrb[0].mxu0 %v550
      %v653 = vpop.f32.mrb[0].mxu0
      %v654 = vadd.f32 0.0, %v653
      %v655 = vpop.f32.mrb[0].mxu0
      %656 = vdwg.mxu0
      %657 = vmatprep.subr.mxu0 0.0
      %658 = vmatpush1.msra.mxu0 %v246
      %659 = vmatprep.subr.mxu0 0.0
      %660 = vmatpush1.msra.mxu0 %v248
      %661 = vmatprep.subr.mxu0 0.0
      %662 = vmatpush1.msra.mxu0 %v250
      %663 = vmatprep.subr.mxu0 0.0
      %664 = vmatpush1.msra.mxu0 %v252
      %665 = vmatprep.subr.mxu0 0.0
      %666 = vmatpush1.msra.mxu0 %v254
      %667 = vmatprep.subr.mxu0 0.0
      %668 = vmatpush1.msra.mxu0 %v256
      %669 = vmatprep.subr.mxu0 0.0
      %670 = vmatpush1.msra.mxu0 %v258
      %671 = vmatprep.subr.mxu0 0.0
      %672 = vmatpush1.msra.mxu0 %v260
      %673 = vmatprep.subr.mxu0 0.0
      %674 = vmatpush1.msra.mxu0 0.0
      %675 = vmatprep.subr.mxu0 0.0
      %676 = vmatpush1.msra.mxu0 0.0
      %677 = vmatprep.subr.mxu0 0.0
      %678 = vmatpush1.msra.mxu0 0.0
      %679 = vmatprep.subr.mxu0 0.0
      %680 = vmatpush1.msra.mxu0 0.0
      %681 = vmatprep.subr.mxu0 0.0
      %682 = vmatpush1.msra.mxu0 0.0
      %683 = vmatprep.subr.mxu0 0.0
      %684 = vmatpush1.msra.mxu0 0.0
      %685 = vmatprep.subr.mxu0 0.0
      %686 = vmatpush1.msra.mxu0 0.0
      %687 = vmatprep.subr.mxu0 0.0
      %688 = vmatpush1.msra.mxu0 0.0
      %689 = vmatprep.subr.mxu0 0.0
      %690 = vmatpush1.msra.mxu0 0.0
      %691 = vmatprep.subr.mxu0 0.0
      %692 = vmatpush1.msra.mxu0 0.0
      %693 = vmatprep.subr.mxu0 0.0
      %694 = vmatpush1.msra.mxu0 0.0
      %695 = vmatprep.subr.mxu0 0.0
      %696 = vmatpush1.msra.mxu0 0.0
      %697 = vmatprep.subr.mxu0 0.0
      %698 = vmatpush1.msra.mxu0 0.0
      %699 = vmatprep.subr.mxu0 0.0
      %700 = vmatpush1.msra.mxu0 0.0
      %701 = vmatprep.subr.mxu0 0.0
      %702 = vmatpush1.msra.mxu0 0.0
      %703 = vmatprep.subr.mxu0 0.0
      %704 = vmatpush1.msra.mxu0 0.0
      %705 = vmatprep.subr.mxu0 0.0
      %706 = vmatpush1.msra.mxu0 0.0
      %707 = vmatprep.subr.mxu0 0.0
      %708 = vmatpush1.msra.mxu0 0.0
      %709 = vmatprep.subr.mxu0 0.0
      %710 = vmatpush1.msra.mxu0 0.0
      %711 = vmatprep.subr.mxu0 0.0
      %712 = vmatpush1.msra.mxu0 0.0
      %713 = vmatprep.subr.mxu0 0.0
      %714 = vmatpush1.msra.mxu0 0.0
      %715 = vmatprep.subr.mxu0 0.0
      %716 = vmatpush1.msra.mxu0 0.0
      %717 = vmatprep.subr.mxu0 0.0
      %718 = vmatpush1.msra.mxu0 0.0
      %719 = vmatprep.subr.mxu0 0.0
      %720 = vmatpush1.msra.mxu0 0.0
      %721 = vmatprep.mubr.f32.mxu0 0.0
      %722 = vmatmul.mubr.f32.gmra.mrb[0].mxu0 %v400
      %v723 = vpop.f32.mrb[0].mxu0
      %v724 = vadd.f32 %v619, %v723
      %v725 = vpop.f32.mrb[0].mxu0
      %726 = vmatprep.mubr.f32.mxu0 0.0
      %727 = vmatmul.mubr.f32.gmra.mrb[0].mxu0 %v403
      %v728 = vpop.f32.mrb[0].mxu0
      %v729 = vadd.f32 %v624, %v728
      %v730 = vpop.f32.mrb[0].mxu0
      %731 = vmatprep.mubr.f32.mxu0 0.0
      %732 = vmatmul.mubr.f32.gmra.mrb[0].mxu0 %v406
      %v733 = vpop.f32.mrb[0].mxu0
      %v734 = vadd.f32 %v629, %v733
      %v735 = vpop.f32.mrb[0].mxu0
      %736 = vmatprep.mubr.f32.mxu0 0.0
      %737 = vmatmul.mubr.f32.gmra.mrb[0].mxu0 %v409
      %v738 = vpop.f32.mrb[0].mxu0
      %v739 = vadd.f32 %v634, %v738
      %v740 = vpop.f32.mrb[0].mxu0
      %741 = vmatprep.mubr.f32.mxu0 0.0
      %742 = vmatmul.mubr.f32.gmra.mrb[0].mxu0 %v412
      %v743 = vpop.f32.mrb[0].mxu0
      %v744 = vadd.f32 %v639, %v743
      %v745 = vpop.f32.mrb[0].mxu0
      %746 = vmatprep.mubr.f32.mxu0 0.0
      %747 = vmatmul.mubr.f32.gmra.mrb[0].mxu0 %v415
      %v748 = vpop.f32.mrb[0].mxu0
      %v749 = vadd.f32 %v644, %v748
      %v750 = vpop.f32.mrb[0].mxu0
      %751 = vmatprep.mubr.f32.mxu0 0.0
      %752 = vmatmul.mubr.f32.gmra.mrb[0].mxu0 %v418
      %v753 = vpop.f32.mrb[0].mxu0
      %v754 = vadd.f32 %v649, %v753
      %v755 = vpop.f32.mrb[0].mxu0
      %756 = vmatprep.mubr.f32.mxu0 0.0
      %757 = vmatmul.mubr.f32.gmra.mrb[0].mxu0 %v421
      %v758 = vpop.f32.mrb[0].mxu0
      %v759 = vadd.f32 %v654, %v758
      %v760 = vpop.f32.mrb[0].mxu0
      %761 = vdwg.mxu0
      %762 = vrot.lane.b32.xlu0 %v229, 96
      %v763 = vpop.permute.xlu0 %762
      %764 = vrot.lane.b32.xlu0 %v230, 96
      %v765 = vpop.permute.xlu0 %764
      %766 = vrot.lane.b32.xlu0 %v231, 96
      %v767 = vpop.permute.xlu0 %766
      %768 = vrot.lane.b32.xlu0 %v232, 96
      %v769 = vpop.permute.xlu0 %768
      %770 = vrot.lane.b32.xlu0 %v233, 96
      %v771 = vpop.permute.xlu0 %770
      %772 = vrot.lane.b32.xlu0 %v234, 96
      %v773 = vpop.permute.xlu0 %772
      %774 = vrot.lane.b32.xlu0 %v235, 96
      %v775 = vpop.permute.xlu0 %774
      %776 = vrot.lane.b32.xlu0 %v236, 96
      %v777 = vpop.permute.xlu0 %776
      %786 = vmatprep.subr.mxu0 0.0
      %787 = vmatpush1.msra.mxu0 %v763
      %788 = vmatprep.subr.mxu0 0.0
      %789 = vmatpush1.msra.mxu0 %v765
      %790 = vmatprep.subr.mxu0 0.0
      %791 = vmatpush1.msra.mxu0 %v767
      %792 = vmatprep.subr.mxu0 0.0
      %793 = vmatpush1.msra.mxu0 %v769
      %794 = vmatprep.subr.mxu0 0.0
      %795 = vmatpush1.msra.mxu0 %v771
      %796 = vmatprep.subr.mxu0 0.0
      %797 = vmatpush1.msra.mxu0 %v773
      %798 = vmatprep.subr.mxu0 0.0
      %799 = vmatpush1.msra.mxu0 %v775
      %800 = vmatprep.subr.mxu0 0.0
      %801 = vmatpush1.msra.mxu0 %v777
      %802 = vmatprep.subr.mxu0 0.0
      %803 = vmatpush1.msra.mxu0 0.0
      %804 = vmatprep.subr.mxu0 0.0
      %805 = vmatpush1.msra.mxu0 0.0
      %806 = vmatprep.subr.mxu0 0.0
      %807 = vmatpush1.msra.mxu0 0.0
      %808 = vmatprep.subr.mxu0 0.0
      %809 = vmatpush1.msra.mxu0 0.0
      %810 = vmatprep.subr.mxu0 0.0
      %811 = vmatpush1.msra.mxu0 0.0
      %812 = vmatprep.subr.mxu0 0.0
      %813 = vmatpush1.msra.mxu0 0.0
      %814 = vmatprep.subr.mxu0 0.0
      %815 = vmatpush1.msra.mxu0 0.0
      %816 = vmatprep.subr.mxu0 0.0
      %817 = vmatpush1.msra.mxu0 0.0
      %818 = vmatprep.subr.mxu0 0.0
      %819 = vmatpush1.msra.mxu0 0.0
      %820 = vmatprep.subr.mxu0 0.0
      %821 = vmatpush1.msra.mxu0 0.0
      %822 = vmatprep.subr.mxu0 0.0
      %823 = vmatpush1.msra.mxu0 0.0
      %824 = vmatprep.subr.mxu0 0.0
      %825 = vmatpush1.msra.mxu0 0.0
      %826 = vmatprep.subr.mxu0 0.0
      %827 = vmatpush1.msra.mxu0 0.0
      %828 = vmatprep.subr.mxu0 0.0
      %829 = vmatpush1.msra.mxu0 0.0
      %830 = vmatprep.subr.mxu0 0.0
      %831 = vmatpush1.msra.mxu0 0.0
      %832 = vmatprep.subr.mxu0 0.0
      %833 = vmatpush1.msra.mxu0 0.0
      %834 = vmatprep.subr.mxu0 0.0
      %835 = vmatpush1.msra.mxu0 0.0
      %836 = vmatprep.subr.mxu0 0.0
      %837 = vmatpush1.msra.mxu0 0.0
      %838 = vmatprep.subr.mxu0 0.0
      %839 = vmatpush1.msra.mxu0 0.0
      %840 = vmatprep.subr.mxu0 0.0
      %841 = vmatpush1.msra.mxu0 0.0
      %842 = vmatprep.subr.mxu0 0.0
      %843 = vmatpush1.msra.mxu0 0.0
      %844 = vmatprep.subr.mxu0 0.0
      %845 = vmatpush1.msra.mxu0 0.0
      %846 = vmatprep.subr.mxu0 0.0
      %847 = vmatpush1.msra.mxu0 0.0
      %848 = vmatprep.subr.mxu0 0.0
      %849 = vmatpush1.msra.mxu0 0.0
      %850 = vmatprep.mubr.f32.mxu0 0.0
      %851 = vmatmul.mubr.f32.gmra.mrb[0].mxu0 %v271
      %v852 = vpop.f32.mrb[0].mxu0
      %v853 = vadd.f32 0.0, %v852
      %v854 = vpop.f32.mrb[0].mxu0
      %855 = vmatprep.mubr.f32.mxu0 0.0
      %856 = vmatmul.mubr.f32.gmra.mrb[0].mxu0 %v274
      %v857 = vpop.f32.mrb[0].mxu0
      %v858 = vadd.f32 0.0, %v857
      %v859 = vpop.f32.mrb[0].mxu0
      %860 = vmatprep.mubr.f32.mxu0 0.0
      %861 = vmatmul.mubr.f32.gmra.mrb[0].mxu0 %v277
      %v862 = vpop.f32.mrb[0].mxu0
      %v863 = vadd.f32 0.0, %v862
      %v864 = vpop.f32.mrb[0].mxu0
      %865 = vmatprep.mubr.f32.mxu0 0.0
      %866 = vmatmul.mubr.f32.gmra.mrb[0].mxu0 %v280
      %v867 = vpop.f32.mrb[0].mxu0
      %v868 = vadd.f32 0.0, %v867
      %v869 = vpop.f32.mrb[0].mxu0
      %870 = vmatprep.mubr.f32.mxu0 0.0
      %871 = vmatmul.mubr.f32.gmra.mrb[0].mxu0 %v283
      %v872 = vpop.f32.mrb[0].mxu0
      %v873 = vadd.f32 0.0, %v872
      %v874 = vpop.f32.mrb[0].mxu0
      %875 = vmatprep.mubr.f32.mxu0 0.0
      %876 = vmatmul.mubr.f32.gmra.mrb[0].mxu0 %v286
      %v877 = vpop.f32.mrb[0].mxu0
      %v878 = vadd.f32 0.0, %v877
      %v879 = vpop.f32.mrb[0].mxu0
      %880 = vmatprep.mubr.f32.mxu0 0.0
      %881 = vmatmul.mubr.f32.gmra.mrb[0].mxu0 %v289
      %v882 = vpop.f32.mrb[0].mxu0
      %v883 = vadd.f32 0.0, %v882
      %v884 = vpop.f32.mrb[0].mxu0
      %885 = vmatprep.mubr.f32.mxu0 0.0
      %886 = vmatmul.mubr.f32.gmra.mrb[0].mxu0 %v292
      %v887 = vpop.f32.mrb[0].mxu0
      %v888 = vadd.f32 0.0, %v887
      %v889 = vpop.f32.mrb[0].mxu0
      %890 = vdwg.mxu0
      %v891 = vadd.f32 %v724, %v853
      %v892 = vadd.f32 %v729, %v858
      %v893 = vadd.f32 %v734, %v863
      %v894 = vadd.f32 %v739, %v868
      %v895 = vadd.f32 %v744, %v873
      %v896 = vadd.f32 %v749, %v878
      %v897 = vadd.f32 %v754, %v883
      %v898 = vadd.f32 %v759, %v888
      %v899 = vmax.f32 %v490, %v891
      %v900 = vmax.f32 %v495, %v892
      %v901 = vmax.f32 %v500, %v893
      %v902 = vmax.f32 %v505, %v894
      %v903 = vmax.f32 %v510, %v895
      %v904 = vmax.f32 %v515, %v896
      %v905 = vmax.f32 %v520, %v897
      %v906 = vmax.f32 %v525, %v898
      %907 = vmatprep.subr.mxu0 0.0
      %908 = vmatpush1.msra.mxu0 %v246
      %909 = vmatprep.subr.mxu0 0.0
      %910 = vmatpush1.msra.mxu0 %v248
      %911 = vmatprep.subr.mxu0 0.0
      %912 = vmatpush1.msra.mxu0 %v250
      %913 = vmatprep.subr.mxu0 0.0
      %914 = vmatpush1.msra.mxu0 %v252
      %915 = vmatprep.subr.mxu0 0.0
      %916 = vmatpush1.msra.mxu0 %v254
      %917 = vmatprep.subr.mxu0 0.0
      %918 = vmatpush1.msra.mxu0 %v256
      %919 = vmatprep.subr.mxu0 0.0
      %920 = vmatpush1.msra.mxu0 %v258
      %921 = vmatprep.subr.mxu0 0.0
      %922 = vmatpush1.msra.mxu0 %v260
      %923 = vmatprep.subr.mxu0 0.0
      %924 = vmatpush1.msra.mxu0 0.0
      %925 = vmatprep.subr.mxu0 0.0
      %926 = vmatpush1.msra.mxu0 0.0
      %927 = vmatprep.subr.mxu0 0.0
      %928 = vmatpush1.msra.mxu0 0.0
      %929 = vmatprep.subr.mxu0 0.0
      %930 = vmatpush1.msra.mxu0 0.0
      %931 = vmatprep.subr.mxu0 0.0
      %932 = vmatpush1.msra.mxu0 0.0
      %933 = vmatprep.subr.mxu0 0.0
      %934 = vmatpush1.msra.mxu0 0.0
      %935 = vmatprep.subr.mxu0 0.0
      %936 = vmatpush1.msra.mxu0 0.0
      %937 = vmatprep.subr.mxu0 0.0
      %938 = vmatpush1.msra.mxu0 0.0
      %939 = vmatprep.subr.mxu0 0.0
      %940 = vmatpush1.msra.mxu0 0.0
      %941 = vmatprep.subr.mxu0 0.0
      %942 = vmatpush1.msra.mxu0 0.0
      %943 = vmatprep.subr.mxu0 0.0
      %944 = vmatpush1.msra.mxu0 0.0
      %945 = vmatprep.subr.mxu0 0.0
      %946 = vmatpush1.msra.mxu0 0.0
      %947 = vmatprep.subr.mxu0 0.0
      %948 = vmatpush1.msra.mxu0 0.0
      %949 = vmatprep.subr.mxu0 0.0
      %950 = vmatpush1.msra.mxu0 0.0
      %951 = vmatprep.subr.mxu0 0.0
      %952 = vmatpush1.msra.mxu0 0.0
      %953 = vmatprep.subr.mxu0 0.0
      %954 = vmatpush1.msra.mxu0 0.0
      %955 = vmatprep.subr.mxu0 0.0
      %956 = vmatpush1.msra.mxu0 0.0
      %957 = vmatprep.subr.mxu0 0.0
      %958 = vmatpush1.msra.mxu0 0.0
      %959 = vmatprep.subr.mxu0 0.0
      %960 = vmatpush1.msra.mxu0 0.0
      %961 = vmatprep.subr.mxu0 0.0
      %962 = vmatpush1.msra.mxu0 0.0
      %963 = vmatprep.subr.mxu0 0.0
      %964 = vmatpush1.msra.mxu0 0.0
      %965 = vmatprep.subr.mxu0 0.0
      %966 = vmatpush1.msra.mxu0 0.0
      %967 = vmatprep.subr.mxu0 0.0
      %968 = vmatpush1.msra.mxu0 0.0
      %969 = vmatprep.subr.mxu0 0.0
      %970 = vmatpush1.msra.mxu0 0.0
      %971 = vmatprep.mubr.f32.mxu0 0.0
      %972 = vmatmul.mubr.f32.gmra.mrb[0].mxu0 %v529
      %v973 = vpop.f32.mrb[0].mxu0
      %v974 = vadd.f32 0.0, %v973
      %v975 = vpop.f32.mrb[0].mxu0
      %976 = vmatprep.mubr.f32.mxu0 0.0
      %977 = vmatmul.mubr.f32.gmra.mrb[0].mxu0 %v532
      %v978 = vpop.f32.mrb[0].mxu0
      %v979 = vadd.f32 0.0, %v978
      %v980 = vpop.f32.mrb[0].mxu0
      %981 = vmatprep.mubr.f32.mxu0 0.0
      %982 = vmatmul.mubr.f32.gmra.mrb[0].mxu0 %v535
      %v983 = vpop.f32.mrb[0].mxu0
      %v984 = vadd.f32 0.0, %v983
      %v985 = vpop.f32.mrb[0].mxu0
      %986 = vmatprep.mubr.f32.mxu0 0.0
      %987 = vmatmul.mubr.f32.gmra.mrb[0].mxu0 %v538
      %v988 = vpop.f32.mrb[0].mxu0
      %v989 = vadd.f32 0.0, %v988
      %v990 = vpop.f32.mrb[0].mxu0
      %991 = vmatprep.mubr.f32.mxu0 0.0
      %992 = vmatmul.mubr.f32.gmra.mrb[0].mxu0 %v541
      %v993 = vpop.f32.mrb[0].mxu0
      %v994 = vadd.f32 0.0, %v993
      %v995 = vpop.f32.mrb[0].mxu0
      %996 = vmatprep.mubr.f32.mxu0 0.0
      %997 = vmatmul.mubr.f32.gmra.mrb[0].mxu0 %v544
      %v998 = vpop.f32.mrb[0].mxu0
      %v999 = vadd.f32 0.0, %v998
      %v1000 = vpop.f32.mrb[0].mxu0
      %1001 = vmatprep.mubr.f32.mxu0 0.0
      %1002 = vmatmul.mubr.f32.gmra.mrb[0].mxu0 %v547
      %v1003 = vpop.f32.mrb[0].mxu0
      %v1004 = vadd.f32 0.0, %v1003
      %v1005 = vpop.f32.mrb[0].mxu0
      %1006 = vmatprep.mubr.f32.mxu0 0.0
      %1007 = vmatmul.mubr.f32.gmra.mrb[0].mxu0 %v550
      %v1008 = vpop.f32.mrb[0].mxu0
      %v1009 = vadd.f32 0.0, %v1008
      %v1010 = vpop.f32.mrb[0].mxu0
      %1011 = vdwg.mxu0
      %1012 = vmatprep.subr.mxu0 0.0
      %1013 = vmatpush1.msra.mxu0 %v763
      %1014 = vmatprep.subr.mxu0 0.0
      %1015 = vmatpush1.msra.mxu0 %v765
      %1016 = vmatprep.subr.mxu0 0.0
      %1017 = vmatpush1.msra.mxu0 %v767
      %1018 = vmatprep.subr.mxu0 0.0
      %1019 = vmatpush1.msra.mxu0 %v769
      %1020 = vmatprep.subr.mxu0 0.0
      %1021 = vmatpush1.msra.mxu0 %v771
      %1022 = vmatprep.subr.mxu0 0.0
      %1023 = vmatpush1.msra.mxu0 %v773
      %1024 = vmatprep.subr.mxu0 0.0
      %1025 = vmatpush1.msra.mxu0 %v775
      %1026 = vmatprep.subr.mxu0 0.0
      %1027 = vmatpush1.msra.mxu0 %v777
      %1028 = vmatprep.subr.mxu0 0.0
      %1029 = vmatpush1.msra.mxu0 0.0
      %1030 = vmatprep.subr.mxu0 0.0
      %1031 = vmatpush1.msra.mxu0 0.0
      %1032 = vmatprep.subr.mxu0 0.0
      %1033 = vmatpush1.msra.mxu0 0.0
      %1034 = vmatprep.subr.mxu0 0.0
      %1035 = vmatpush1.msra.mxu0 0.0
      %1036 = vmatprep.subr.mxu0 0.0
      %1037 = vmatpush1.msra.mxu0 0.0
      %1038 = vmatprep.subr.mxu0 0.0
      %1039 = vmatpush1.msra.mxu0 0.0
      %1040 = vmatprep.subr.mxu0 0.0
      %1041 = vmatpush1.msra.mxu0 0.0
      %1042 = vmatprep.subr.mxu0 0.0
      %1043 = vmatpush1.msra.mxu0 0.0
      %1044 = vmatprep.subr.mxu0 0.0
      %1045 = vmatpush1.msra.mxu0 0.0
      %1046 = vmatprep.subr.mxu0 0.0
      %1047 = vmatpush1.msra.mxu0 0.0
      %1048 = vmatprep.subr.mxu0 0.0
      %1049 = vmatpush1.msra.mxu0 0.0
      %1050 = vmatprep.subr.mxu0 0.0
      %1051 = vmatpush1.msra.mxu0 0.0
      %1052 = vmatprep.subr.mxu0 0.0
      %1053 = vmatpush1.msra.mxu0 0.0
      %1054 = vmatprep.subr.mxu0 0.0
      %1055 = vmatpush1.msra.mxu0 0.0
      %1056 = vmatprep.subr.mxu0 0.0
      %1057 = vmatpush1.msra.mxu0 0.0
      %1058 = vmatprep.subr.mxu0 0.0
      %1059 = vmatpush1.msra.mxu0 0.0
      %1060 = vmatprep.subr.mxu0 0.0
      %1061 = vmatpush1.msra.mxu0 0.0
      %1062 = vmatprep.subr.mxu0 0.0
      %1063 = vmatpush1.msra.mxu0 0.0
      %1064 = vmatprep.subr.mxu0 0.0
      %1065 = vmatpush1.msra.mxu0 0.0
      %1066 = vmatprep.subr.mxu0 0.0
      %1067 = vmatpush1.msra.mxu0 0.0
      %1068 = vmatprep.subr.mxu0 0.0
      %1069 = vmatpush1.msra.mxu0 0.0
      %1070 = vmatprep.subr.mxu0 0.0
      %1071 = vmatpush1.msra.mxu0 0.0
      %1072 = vmatprep.subr.mxu0 0.0
      %1073 = vmatpush1.msra.mxu0 0.0
      %1074 = vmatprep.subr.mxu0 0.0
      %1075 = vmatpush1.msra.mxu0 0.0
      %1076 = vmatprep.mubr.f32.mxu0 0.0
      %1077 = vmatmul.mubr.f32.gmra.mrb[0].mxu0 %v400
      %v1078 = vpop.f32.mrb[0].mxu0
      %v1079 = vadd.f32 %v974, %v1078
      %v1080 = vpop.f32.mrb[0].mxu0
      %1081 = vmatprep.mubr.f32.mxu0 0.0
      %1082 = vmatmul.mubr.f32.gmra.mrb[0].mxu0 %v403
      %v1083 = vpop.f32.mrb[0].mxu0
      %v1084 = vadd.f32 %v979, %v1083
      %v1085 = vpop.f32.mrb[0].mxu0
      %1086 = vmatprep.mubr.f32.mxu0 0.0
      %1087 = vmatmul.mubr.f32.gmra.mrb[0].mxu0 %v406
      %v1088 = vpop.f32.mrb[0].mxu0
      %v1089 = vadd.f32 %v984, %v1088
      %v1090 = vpop.f32.mrb[0].mxu0
      %1091 = vmatprep.mubr.f32.mxu0 0.0
      %1092 = vmatmul.mubr.f32.gmra.mrb[0].mxu0 %v409
      %v1093 = vpop.f32.mrb[0].mxu0
      %v1094 = vadd.f32 %v989, %v1093
      %v1095 = vpop.f32.mrb[0].mxu0
      %1096 = vmatprep.mubr.f32.mxu0 0.0
      %1097 = vmatmul.mubr.f32.gmra.mrb[0].mxu0 %v412
      %v1098 = vpop.f32.mrb[0].mxu0
      %v1099 = vadd.f32 %v994, %v1098
      %v1100 = vpop.f32.mrb[0].mxu0
      %1101 = vmatprep.mubr.f32.mxu0 0.0
      %1102 = vmatmul.mubr.f32.gmra.mrb[0].mxu0 %v415
      %v1103 = vpop.f32.mrb[0].mxu0
      %v1104 = vadd.f32 %v999, %v1103
      %v1105 = vpop.f32.mrb[0].mxu0
      %1106 = vmatprep.mubr.f32.mxu0 0.0
      %1107 = vmatmul.mubr.f32.gmra.mrb[0].mxu0 %v418
      %v1108 = vpop.f32.mrb[0].mxu0
      %v1109 = vadd.f32 %v1004, %v1108
      %v1110 = vpop.f32.mrb[0].mxu0
      %1111 = vmatprep.mubr.f32.mxu0 0.0
      %1112 = vmatmul.mubr.f32.gmra.mrb[0].mxu0 %v421
      %v1113 = vpop.f32.mrb[0].mxu0
      %v1114 = vadd.f32 %v1009, %v1113
      %v1115 = vpop.f32.mrb[0].mxu0
      %1116 = vdwg.mxu0
      %1117 = vrot.lane.b32.xlu0 %v229, 80
      %v1118 = vpop.permute.xlu0 %1117
      %1119 = vrot.lane.b32.xlu0 %v230, 80
      %v1120 = vpop.permute.xlu0 %1119
      %1121 = vrot.lane.b32.xlu0 %v231, 80
      %v1122 = vpop.permute.xlu0 %1121
      %1123 = vrot.lane.b32.xlu0 %v232, 80
      %v1124 = vpop.permute.xlu0 %1123
      %1125 = vrot.lane.b32.xlu0 %v233, 80
      %v1126 = vpop.permute.xlu0 %1125
      %1127 = vrot.lane.b32.xlu0 %v234, 80
      %v1128 = vpop.permute.xlu0 %1127
      %1129 = vrot.lane.b32.xlu0 %v235, 80
      %v1130 = vpop.permute.xlu0 %1129
      %1131 = vrot.lane.b32.xlu0 %v236, 80
      %v1132 = vpop.permute.xlu0 %1131
      %1141 = vmatprep.subr.mxu0 0.0
      %1142 = vmatpush1.msra.mxu0 %v1118
      %1143 = vmatprep.subr.mxu0 0.0
      %1144 = vmatpush1.msra.mxu0 %v1120
      %1145 = vmatprep.subr.mxu0 0.0
      %1146 = vmatpush1.msra.mxu0 %v1122
      %1147 = vmatprep.subr.mxu0 0.0
      %1148 = vmatpush1.msra.mxu0 %v1124
      %1149 = vmatprep.subr.mxu0 0.0
      %1150 = vmatpush1.msra.mxu0 %v1126
      %1151 = vmatprep.subr.mxu0 0.0
      %1152 = vmatpush1.msra.mxu0 %v1128
      %1153 = vmatprep.subr.mxu0 0.0
      %1154 = vmatpush1.msra.mxu0 %v1130
      %1155 = vmatprep.subr.mxu0 0.0
      %1156 = vmatpush1.msra.mxu0 %v1132
      %1157 = vmatprep.subr.mxu0 0.0
      %1158 = vmatpush1.msra.mxu0 0.0
      %1159 = vmatprep.subr.mxu0 0.0
      %1160 = vmatpush1.msra.mxu0 0.0
      %1161 = vmatprep.subr.mxu0 0.0
      %1162 = vmatpush1.msra.mxu0 0.0
      %1163 = vmatprep.subr.mxu0 0.0
      %1164 = vmatpush1.msra.mxu0 0.0
      %1165 = vmatprep.subr.mxu0 0.0
      %1166 = vmatpush1.msra.mxu0 0.0
      %1167 = vmatprep.subr.mxu0 0.0
      %1168 = vmatpush1.msra.mxu0 0.0
      %1169 = vmatprep.subr.mxu0 0.0
      %1170 = vmatpush1.msra.mxu0 0.0
      %1171 = vmatprep.subr.mxu0 0.0
      %1172 = vmatpush1.msra.mxu0 0.0
      %1173 = vmatprep.subr.mxu0 0.0
      %1174 = vmatpush1.msra.mxu0 0.0
      %1175 = vmatprep.subr.mxu0 0.0
      %1176 = vmatpush1.msra.mxu0 0.0
      %1177 = vmatprep.subr.mxu0 0.0
      %1178 = vmatpush1.msra.mxu0 0.0
      %1179 = vmatprep.subr.mxu0 0.0
      %1180 = vmatpush1.msra.mxu0 0.0
      %1181 = vmatprep.subr.mxu0 0.0
      %1182 = vmatpush1.msra.mxu0 0.0
      %1183 = vmatprep.subr.mxu0 0.0
      %1184 = vmatpush1.msra.mxu0 0.0
      %1185 = vmatprep.subr.mxu0 0.0
      %1186 = vmatpush1.msra.mxu0 0.0
      %1187 = vmatprep.subr.mxu0 0.0
      %1188 = vmatpush1.msra.mxu0 0.0
      %1189 = vmatprep.subr.mxu0 0.0
      %1190 = vmatpush1.msra.mxu0 0.0
      %1191 = vmatprep.subr.mxu0 0.0
      %1192 = vmatpush1.msra.mxu0 0.0
      %1193 = vmatprep.subr.mxu0 0.0
      %1194 = vmatpush1.msra.mxu0 0.0
      %1195 = vmatprep.subr.mxu0 0.0
      %1196 = vmatpush1.msra.mxu0 0.0
      %1197 = vmatprep.subr.mxu0 0.0
      %1198 = vmatpush1.msra.mxu0 0.0
      %1199 = vmatprep.subr.mxu0 0.0
      %1200 = vmatpush1.msra.mxu0 0.0
      %1201 = vmatprep.subr.mxu0 0.0
      %1202 = vmatpush1.msra.mxu0 0.0
      %1203 = vmatprep.subr.mxu0 0.0
      %1204 = vmatpush1.msra.mxu0 0.0
      %1205 = vmatprep.mubr.f32.mxu0 0.0
      %1206 = vmatmul.mubr.f32.gmra.mrb[0].mxu0 %v271
      %v1207 = vpop.f32.mrb[0].mxu0
      %v1208 = vadd.f32 0.0, %v1207
      %v1209 = vpop.f32.mrb[0].mxu0
      %1210 = vmatprep.mubr.f32.mxu0 0.0
      %1211 = vmatmul.mubr.f32.gmra.mrb[0].mxu0 %v274
      %v1212 = vpop.f32.mrb[0].mxu0
      %v1213 = vadd.f32 0.0, %v1212
      %v1214 = vpop.f32.mrb[0].mxu0
      %1215 = vmatprep.mubr.f32.mxu0 0.0
      %1216 = vmatmul.mubr.f32.gmra.mrb[0].mxu0 %v277
      %v1217 = vpop.f32.mrb[0].mxu0
      %v1218 = vadd.f32 0.0, %v1217
      %v1219 = vpop.f32.mrb[0].mxu0
      %1220 = vmatprep.mubr.f32.mxu0 0.0
      %1221 = vmatmul.mubr.f32.gmra.mrb[0].mxu0 %v280
      %v1222 = vpop.f32.mrb[0].mxu0
      %v1223 = vadd.f32 0.0, %v1222
      %v1224 = vpop.f32.mrb[0].mxu0
      %1225 = vmatprep.mubr.f32.mxu0 0.0
      %1226 = vmatmul.mubr.f32.gmra.mrb[0].mxu0 %v283
      %v1227 = vpop.f32.mrb[0].mxu0
      %v1228 = vadd.f32 0.0, %v1227
      %v1229 = vpop.f32.mrb[0].mxu0
      %1230 = vmatprep.mubr.f32.mxu0 0.0
      %1231 = vmatmul.mubr.f32.gmra.mrb[0].mxu0 %v286
      %v1232 = vpop.f32.mrb[0].mxu0
      %v1233 = vadd.f32 0.0, %v1232
      %v1234 = vpop.f32.mrb[0].mxu0
      %1235 = vmatprep.mubr.f32.mxu0 0.0
      %1236 = vmatmul.mubr.f32.gmra.mrb[0].mxu0 %v289
      %v1237 = vpop.f32.mrb[0].mxu0
      %v1238 = vadd.f32 0.0, %v1237
      %v1239 = vpop.f32.mrb[0].mxu0
      %1240 = vmatprep.mubr.f32.mxu0 0.0
      %1241 = vmatmul.mubr.f32.gmra.mrb[0].mxu0 %v292
      %v1242 = vpop.f32.mrb[0].mxu0
      %v1243 = vadd.f32 0.0, %v1242
      %v1244 = vpop.f32.mrb[0].mxu0
      %1245 = vdwg.mxu0
      %v1246 = vadd.f32 %v1079, %v1208
      %v1247 = vadd.f32 %v1084, %v1213
      %v1248 = vadd.f32 %v1089, %v1218
      %v1249 = vadd.f32 %v1094, %v1223
      %v1250 = vadd.f32 %v1099, %v1228
      %v1251 = vadd.f32 %v1104, %v1233
      %v1252 = vadd.f32 %v1109, %v1238
      %v1253 = vadd.f32 %v1114, %v1243
      %v1254 = vmax.f32 %v899, %v1246
      %v1255 = vmax.f32 %v900, %v1247
      %v1256 = vmax.f32 %v901, %v1248
      %v1257 = vmax.f32 %v902, %v1249
      %v1258 = vmax.f32 %v903, %v1250
      %v1259 = vmax.f32 %v904, %v1251
      %v1260 = vmax.f32 %v905, %v1252
      %v1261 = vmax.f32 %v906, %v1253
      %1262 = vmatprep.subr.mxu0 0.0
      %1263 = vmatpush1.msra.mxu0 %v763
      %1264 = vmatprep.subr.mxu0 0.0
      %1265 = vmatpush1.msra.mxu0 %v765
      %1266 = vmatprep.subr.mxu0 0.0
      %1267 = vmatpush1.msra.mxu0 %v767
      %1268 = vmatprep.subr.mxu0 0.0
      %1269 = vmatpush1.msra.mxu0 %v769
      %1270 = vmatprep.subr.mxu0 0.0
      %1271 = vmatpush1.msra.mxu0 %v771
      %1272 = vmatprep.subr.mxu0 0.0
      %1273 = vmatpush1.msra.mxu0 %v773
      %1274 = vmatprep.subr.mxu0 0.0
      %1275 = vmatpush1.msra.mxu0 %v775
      %1276 = vmatprep.subr.mxu0 0.0
      %1277 = vmatpush1.msra.mxu0 %v777
      %1278 = vmatprep.subr.mxu0 0.0
      %1279 = vmatpush1.msra.mxu0 0.0
      %1280 = vmatprep.subr.mxu0 0.0
      %1281 = vmatpush1.msra.mxu0 0.0
      %1282 = vmatprep.subr.mxu0 0.0
      %1283 = vmatpush1.msra.mxu0 0.0
      %1284 = vmatprep.subr.mxu0 0.0
      %1285 = vmatpush1.msra.mxu0 0.0
      %1286 = vmatprep.subr.mxu0 0.0
      %1287 = vmatpush1.msra.mxu0 0.0
      %1288 = vmatprep.subr.mxu0 0.0
      %1289 = vmatpush1.msra.mxu0 0.0
      %1290 = vmatprep.subr.mxu0 0.0
      %1291 = vmatpush1.msra.mxu0 0.0
      %1292 = vmatprep.subr.mxu0 0.0
      %1293 = vmatpush1.msra.mxu0 0.0
      %1294 = vmatprep.subr.mxu0 0.0
      %1295 = vmatpush1.msra.mxu0 0.0
      %1296 = vmatprep.subr.mxu0 0.0
      %1297 = vmatpush1.msra.mxu0 0.0
      %1298 = vmatprep.subr.mxu0 0.0
      %1299 = vmatpush1.msra.mxu0 0.0
      %1300 = vmatprep.subr.mxu0 0.0
      %1301 = vmatpush1.msra.mxu0 0.0
      %1302 = vmatprep.subr.mxu0 0.0
      %1303 = vmatpush1.msra.mxu0 0.0
      %1304 = vmatprep.subr.mxu0 0.0
      %1305 = vmatpush1.msra.mxu0 0.0
      %1306 = vmatprep.subr.mxu0 0.0
      %1307 = vmatpush1.msra.mxu0 0.0
      %1308 = vmatprep.subr.mxu0 0.0
      %1309 = vmatpush1.msra.mxu0 0.0
      %1310 = vmatprep.subr.mxu0 0.0
      %1311 = vmatpush1.msra.mxu0 0.0
      %1312 = vmatprep.subr.mxu0 0.0
      %1313 = vmatpush1.msra.mxu0 0.0
      %1314 = vmatprep.subr.mxu0 0.0
      %1315 = vmatpush1.msra.mxu0 0.0
      %1316 = vmatprep.subr.mxu0 0.0
      %1317 = vmatpush1.msra.mxu0 0.0
      %1318 = vmatprep.subr.mxu0 0.0
      %1319 = vmatpush1.msra.mxu0 0.0
      %1320 = vmatprep.subr.mxu0 0.0
      %1321 = vmatpush1.msra.mxu0 0.0
      %1322 = vmatprep.subr.mxu0 0.0
      %1323 = vmatpush1.msra.mxu0 0.0
      %1324 = vmatprep.subr.mxu0 0.0
      %1325 = vmatpush1.msra.mxu0 0.0
      %1326 = vmatprep.mubr.f32.mxu0 0.0
      %1327 = vmatmul.mubr.f32.gmra.mrb[0].mxu0 %v529
      %v1328 = vpop.f32.mrb[0].mxu0
      %v1329 = vadd.f32 0.0, %v1328
      %v1330 = vpop.f32.mrb[0].mxu0
      %1331 = vmatprep.mubr.f32.mxu0 0.0
      %1332 = vmatmul.mubr.f32.gmra.mrb[0].mxu0 %v532
      %v1333 = vpop.f32.mrb[0].mxu0
      %v1334 = vadd.f32 0.0, %v1333
      %v1335 = vpop.f32.mrb[0].mxu0
      %1336 = vmatprep.mubr.f32.mxu0 0.0
      %1337 = vmatmul.mubr.f32.gmra.mrb[0].mxu0 %v535
      %v1338 = vpop.f32.mrb[0].mxu0
      %v1339 = vadd.f32 0.0, %v1338
      %v1340 = vpop.f32.mrb[0].mxu0
      %1341 = vmatprep.mubr.f32.mxu0 0.0
      %1342 = vmatmul.mubr.f32.gmra.mrb[0].mxu0 %v538
      %v1343 = vpop.f32.mrb[0].mxu0
      %v1344 = vadd.f32 0.0, %v1343
      %v1345 = vpop.f32.mrb[0].mxu0
      %1346 = vmatprep.mubr.f32.mxu0 0.0
      %1347 = vmatmul.mubr.f32.gmra.mrb[0].mxu0 %v541
      %v1348 = vpop.f32.mrb[0].mxu0
      %v1349 = vadd.f32 0.0, %v1348
      %v1350 = vpop.f32.mrb[0].mxu0
      %1351 = vmatprep.mubr.f32.mxu0 0.0
      %1352 = vmatmul.mubr.f32.gmra.mrb[0].mxu0 %v544
      %v1353 = vpop.f32.mrb[0].mxu0
      %v1354 = vadd.f32 0.0, %v1353
      %v1355 = vpop.f32.mrb[0].mxu0
      %1356 = vmatprep.mubr.f32.mxu0 0.0
      %1357 = vmatmul.mubr.f32.gmra.mrb[0].mxu0 %v547
      %v1358 = vpop.f32.mrb[0].mxu0
      %v1359 = vadd.f32 0.0, %v1358
      %v1360 = vpop.f32.mrb[0].mxu0
      %1361 = vmatprep.mubr.f32.mxu0 0.0
      %1362 = vmatmul.mubr.f32.gmra.mrb[0].mxu0 %v550
      %v1363 = vpop.f32.mrb[0].mxu0
      %v1364 = vadd.f32 0.0, %v1363
      %v1365 = vpop.f32.mrb[0].mxu0
      %1366 = vdwg.mxu0
      %1367 = vmatprep.subr.mxu0 0.0
      %1368 = vmatpush1.msra.mxu0 %v1118
      %1369 = vmatprep.subr.mxu0 0.0
      %1370 = vmatpush1.msra.mxu0 %v1120
      %1371 = vmatprep.subr.mxu0 0.0
      %1372 = vmatpush1.msra.mxu0 %v1122
      %1373 = vmatprep.subr.mxu0 0.0
      %1374 = vmatpush1.msra.mxu0 %v1124
      %1375 = vmatprep.subr.mxu0 0.0
      %1376 = vmatpush1.msra.mxu0 %v1126
      %1377 = vmatprep.subr.mxu0 0.0
      %1378 = vmatpush1.msra.mxu0 %v1128
      %1379 = vmatprep.subr.mxu0 0.0
      %1380 = vmatpush1.msra.mxu0 %v1130
      %1381 = vmatprep.subr.mxu0 0.0
      %1382 = vmatpush1.msra.mxu0 %v1132
      %1383 = vmatprep.subr.mxu0 0.0
      %1384 = vmatpush1.msra.mxu0 0.0
      %1385 = vmatprep.subr.mxu0 0.0
      %1386 = vmatpush1.msra.mxu0 0.0
      %1387 = vmatprep.subr.mxu0 0.0
      %1388 = vmatpush1.msra.mxu0 0.0
      %1389 = vmatprep.subr.mxu0 0.0
      %1390 = vmatpush1.msra.mxu0 0.0
      %1391 = vmatprep.subr.mxu0 0.0
      %1392 = vmatpush1.msra.mxu0 0.0
      %1393 = vmatprep.subr.mxu0 0.0
      %1394 = vmatpush1.msra.mxu0 0.0
      %1395 = vmatprep.subr.mxu0 0.0
      %1396 = vmatpush1.msra.mxu0 0.0
      %1397 = vmatprep.subr.mxu0 0.0
      %1398 = vmatpush1.msra.mxu0 0.0
      %1399 = vmatprep.subr.mxu0 0.0
      %1400 = vmatpush1.msra.mxu0 0.0
      %1401 = vmatprep.subr.mxu0 0.0
      %1402 = vmatpush1.msra.mxu0 0.0
      %1403 = vmatprep.subr.mxu0 0.0
      %1404 = vmatpush1.msra.mxu0 0.0
      %1405 = vmatprep.subr.mxu0 0.0
      %1406 = vmatpush1.msra.mxu0 0.0
      %1407 = vmatprep.subr.mxu0 0.0
      %1408 = vmatpush1.msra.mxu0 0.0
      %1409 = vmatprep.subr.mxu0 0.0
      %1410 = vmatpush1.msra.mxu0 0.0
      %1411 = vmatprep.subr.mxu0 0.0
      %1412 = vmatpush1.msra.mxu0 0.0
      %1413 = vmatprep.subr.mxu0 0.0
      %1414 = vmatpush1.msra.mxu0 0.0
      %1415 = vmatprep.subr.mxu0 0.0
      %1416 = vmatpush1.msra.mxu0 0.0
      %1417 = vmatprep.subr.mxu0 0.0
      %1418 = vmatpush1.msra.mxu0 0.0
      %1419 = vmatprep.subr.mxu0 0.0
      %1420 = vmatpush1.msra.mxu0 0.0
      %1421 = vmatprep.subr.mxu0 0.0
      %1422 = vmatpush1.msra.mxu0 0.0
      %1423 = vmatprep.subr.mxu0 0.0
      %1424 = vmatpush1.msra.mxu0 0.0
      %1425 = vmatprep.subr.mxu0 0.0
      %1426 = vmatpush1.msra.mxu0 0.0
      %1427 = vmatprep.subr.mxu0 0.0
      %1428 = vmatpush1.msra.mxu0 0.0
      %1429 = vmatprep.subr.mxu0 0.0
      %1430 = vmatpush1.msra.mxu0 0.0
      %1431 = vmatprep.mubr.f32.mxu0 0.0
      %1432 = vmatmul.mubr.f32.gmra.mrb[0].mxu0 %v400
      %v1433 = vpop.f32.mrb[0].mxu0
      %v1434 = vadd.f32 %v1329, %v1433
      %v1435 = vpop.f32.mrb[0].mxu0
      %1436 = vmatprep.mubr.f32.mxu0 0.0
      %1437 = vmatmul.mubr.f32.gmra.mrb[0].mxu0 %v403
      %v1438 = vpop.f32.mrb[0].mxu0
      %v1439 = vadd.f32 %v1334, %v1438
      %v1440 = vpop.f32.mrb[0].mxu0
      %1441 = vmatprep.mubr.f32.mxu0 0.0
      %1442 = vmatmul.mubr.f32.gmra.mrb[0].mxu0 %v406
      %v1443 = vpop.f32.mrb[0].mxu0
      %v1444 = vadd.f32 %v1339, %v1443
      %v1445 = vpop.f32.mrb[0].mxu0
      %1446 = vmatprep.mubr.f32.mxu0 0.0
      %1447 = vmatmul.mubr.f32.gmra.mrb[0].mxu0 %v409
      %v1448 = vpop.f32.mrb[0].mxu0
      %v1449 = vadd.f32 %v1344, %v1448
      %v1450 = vpop.f32.mrb[0].mxu0
      %1451 = vmatprep.mubr.f32.mxu0 0.0
      %1452 = vmatmul.mubr.f32.gmra.mrb[0].mxu0 %v412
      %v1453 = vpop.f32.mrb[0].mxu0
      %v1454 = vadd.f32 %v1349, %v1453
      %v1455 = vpop.f32.mrb[0].mxu0
      %1456 = vmatprep.mubr.f32.mxu0 0.0
      %1457 = vmatmul.mubr.f32.gmra.mrb[0].mxu0 %v415
      %v1458 = vpop.f32.mrb[0].mxu0
      %v1459 = vadd.f32 %v1354, %v1458
      %v1460 = vpop.f32.mrb[0].mxu0
      %1461 = vmatprep.mubr.f32.mxu0 0.0
      %1462 = vmatmul.mubr.f32.gmra.mrb[0].mxu0 %v418
      %v1463 = vpop.f32.mrb[0].mxu0
      %v1464 = vadd.f32 %v1359, %v1463
      %v1465 = vpop.f32.mrb[0].mxu0
      %1466 = vmatprep.mubr.f32.mxu0 0.0
      %1467 = vmatmul.mubr.f32.gmra.mrb[0].mxu0 %v421
      %v1468 = vpop.f32.mrb[0].mxu0
      %v1469 = vadd.f32 %v1364, %v1468
      %v1470 = vpop.f32.mrb[0].mxu0
      %1471 = vdwg.mxu0
      %1472 = vrot.lane.b32.xlu0 %v229, 64
      %v1473 = vpop.permute.xlu0 %1472
      %1474 = vrot.lane.b32.xlu0 %v230, 64
      %v1475 = vpop.permute.xlu0 %1474
      %1476 = vrot.lane.b32.xlu0 %v231, 64
      %v1477 = vpop.permute.xlu0 %1476
      %1478 = vrot.lane.b32.xlu0 %v232, 64
      %v1479 = vpop.permute.xlu0 %1478
      %1480 = vrot.lane.b32.xlu0 %v233, 64
      %v1481 = vpop.permute.xlu0 %1480
      %1482 = vrot.lane.b32.xlu0 %v234, 64
      %v1483 = vpop.permute.xlu0 %1482
      %1484 = vrot.lane.b32.xlu0 %v235, 64
      %v1485 = vpop.permute.xlu0 %1484
      %1486 = vrot.lane.b32.xlu0 %v236, 64
      %v1487 = vpop.permute.xlu0 %1486
      %1496 = vmatprep.subr.mxu0 0.0
      %1497 = vmatpush1.msra.mxu0 %v1473
      %1498 = vmatprep.subr.mxu0 0.0
      %1499 = vmatpush1.msra.mxu0 %v1475
      %1500 = vmatprep.subr.mxu0 0.0
      %1501 = vmatpush1.msra.mxu0 %v1477
      %1502 = vmatprep.subr.mxu0 0.0
      %1503 = vmatpush1.msra.mxu0 %v1479
      %1504 = vmatprep.subr.mxu0 0.0
      %1505 = vmatpush1.msra.mxu0 %v1481
      %1506 = vmatprep.subr.mxu0 0.0
      %1507 = vmatpush1.msra.mxu0 %v1483
      %1508 = vmatprep.subr.mxu0 0.0
      %1509 = vmatpush1.msra.mxu0 %v1485
      %1510 = vmatprep.subr.mxu0 0.0
      %1511 = vmatpush1.msra.mxu0 %v1487
      %1512 = vmatprep.subr.mxu0 0.0
      %1513 = vmatpush1.msra.mxu0 0.0
      %1514 = vmatprep.subr.mxu0 0.0
      %1515 = vmatpush1.msra.mxu0 0.0
      %1516 = vmatprep.subr.mxu0 0.0
      %1517 = vmatpush1.msra.mxu0 0.0
      %1518 = vmatprep.subr.mxu0 0.0
      %1519 = vmatpush1.msra.mxu0 0.0
      %1520 = vmatprep.subr.mxu0 0.0
      %1521 = vmatpush1.msra.mxu0 0.0
      %1522 = vmatprep.subr.mxu0 0.0
      %1523 = vmatpush1.msra.mxu0 0.0
      %1524 = vmatprep.subr.mxu0 0.0
      %1525 = vmatpush1.msra.mxu0 0.0
      %1526 = vmatprep.subr.mxu0 0.0
      %1527 = vmatpush1.msra.mxu0 0.0
      %1528 = vmatprep.subr.mxu0 0.0
      %1529 = vmatpush1.msra.mxu0 0.0
      %1530 = vmatprep.subr.mxu0 0.0
      %1531 = vmatpush1.msra.mxu0 0.0
      %1532 = vmatprep.subr.mxu0 0.0
      %1533 = vmatpush1.msra.mxu0 0.0
      %1534 = vmatprep.subr.mxu0 0.0
      %1535 = vmatpush1.msra.mxu0 0.0
      %1536 = vmatprep.subr.mxu0 0.0
      %1537 = vmatpush1.msra.mxu0 0.0
      %1538 = vmatprep.subr.mxu0 0.0
      %1539 = vmatpush1.msra.mxu0 0.0
      %1540 = vmatprep.subr.mxu0 0.0
      %1541 = vmatpush1.msra.mxu0 0.0
      %1542 = vmatprep.subr.mxu0 0.0
      %1543 = vmatpush1.msra.mxu0 0.0
      %1544 = vmatprep.subr.mxu0 0.0
      %1545 = vmatpush1.msra.mxu0 0.0
      %1546 = vmatprep.subr.mxu0 0.0
      %1547 = vmatpush1.msra.mxu0 0.0
      %1548 = vmatprep.subr.mxu0 0.0
      %1549 = vmatpush1.msra.mxu0 0.0
      %1550 = vmatprep.subr.mxu0 0.0
      %1551 = vmatpush1.msra.mxu0 0.0
      %1552 = vmatprep.subr.mxu0 0.0
      %1553 = vmatpush1.msra.mxu0 0.0
      %1554 = vmatprep.subr.mxu0 0.0
      %1555 = vmatpush1.msra.mxu0 0.0
      %1556 = vmatprep.subr.mxu0 0.0
      %1557 = vmatpush1.msra.mxu0 0.0
      %1558 = vmatprep.subr.mxu0 0.0
      %1559 = vmatpush1.msra.mxu0 0.0
      %1560 = vmatprep.mubr.f32.mxu0 0.0
      %1561 = vmatmul.mubr.f32.gmra.mrb[0].mxu0 %v271
      %v1562 = vpop.f32.mrb[0].mxu0
      %v1563 = vadd.f32 0.0, %v1562
      %v1564 = vpop.f32.mrb[0].mxu0
      %1565 = vmatprep.mubr.f32.mxu0 0.0
      %1566 = vmatmul.mubr.f32.gmra.mrb[0].mxu0 %v274
      %v1567 = vpop.f32.mrb[0].mxu0
      %v1568 = vadd.f32 0.0, %v1567
      %v1569 = vpop.f32.mrb[0].mxu0
      %1570 = vmatprep.mubr.f32.mxu0 0.0
      %1571 = vmatmul.mubr.f32.gmra.mrb[0].mxu0 %v277
      %v1572 = vpop.f32.mrb[0].mxu0
      %v1573 = vadd.f32 0.0, %v1572
      %v1574 = vpop.f32.mrb[0].mxu0
      %1575 = vmatprep.mubr.f32.mxu0 0.0
      %1576 = vmatmul.mubr.f32.gmra.mrb[0].mxu0 %v280
      %v1577 = vpop.f32.mrb[0].mxu0
      %v1578 = vadd.f32 0.0, %v1577
      %v1579 = vpop.f32.mrb[0].mxu0
      %1580 = vmatprep.mubr.f32.mxu0 0.0
      %1581 = vmatmul.mubr.f32.gmra.mrb[0].mxu0 %v283
      %v1582 = vpop.f32.mrb[0].mxu0
      %v1583 = vadd.f32 0.0, %v1582
      %v1584 = vpop.f32.mrb[0].mxu0
      %1585 = vmatprep.mubr.f32.mxu0 0.0
      %1586 = vmatmul.mubr.f32.gmra.mrb[0].mxu0 %v286
      %v1587 = vpop.f32.mrb[0].mxu0
      %v1588 = vadd.f32 0.0, %v1587
      %v1589 = vpop.f32.mrb[0].mxu0
      %1590 = vmatprep.mubr.f32.mxu0 0.0
      %1591 = vmatmul.mubr.f32.gmra.mrb[0].mxu0 %v289
      %v1592 = vpop.f32.mrb[0].mxu0
      %v1593 = vadd.f32 0.0, %v1592
      %v1594 = vpop.f32.mrb[0].mxu0
      %1595 = vmatprep.mubr.f32.mxu0 0.0
      %1596 = vmatmul.mubr.f32.gmra.mrb[0].mxu0 %v292
      %v1597 = vpop.f32.mrb[0].mxu0
      %v1598 = vadd.f32 0.0, %v1597
      %v1599 = vpop.f32.mrb[0].mxu0
      %1600 = vdwg.mxu0
      %v1601 = vadd.f32 %v1434, %v1563
      %v1602 = vadd.f32 %v1439, %v1568
      %v1603 = vadd.f32 %v1444, %v1573
      %v1604 = vadd.f32 %v1449, %v1578
      %v1605 = vadd.f32 %v1454, %v1583
      %v1606 = vadd.f32 %v1459, %v1588
      %v1607 = vadd.f32 %v1464, %v1593
      %v1608 = vadd.f32 %v1469, %v1598
      %1609 = vmatprep.subr.mxu0 0.0
      %1610 = vmatpush1.msra.mxu0 %v1118
      %1611 = vmatprep.subr.mxu0 0.0
      %1612 = vmatpush1.msra.mxu0 %v1120
      %1613 = vmatprep.subr.mxu0 0.0
      %1614 = vmatpush1.msra.mxu0 %v1122
      %1615 = vmatprep.subr.mxu0 0.0
      %1616 = vmatpush1.msra.mxu0 %v1124
      %1617 = vmatprep.subr.mxu0 0.0
      %1618 = vmatpush1.msra.mxu0 %v1126
      %1619 = vmatprep.subr.mxu0 0.0
      %1620 = vmatpush1.msra.mxu0 %v1128
      %1621 = vmatprep.subr.mxu0 0.0
      %1622 = vmatpush1.msra.mxu0 %v1130
      %1623 = vmatprep.subr.mxu0 0.0
      %1624 = vmatpush1.msra.mxu0 %v1132
      %1625 = vmatprep.subr.mxu0 0.0
      %1626 = vmatpush1.msra.mxu0 0.0
      %1627 = vmatprep.subr.mxu0 0.0
      %1628 = vmatpush1.msra.mxu0 0.0
      %1629 = vmatprep.subr.mxu0 0.0
      %1630 = vmatpush1.msra.mxu0 0.0
      %1631 = vmatprep.subr.mxu0 0.0
      %1632 = vmatpush1.msra.mxu0 0.0
      %1633 = vmatprep.subr.mxu0 0.0
      %1634 = vmatpush1.msra.mxu0 0.0
      %1635 = vmatprep.subr.mxu0 0.0
      %1636 = vmatpush1.msra.mxu0 0.0
      %1637 = vmatprep.subr.mxu0 0.0
      %1638 = vmatpush1.msra.mxu0 0.0
      %1639 = vmatprep.subr.mxu0 0.0
      %1640 = vmatpush1.msra.mxu0 0.0
      %1641 = vmatprep.subr.mxu0 0.0
      %1642 = vmatpush1.msra.mxu0 0.0
      %1643 = vmatprep.subr.mxu0 0.0
      %1644 = vmatpush1.msra.mxu0 0.0
      %1645 = vmatprep.subr.mxu0 0.0
      %1646 = vmatpush1.msra.mxu0 0.0
      %1647 = vmatprep.subr.mxu0 0.0
      %1648 = vmatpush1.msra.mxu0 0.0
      %1649 = vmatprep.subr.mxu0 0.0
      %1650 = vmatpush1.msra.mxu0 0.0
      %1651 = vmatprep.subr.mxu0 0.0
      %1652 = vmatpush1.msra.mxu0 0.0
      %1653 = vmatprep.subr.mxu0 0.0
      %1654 = vmatpush1.msra.mxu0 0.0
      %1655 = vmatprep.subr.mxu0 0.0
      %1656 = vmatpush1.msra.mxu0 0.0
      %1657 = vmatprep.subr.mxu0 0.0
      %1658 = vmatpush1.msra.mxu0 0.0
      %1659 = vmatprep.subr.mxu0 0.0
      %1660 = vmatpush1.msra.mxu0 0.0
      %1661 = vmatprep.subr.mxu0 0.0
      %1662 = vmatpush1.msra.mxu0 0.0
      %1663 = vmatprep.subr.mxu0 0.0
      %1664 = vmatpush1.msra.mxu0 0.0
      %1665 = vmatprep.subr.mxu0 0.0
      %1666 = vmatpush1.msra.mxu0 0.0
      %1667 = vmatprep.subr.mxu0 0.0
      %1668 = vmatpush1.msra.mxu0 0.0
      %1669 = vmatprep.subr.mxu0 0.0
      %1670 = vmatpush1.msra.mxu0 0.0
      %1671 = vmatprep.subr.mxu0 0.0
      %1672 = vmatpush1.msra.mxu0 0.0
      %1673 = vmatprep.mubr.f32.mxu0 0.0
      %1674 = vmatmul.mubr.f32.gmra.mrb[0].mxu0 %v529
      %v1675 = vpop.f32.mrb[0].mxu0
      %v1676 = vadd.f32 0.0, %v1675
      %v1677 = vpop.f32.mrb[0].mxu0
      %1678 = vmatprep.mubr.f32.mxu0 0.0
      %1679 = vmatmul.mubr.f32.gmra.mrb[0].mxu0 %v532
      %v1680 = vpop.f32.mrb[0].mxu0
      %v1681 = vadd.f32 0.0, %v1680
      %v1682 = vpop.f32.mrb[0].mxu0
      %1683 = vmatprep.mubr.f32.mxu0 0.0
      %1684 = vmatmul.mubr.f32.gmra.mrb[0].mxu0 %v535
      %v1685 = vpop.f32.mrb[0].mxu0
      %v1686 = vadd.f32 0.0, %v1685
      %v1687 = vpop.f32.mrb[0].mxu0
      %1688 = vmatprep.mubr.f32.mxu0 0.0
      %1689 = vmatmul.mubr.f32.gmra.mrb[0].mxu0 %v538
      %v1690 = vpop.f32.mrb[0].mxu0
      %v1691 = vadd.f32 0.0, %v1690
      %v1692 = vpop.f32.mrb[0].mxu0
      %1693 = vmatprep.mubr.f32.mxu0 0.0
      %1694 = vmatmul.mubr.f32.gmra.mrb[0].mxu0 %v541
      %v1695 = vpop.f32.mrb[0].mxu0
      %v1696 = vadd.f32 0.0, %v1695
      %v1697 = vpop.f32.mrb[0].mxu0
      %1698 = vmatprep.mubr.f32.mxu0 0.0
      %1699 = vmatmul.mubr.f32.gmra.mrb[0].mxu0 %v544
      %v1700 = vpop.f32.mrb[0].mxu0
      %v1701 = vadd.f32 0.0, %v1700
      %v1702 = vpop.f32.mrb[0].mxu0
      %1703 = vmatprep.mubr.f32.mxu0 0.0
      %1704 = vmatmul.mubr.f32.gmra.mrb[0].mxu0 %v547
      %v1705 = vpop.f32.mrb[0].mxu0
      %v1706 = vadd.f32 0.0, %v1705
      %v1707 = vpop.f32.mrb[0].mxu0
      %1708 = vmatprep.mubr.f32.mxu0 0.0
      %1709 = vmatmul.mubr.f32.gmra.mrb[0].mxu0 %v550
      %v1710 = vpop.f32.mrb[0].mxu0
      %v1711 = vadd.f32 0.0, %v1710
      %v1712 = vpop.f32.mrb[0].mxu0
      %1713 = vdwg.mxu0
      %1714 = vmatprep.subr.mxu0 0.0
      %1715 = vmatpush1.msra.mxu0 %v1473
      %1716 = vmatprep.subr.mxu0 0.0
      %1717 = vmatpush1.msra.mxu0 %v1475
      %1718 = vmatprep.subr.mxu0 0.0
      %1719 = vmatpush1.msra.mxu0 %v1477
      %1720 = vmatprep.subr.mxu0 0.0
      %1721 = vmatpush1.msra.mxu0 %v1479
      %1722 = vmatprep.subr.mxu0 0.0
      %1723 = vmatpush1.msra.mxu0 %v1481
      %1724 = vmatprep.subr.mxu0 0.0
      %1725 = vmatpush1.msra.mxu0 %v1483
      %1726 = vmatprep.subr.mxu0 0.0
      %1727 = vmatpush1.msra.mxu0 %v1485
      %1728 = vmatprep.subr.mxu0 0.0
      %1729 = vmatpush1.msra.mxu0 %v1487
      %1730 = vmatprep.subr.mxu0 0.0
      %1731 = vmatpush1.msra.mxu0 0.0
      %1732 = vmatprep.subr.mxu0 0.0
      %1733 = vmatpush1.msra.mxu0 0.0
      %1734 = vmatprep.subr.mxu0 0.0
      %1735 = vmatpush1.msra.mxu0 0.0
      %1736 = vmatprep.subr.mxu0 0.0
      %1737 = vmatpush1.msra.mxu0 0.0
      %1738 = vmatprep.subr.mxu0 0.0
      %1739 = vmatpush1.msra.mxu0 0.0
      %1740 = vmatprep.subr.mxu0 0.0
      %1741 = vmatpush1.msra.mxu0 0.0
      %1742 = vmatprep.subr.mxu0 0.0
      %1743 = vmatpush1.msra.mxu0 0.0
      %1744 = vmatprep.subr.mxu0 0.0
      %1745 = vmatpush1.msra.mxu0 0.0
      %1746 = vmatprep.subr.mxu0 0.0
      %1747 = vmatpush1.msra.mxu0 0.0
      %1748 = vmatprep.subr.mxu0 0.0
      %1749 = vmatpush1.msra.mxu0 0.0
      %1750 = vmatprep.subr.mxu0 0.0
      %1751 = vmatpush1.msra.mxu0 0.0
      %1752 = vmatprep.subr.mxu0 0.0
      %1753 = vmatpush1.msra.mxu0 0.0
      %1754 = vmatprep.subr.mxu0 0.0
      %1755 = vmatpush1.msra.mxu0 0.0
      %1756 = vmatprep.subr.mxu0 0.0
      %1757 = vmatpush1.msra.mxu0 0.0
      %1758 = vmatprep.subr.mxu0 0.0
      %1759 = vmatpush1.msra.mxu0 0.0
      %1760 = vmatprep.subr.mxu0 0.0
      %1761 = vmatpush1.msra.mxu0 0.0
      %1762 = vmatprep.subr.mxu0 0.0
      %1763 = vmatpush1.msra.mxu0 0.0
      %1764 = vmatprep.subr.mxu0 0.0
      %1765 = vmatpush1.msra.mxu0 0.0
      %1766 = vmatprep.subr.mxu0 0.0
      %1767 = vmatpush1.msra.mxu0 0.0
      %1768 = vmatprep.subr.mxu0 0.0
      %1769 = vmatpush1.msra.mxu0 0.0
      %1770 = vmatprep.subr.mxu0 0.0
      %1771 = vmatpush1.msra.mxu0 0.0
      %1772 = vmatprep.subr.mxu0 0.0
      %1773 = vmatpush1.msra.mxu0 0.0
      %1774 = vmatprep.subr.mxu0 0.0
      %1775 = vmatpush1.msra.mxu0 0.0
      %1776 = vmatprep.subr.mxu0 0.0
      %1777 = vmatpush1.msra.mxu0 0.0
      %1778 = vmatprep.mubr.f32.mxu0 0.0
      %1779 = vmatmul.mubr.f32.gmra.mrb[0].mxu0 %v400
      %v1780 = vpop.f32.mrb[0].mxu0
      %v1781 = vadd.f32 %v1676, %v1780
      %v1782 = vpop.f32.mrb[0].mxu0
      %1783 = vmatprep.mubr.f32.mxu0 0.0
      %1784 = vmatmul.mubr.f32.gmra.mrb[0].mxu0 %v403
      %v1785 = vpop.f32.mrb[0].mxu0
      %v1786 = vadd.f32 %v1681, %v1785
      %v1787 = vpop.f32.mrb[0].mxu0
      %1788 = vmatprep.mubr.f32.mxu0 0.0
      %1789 = vmatmul.mubr.f32.gmra.mrb[0].mxu0 %v406
      %v1790 = vpop.f32.mrb[0].mxu0
      %v1791 = vadd.f32 %v1686, %v1790
      %v1792 = vpop.f32.mrb[0].mxu0
      %1793 = vmatprep.mubr.f32.mxu0 0.0
      %1794 = vmatmul.mubr.f32.gmra.mrb[0].mxu0 %v409
      %v1795 = vpop.f32.mrb[0].mxu0
      %v1796 = vadd.f32 %v1691, %v1795
      %v1797 = vpop.f32.mrb[0].mxu0
      %1798 = vmatprep.mubr.f32.mxu0 0.0
      %1799 = vmatmul.mubr.f32.gmra.mrb[0].mxu0 %v412
      %v1800 = vpop.f32.mrb[0].mxu0
      %v1801 = vadd.f32 %v1696, %v1800
      %v1802 = vpop.f32.mrb[0].mxu0
      %1803 = vmatprep.mubr.f32.mxu0 0.0
      %1804 = vmatmul.mubr.f32.gmra.mrb[0].mxu0 %v415
      %v1805 = vpop.f32.mrb[0].mxu0
      %v1806 = vadd.f32 %v1701, %v1805
      %v1807 = vpop.f32.mrb[0].mxu0
      %1808 = vmatprep.mubr.f32.mxu0 0.0
      %1809 = vmatmul.mubr.f32.gmra.mrb[0].mxu0 %v418
      %v1810 = vpop.f32.mrb[0].mxu0
      %v1811 = vadd.f32 %v1706, %v1810
      %v1812 = vpop.f32.mrb[0].mxu0
      %1813 = vmatprep.mubr.f32.mxu0 0.0
      %1814 = vmatmul.mubr.f32.gmra.mrb[0].mxu0 %v421
      %v1815 = vpop.f32.mrb[0].mxu0
      %v1816 = vadd.f32 %v1711, %v1815
      %v1817 = vpop.f32.mrb[0].mxu0
      %1818 = vdwg.mxu0
      %1819 = vrot.lane.b32.xlu0 %v229, 48
      %v1820 = vpop.permute.xlu0 %1819
      %1821 = vrot.lane.b32.xlu0 %v230, 48
      %v1822 = vpop.permute.xlu0 %1821
      %1823 = vrot.lane.b32.xlu0 %v231, 48
      %v1824 = vpop.permute.xlu0 %1823
      %1825 = vrot.lane.b32.xlu0 %v232, 48
      %v1826 = vpop.permute.xlu0 %1825
      %1827 = vrot.lane.b32.xlu0 %v233, 48
      %v1828 = vpop.permute.xlu0 %1827
      %1829 = vrot.lane.b32.xlu0 %v234, 48
      %v1830 = vpop.permute.xlu0 %1829
      %1831 = vrot.lane.b32.xlu0 %v235, 48
      %v1832 = vpop.permute.xlu0 %1831
      %1833 = vrot.lane.b32.xlu0 %v236, 48
      %v1834 = vpop.permute.xlu0 %1833
      %1843 = vmatprep.subr.mxu0 0.0
      %1844 = vmatpush1.msra.mxu0 %v1820
      %1845 = vmatprep.subr.mxu0 0.0
      %1846 = vmatpush1.msra.mxu0 %v1822
      %1847 = vmatprep.subr.mxu0 0.0
      %1848 = vmatpush1.msra.mxu0 %v1824
      %1849 = vmatprep.subr.mxu0 0.0
      %1850 = vmatpush1.msra.mxu0 %v1826
      %1851 = vmatprep.subr.mxu0 0.0
      %1852 = vmatpush1.msra.mxu0 %v1828
      %1853 = vmatprep.subr.mxu0 0.0
      %1854 = vmatpush1.msra.mxu0 %v1830
      %1855 = vmatprep.subr.mxu0 0.0
      %1856 = vmatpush1.msra.mxu0 %v1832
      %1857 = vmatprep.subr.mxu0 0.0
      %1858 = vmatpush1.msra.mxu0 %v1834
      %1859 = vmatprep.subr.mxu0 0.0
      %1860 = vmatpush1.msra.mxu0 0.0
      %1861 = vmatprep.subr.mxu0 0.0
      %1862 = vmatpush1.msra.mxu0 0.0
      %1863 = vmatprep.subr.mxu0 0.0
      %1864 = vmatpush1.msra.mxu0 0.0
      %1865 = vmatprep.subr.mxu0 0.0
      %1866 = vmatpush1.msra.mxu0 0.0
      %1867 = vmatprep.subr.mxu0 0.0
      %1868 = vmatpush1.msra.mxu0 0.0
      %1869 = vmatprep.subr.mxu0 0.0
      %1870 = vmatpush1.msra.mxu0 0.0
      %1871 = vmatprep.subr.mxu0 0.0
      %1872 = vmatpush1.msra.mxu0 0.0
      %1873 = vmatprep.subr.mxu0 0.0
      %1874 = vmatpush1.msra.mxu0 0.0
      %1875 = vmatprep.subr.mxu0 0.0
      %1876 = vmatpush1.msra.mxu0 0.0
      %1877 = vmatprep.subr.mxu0 0.0
      %1878 = vmatpush1.msra.mxu0 0.0
      %1879 = vmatprep.subr.mxu0 0.0
      %1880 = vmatpush1.msra.mxu0 0.0
      %1881 = vmatprep.subr.mxu0 0.0
      %1882 = vmatpush1.msra.mxu0 0.0
      %1883 = vmatprep.subr.mxu0 0.0
      %1884 = vmatpush1.msra.mxu0 0.0
      %1885 = vmatprep.subr.mxu0 0.0
      %1886 = vmatpush1.msra.mxu0 0.0
      %1887 = vmatprep.subr.mxu0 0.0
      %1888 = vmatpush1.msra.mxu0 0.0
      %1889 = vmatprep.subr.mxu0 0.0
      %1890 = vmatpush1.msra.mxu0 0.0
      %1891 = vmatprep.subr.mxu0 0.0
      %1892 = vmatpush1.msra.mxu0 0.0
      %1893 = vmatprep.subr.mxu0 0.0
      %1894 = vmatpush1.msra.mxu0 0.0
      %1895 = vmatprep.subr.mxu0 0.0
      %1896 = vmatpush1.msra.mxu0 0.0
      %1897 = vmatprep.subr.mxu0 0.0
      %1898 = vmatpush1.msra.mxu0 0.0
      %1899 = vmatprep.subr.mxu0 0.0
      %1900 = vmatpush1.msra.mxu0 0.0
      %1901 = vmatprep.subr.mxu0 0.0
      %1902 = vmatpush1.msra.mxu0 0.0
      %1903 = vmatprep.subr.mxu0 0.0
      %1904 = vmatpush1.msra.mxu0 0.0
      %1905 = vmatprep.subr.mxu0 0.0
      %1906 = vmatpush1.msra.mxu0 0.0
      %1907 = vmatprep.mubr.f32.mxu0 0.0
      %1908 = vmatmul.mubr.f32.gmra.mrb[0].mxu0 %v271
      %v1909 = vpop.f32.mrb[0].mxu0
      %v1910 = vadd.f32 0.0, %v1909
      %v1911 = vpop.f32.mrb[0].mxu0
      %1912 = vmatprep.mubr.f32.mxu0 0.0
      %1913 = vmatmul.mubr.f32.gmra.mrb[0].mxu0 %v274
      %v1914 = vpop.f32.mrb[0].mxu0
      %v1915 = vadd.f32 0.0, %v1914
      %v1916 = vpop.f32.mrb[0].mxu0
      %1917 = vmatprep.mubr.f32.mxu0 0.0
      %1918 = vmatmul.mubr.f32.gmra.mrb[0].mxu0 %v277
      %v1919 = vpop.f32.mrb[0].mxu0
      %v1920 = vadd.f32 0.0, %v1919
      %v1921 = vpop.f32.mrb[0].mxu0
      %1922 = vmatprep.mubr.f32.mxu0 0.0
      %1923 = vmatmul.mubr.f32.gmra.mrb[0].mxu0 %v280
      %v1924 = vpop.f32.mrb[0].mxu0
      %v1925 = vadd.f32 0.0, %v1924
      %v1926 = vpop.f32.mrb[0].mxu0
      %1927 = vmatprep.mubr.f32.mxu0 0.0
      %1928 = vmatmul.mubr.f32.gmra.mrb[0].mxu0 %v283
      %v1929 = vpop.f32.mrb[0].mxu0
      %v1930 = vadd.f32 0.0, %v1929
      %v1931 = vpop.f32.mrb[0].mxu0
      %1932 = vmatprep.mubr.f32.mxu0 0.0
      %1933 = vmatmul.mubr.f32.gmra.mrb[0].mxu0 %v286
      %v1934 = vpop.f32.mrb[0].mxu0
      %v1935 = vadd.f32 0.0, %v1934
      %v1936 = vpop.f32.mrb[0].mxu0
      %1937 = vmatprep.mubr.f32.mxu0 0.0
      %1938 = vmatmul.mubr.f32.gmra.mrb[0].mxu0 %v289
      %v1939 = vpop.f32.mrb[0].mxu0
      %v1940 = vadd.f32 0.0, %v1939
      %v1941 = vpop.f32.mrb[0].mxu0
      %1942 = vmatprep.mubr.f32.mxu0 0.0
      %1943 = vmatmul.mubr.f32.gmra.mrb[0].mxu0 %v292
      %v1944 = vpop.f32.mrb[0].mxu0
      %v1945 = vadd.f32 0.0, %v1944
      %v1946 = vpop.f32.mrb[0].mxu0
      %1947 = vdwg.mxu0
      %v1948 = vadd.f32 %v1781, %v1910
      %v1949 = vadd.f32 %v1786, %v1915
      %v1950 = vadd.f32 %v1791, %v1920
      %v1951 = vadd.f32 %v1796, %v1925
      %v1952 = vadd.f32 %v1801, %v1930
      %v1953 = vadd.f32 %v1806, %v1935
      %v1954 = vadd.f32 %v1811, %v1940
      %v1955 = vadd.f32 %v1816, %v1945
      %v1956 = vmax.f32 %v1601, %v1948
      %v1957 = vmax.f32 %v1602, %v1949
      %v1958 = vmax.f32 %v1603, %v1950
      %v1959 = vmax.f32 %v1604, %v1951
      %v1960 = vmax.f32 %v1605, %v1952
      %v1961 = vmax.f32 %v1606, %v1953
      %v1962 = vmax.f32 %v1607, %v1954
      %v1963 = vmax.f32 %v1608, %v1955
      %1964 = vmatprep.subr.mxu0 0.0
      %1965 = vmatpush1.msra.mxu0 %v1473
      %1966 = vmatprep.subr.mxu0 0.0
      %1967 = vmatpush1.msra.mxu0 %v1475
      %1968 = vmatprep.subr.mxu0 0.0
      %1969 = vmatpush1.msra.mxu0 %v1477
      %1970 = vmatprep.subr.mxu0 0.0
      %1971 = vmatpush1.msra.mxu0 %v1479
      %1972 = vmatprep.subr.mxu0 0.0
      %1973 = vmatpush1.msra.mxu0 %v1481
      %1974 = vmatprep.subr.mxu0 0.0
      %1975 = vmatpush1.msra.mxu0 %v1483
      %1976 = vmatprep.subr.mxu0 0.0
      %1977 = vmatpush1.msra.mxu0 %v1485
      %1978 = vmatprep.subr.mxu0 0.0
      %1979 = vmatpush1.msra.mxu0 %v1487
      %1980 = vmatprep.subr.mxu0 0.0
      %1981 = vmatpush1.msra.mxu0 0.0
      %1982 = vmatprep.subr.mxu0 0.0
      %1983 = vmatpush1.msra.mxu0 0.0
      %1984 = vmatprep.subr.mxu0 0.0
      %1985 = vmatpush1.msra.mxu0 0.0
      %1986 = vmatprep.subr.mxu0 0.0
      %1987 = vmatpush1.msra.mxu0 0.0
      %1988 = vmatprep.subr.mxu0 0.0
      %1989 = vmatpush1.msra.mxu0 0.0
      %1990 = vmatprep.subr.mxu0 0.0
      %1991 = vmatpush1.msra.mxu0 0.0
      %1992 = vmatprep.subr.mxu0 0.0
      %1993 = vmatpush1.msra.mxu0 0.0
      %1994 = vmatprep.subr.mxu0 0.0
      %1995 = vmatpush1.msra.mxu0 0.0
      %1996 = vmatprep.subr.mxu0 0.0
      %1997 = vmatpush1.msra.mxu0 0.0
      %1998 = vmatprep.subr.mxu0 0.0
      %1999 = vmatpush1.msra.mxu0 0.0
      %2000 = vmatprep.subr.mxu0 0.0
      %2001 = vmatpush1.msra.mxu0 0.0
      %2002 = vmatprep.subr.mxu0 0.0
      %2003 = vmatpush1.msra.mxu0 0.0
      %2004 = vmatprep.subr.mxu0 0.0
      %2005 = vmatpush1.msra.mxu0 0.0
      %2006 = vmatprep.subr.mxu0 0.0
      %2007 = vmatpush1.msra.mxu0 0.0
      %2008 = vmatprep.subr.mxu0 0.0
      %2009 = vmatpush1.msra.mxu0 0.0
      %2010 = vmatprep.subr.mxu0 0.0
      %2011 = vmatpush1.msra.mxu0 0.0
      %2012 = vmatprep.subr.mxu0 0.0
      %2013 = vmatpush1.msra.mxu0 0.0
      %2014 = vmatprep.subr.mxu0 0.0
      %2015 = vmatpush1.msra.mxu0 0.0
      %2016 = vmatprep.subr.mxu0 0.0
      %2017 = vmatpush1.msra.mxu0 0.0
      %2018 = vmatprep.subr.mxu0 0.0
      %2019 = vmatpush1.msra.mxu0 0.0
      %2020 = vmatprep.subr.mxu0 0.0
      %2021 = vmatpush1.msra.mxu0 0.0
      %2022 = vmatprep.subr.mxu0 0.0
      %2023 = vmatpush1.msra.mxu0 0.0
      %2024 = vmatprep.subr.mxu0 0.0
      %2025 = vmatpush1.msra.mxu0 0.0
      %2026 = vmatprep.subr.mxu0 0.0
      %2027 = vmatpush1.msra.mxu0 0.0
      %2028 = vmatprep.mubr.f32.mxu0 0.0
      %2029 = vmatmul.mubr.f32.gmra.mrb[0].mxu0 %v529
      %v2030 = vpop.f32.mrb[0].mxu0
      %v2031 = vadd.f32 0.0, %v2030
      %v2032 = vpop.f32.mrb[0].mxu0
      %2033 = vmatprep.mubr.f32.mxu0 0.0
      %2034 = vmatmul.mubr.f32.gmra.mrb[0].mxu0 %v532
      %v2035 = vpop.f32.mrb[0].mxu0
      %v2036 = vadd.f32 0.0, %v2035
      %v2037 = vpop.f32.mrb[0].mxu0
      %2038 = vmatprep.mubr.f32.mxu0 0.0
      %2039 = vmatmul.mubr.f32.gmra.mrb[0].mxu0 %v535
      %v2040 = vpop.f32.mrb[0].mxu0
      %v2041 = vadd.f32 0.0, %v2040
      %v2042 = vpop.f32.mrb[0].mxu0
      %2043 = vmatprep.mubr.f32.mxu0 0.0
      %2044 = vmatmul.mubr.f32.gmra.mrb[0].mxu0 %v538
      %v2045 = vpop.f32.mrb[0].mxu0
      %v2046 = vadd.f32 0.0, %v2045
      %v2047 = vpop.f32.mrb[0].mxu0
      %2048 = vmatprep.mubr.f32.mxu0 0.0
      %2049 = vmatmul.mubr.f32.gmra.mrb[0].mxu0 %v541
      %v2050 = vpop.f32.mrb[0].mxu0
      %v2051 = vadd.f32 0.0, %v2050
      %v2052 = vpop.f32.mrb[0].mxu0
      %2053 = vmatprep.mubr.f32.mxu0 0.0
      %2054 = vmatmul.mubr.f32.gmra.mrb[0].mxu0 %v544
      %v2055 = vpop.f32.mrb[0].mxu0
      %v2056 = vadd.f32 0.0, %v2055
      %v2057 = vpop.f32.mrb[0].mxu0
      %2058 = vmatprep.mubr.f32.mxu0 0.0
      %2059 = vmatmul.mubr.f32.gmra.mrb[0].mxu0 %v547
      %v2060 = vpop.f32.mrb[0].mxu0
      %v2061 = vadd.f32 0.0, %v2060
      %v2062 = vpop.f32.mrb[0].mxu0
      %2063 = vmatprep.mubr.f32.mxu0 0.0
      %2064 = vmatmul.mubr.f32.gmra.mrb[0].mxu0 %v550
      %v2065 = vpop.f32.mrb[0].mxu0
      %v2066 = vadd.f32 0.0, %v2065
      %v2067 = vpop.f32.mrb[0].mxu0
      %2068 = vdwg.mxu0
      %2069 = vmatprep.subr.mxu0 0.0
      %2070 = vmatpush1.msra.mxu0 %v1820
      %2071 = vmatprep.subr.mxu0 0.0
      %2072 = vmatpush1.msra.mxu0 %v1822
      %2073 = vmatprep.subr.mxu0 0.0
      %2074 = vmatpush1.msra.mxu0 %v1824
      %2075 = vmatprep.subr.mxu0 0.0
      %2076 = vmatpush1.msra.mxu0 %v1826
      %2077 = vmatprep.subr.mxu0 0.0
      %2078 = vmatpush1.msra.mxu0 %v1828
      %2079 = vmatprep.subr.mxu0 0.0
      %2080 = vmatpush1.msra.mxu0 %v1830
      %2081 = vmatprep.subr.mxu0 0.0
      %2082 = vmatpush1.msra.mxu0 %v1832
      %2083 = vmatprep.subr.mxu0 0.0
      %2084 = vmatpush1.msra.mxu0 %v1834
      %2085 = vmatprep.subr.mxu0 0.0
      %2086 = vmatpush1.msra.mxu0 0.0
      %2087 = vmatprep.subr.mxu0 0.0
      %2088 = vmatpush1.msra.mxu0 0.0
      %2089 = vmatprep.subr.mxu0 0.0
      %2090 = vmatpush1.msra.mxu0 0.0
      %2091 = vmatprep.subr.mxu0 0.0
      %2092 = vmatpush1.msra.mxu0 0.0
      %2093 = vmatprep.subr.mxu0 0.0
      %2094 = vmatpush1.msra.mxu0 0.0
      %2095 = vmatprep.subr.mxu0 0.0
      %2096 = vmatpush1.msra.mxu0 0.0
      %2097 = vmatprep.subr.mxu0 0.0
      %2098 = vmatpush1.msra.mxu0 0.0
      %2099 = vmatprep.subr.mxu0 0.0
      %2100 = vmatpush1.msra.mxu0 0.0
      %2101 = vmatprep.subr.mxu0 0.0
      %2102 = vmatpush1.msra.mxu0 0.0
      %2103 = vmatprep.subr.mxu0 0.0
      %2104 = vmatpush1.msra.mxu0 0.0
      %2105 = vmatprep.subr.mxu0 0.0
      %2106 = vmatpush1.msra.mxu0 0.0
      %2107 = vmatprep.subr.mxu0 0.0
      %2108 = vmatpush1.msra.mxu0 0.0
      %2109 = vmatprep.subr.mxu0 0.0
      %2110 = vmatpush1.msra.mxu0 0.0
      %2111 = vmatprep.subr.mxu0 0.0
      %2112 = vmatpush1.msra.mxu0 0.0
      %2113 = vmatprep.subr.mxu0 0.0
      %2114 = vmatpush1.msra.mxu0 0.0
      %2115 = vmatprep.subr.mxu0 0.0
      %2116 = vmatpush1.msra.mxu0 0.0
      %2117 = vmatprep.subr.mxu0 0.0
      %2118 = vmatpush1.msra.mxu0 0.0
      %2119 = vmatprep.subr.mxu0 0.0
      %2120 = vmatpush1.msra.mxu0 0.0
      %2121 = vmatprep.subr.mxu0 0.0
      %2122 = vmatpush1.msra.mxu0 0.0
      %2123 = vmatprep.subr.mxu0 0.0
      %2124 = vmatpush1.msra.mxu0 0.0
      %2125 = vmatprep.subr.mxu0 0.0
      %2126 = vmatpush1.msra.mxu0 0.0
      %2127 = vmatprep.subr.mxu0 0.0
      %2128 = vmatpush1.msra.mxu0 0.0
      %2129 = vmatprep.subr.mxu0 0.0
      %2130 = vmatpush1.msra.mxu0 0.0
      %2131 = vmatprep.subr.mxu0 0.0
      %2132 = vmatpush1.msra.mxu0 0.0
      %2133 = vmatprep.mubr.f32.mxu0 0.0
      %2134 = vmatmul.mubr.f32.gmra.mrb[0].mxu0 %v400
      %v2135 = vpop.f32.mrb[0].mxu0
      %v2136 = vadd.f32 %v2031, %v2135
      %v2137 = vpop.f32.mrb[0].mxu0
      %2138 = vmatprep.mubr.f32.mxu0 0.0
      %2139 = vmatmul.mubr.f32.gmra.mrb[0].mxu0 %v403
      %v2140 = vpop.f32.mrb[0].mxu0
      %v2141 = vadd.f32 %v2036, %v2140
      %v2142 = vpop.f32.mrb[0].mxu0
      %2143 = vmatprep.mubr.f32.mxu0 0.0
      %2144 = vmatmul.mubr.f32.gmra.mrb[0].mxu0 %v406
      %v2145 = vpop.f32.mrb[0].mxu0
      %v2146 = vadd.f32 %v2041, %v2145
      %v2147 = vpop.f32.mrb[0].mxu0
      %2148 = vmatprep.mubr.f32.mxu0 0.0
      %2149 = vmatmul.mubr.f32.gmra.mrb[0].mxu0 %v409
      %v2150 = vpop.f32.mrb[0].mxu0
      %v2151 = vadd.f32 %v2046, %v2150
      %v2152 = vpop.f32.mrb[0].mxu0
      %2153 = vmatprep.mubr.f32.mxu0 0.0
      %2154 = vmatmul.mubr.f32.gmra.mrb[0].mxu0 %v412
      %v2155 = vpop.f32.mrb[0].mxu0
      %v2156 = vadd.f32 %v2051, %v2155
      %v2157 = vpop.f32.mrb[0].mxu0
      %2158 = vmatprep.mubr.f32.mxu0 0.0
      %2159 = vmatmul.mubr.f32.gmra.mrb[0].mxu0 %v415
      %v2160 = vpop.f32.mrb[0].mxu0
      %v2161 = vadd.f32 %v2056, %v2160
      %v2162 = vpop.f32.mrb[0].mxu0
      %2163 = vmatprep.mubr.f32.mxu0 0.0
      %2164 = vmatmul.mubr.f32.gmra.mrb[0].mxu0 %v418
      %v2165 = vpop.f32.mrb[0].mxu0
      %v2166 = vadd.f32 %v2061, %v2165
      %v2167 = vpop.f32.mrb[0].mxu0
      %2168 = vmatprep.mubr.f32.mxu0 0.0
      %2169 = vmatmul.mubr.f32.gmra.mrb[0].mxu0 %v421
      %v2170 = vpop.f32.mrb[0].mxu0
      %v2171 = vadd.f32 %v2066, %v2170
      %v2172 = vpop.f32.mrb[0].mxu0
      %2173 = vdwg.mxu0
      %2174 = vrot.lane.b32.xlu0 %v229, 32
      %v2175 = vpop.permute.xlu0 %2174
      %2176 = vrot.lane.b32.xlu0 %v230, 32
      %v2177 = vpop.permute.xlu0 %2176
      %2178 = vrot.lane.b32.xlu0 %v231, 32
      %v2179 = vpop.permute.xlu0 %2178
      %2180 = vrot.lane.b32.xlu0 %v232, 32
      %v2181 = vpop.permute.xlu0 %2180
      %2182 = vrot.lane.b32.xlu0 %v233, 32
      %v2183 = vpop.permute.xlu0 %2182
      %2184 = vrot.lane.b32.xlu0 %v234, 32
      %v2185 = vpop.permute.xlu0 %2184
      %2186 = vrot.lane.b32.xlu0 %v235, 32
      %v2187 = vpop.permute.xlu0 %2186
      %2188 = vrot.lane.b32.xlu0 %v236, 32
      %v2189 = vpop.permute.xlu0 %2188
      %2198 = vmatprep.subr.mxu0 0.0
      %2199 = vmatpush1.msra.mxu0 %v2175
      %2200 = vmatprep.subr.mxu0 0.0
      %2201 = vmatpush1.msra.mxu0 %v2177
      %2202 = vmatprep.subr.mxu0 0.0
      %2203 = vmatpush1.msra.mxu0 %v2179
      %2204 = vmatprep.subr.mxu0 0.0
      %2205 = vmatpush1.msra.mxu0 %v2181
      %2206 = vmatprep.subr.mxu0 0.0
      %2207 = vmatpush1.msra.mxu0 %v2183
      %2208 = vmatprep.subr.mxu0 0.0
      %2209 = vmatpush1.msra.mxu0 %v2185
      %2210 = vmatprep.subr.mxu0 0.0
      %2211 = vmatpush1.msra.mxu0 %v2187
      %2212 = vmatprep.subr.mxu0 0.0
      %2213 = vmatpush1.msra.mxu0 %v2189
      %2214 = vmatprep.subr.mxu0 0.0
      %2215 = vmatpush1.msra.mxu0 0.0
      %2216 = vmatprep.subr.mxu0 0.0
      %2217 = vmatpush1.msra.mxu0 0.0
      %2218 = vmatprep.subr.mxu0 0.0
      %2219 = vmatpush1.msra.mxu0 0.0
      %2220 = vmatprep.subr.mxu0 0.0
      %2221 = vmatpush1.msra.mxu0 0.0
      %2222 = vmatprep.subr.mxu0 0.0
      %2223 = vmatpush1.msra.mxu0 0.0
      %2224 = vmatprep.subr.mxu0 0.0
      %2225 = vmatpush1.msra.mxu0 0.0
      %2226 = vmatprep.subr.mxu0 0.0
      %2227 = vmatpush1.msra.mxu0 0.0
      %2228 = vmatprep.subr.mxu0 0.0
      %2229 = vmatpush1.msra.mxu0 0.0
      %2230 = vmatprep.subr.mxu0 0.0
      %2231 = vmatpush1.msra.mxu0 0.0
      %2232 = vmatprep.subr.mxu0 0.0
      %2233 = vmatpush1.msra.mxu0 0.0
      %2234 = vmatprep.subr.mxu0 0.0
      %2235 = vmatpush1.msra.mxu0 0.0
      %2236 = vmatprep.subr.mxu0 0.0
      %2237 = vmatpush1.msra.mxu0 0.0
      %2238 = vmatprep.subr.mxu0 0.0
      %2239 = vmatpush1.msra.mxu0 0.0
      %2240 = vmatprep.subr.mxu0 0.0
      %2241 = vmatpush1.msra.mxu0 0.0
      %2242 = vmatprep.subr.mxu0 0.0
      %2243 = vmatpush1.msra.mxu0 0.0
      %2244 = vmatprep.subr.mxu0 0.0
      %2245 = vmatpush1.msra.mxu0 0.0
      %2246 = vmatprep.subr.mxu0 0.0
      %2247 = vmatpush1.msra.mxu0 0.0
      %2248 = vmatprep.subr.mxu0 0.0
      %2249 = vmatpush1.msra.mxu0 0.0
      %2250 = vmatprep.subr.mxu0 0.0
      %2251 = vmatpush1.msra.mxu0 0.0
      %2252 = vmatprep.subr.mxu0 0.0
      %2253 = vmatpush1.msra.mxu0 0.0
      %2254 = vmatprep.subr.mxu0 0.0
      %2255 = vmatpush1.msra.mxu0 0.0
      %2256 = vmatprep.subr.mxu0 0.0
      %2257 = vmatpush1.msra.mxu0 0.0
      %2258 = vmatprep.subr.mxu0 0.0
      %2259 = vmatpush1.msra.mxu0 0.0
      %2260 = vmatprep.subr.mxu0 0.0
      %2261 = vmatpush1.msra.mxu0 0.0
      %2262 = vmatprep.mubr.f32.mxu0 0.0
      %2263 = vmatmul.mubr.f32.gmra.mrb[0].mxu0 %v271
      %v2264 = vpop.f32.mrb[0].mxu0
      %v2265 = vadd.f32 0.0, %v2264
      %v2266 = vpop.f32.mrb[0].mxu0
      %2267 = vmatprep.mubr.f32.mxu0 0.0
      %2268 = vmatmul.mubr.f32.gmra.mrb[0].mxu0 %v274
      %v2269 = vpop.f32.mrb[0].mxu0
      %v2270 = vadd.f32 0.0, %v2269
      %v2271 = vpop.f32.mrb[0].mxu0
      %2272 = vmatprep.mubr.f32.mxu0 0.0
      %2273 = vmatmul.mubr.f32.gmra.mrb[0].mxu0 %v277
      %v2274 = vpop.f32.mrb[0].mxu0
      %v2275 = vadd.f32 0.0, %v2274
      %v2276 = vpop.f32.mrb[0].mxu0
      %2277 = vmatprep.mubr.f32.mxu0 0.0
      %2278 = vmatmul.mubr.f32.gmra.mrb[0].mxu0 %v280
      %v2279 = vpop.f32.mrb[0].mxu0
      %v2280 = vadd.f32 0.0, %v2279
      %v2281 = vpop.f32.mrb[0].mxu0
      %2282 = vmatprep.mubr.f32.mxu0 0.0
      %2283 = vmatmul.mubr.f32.gmra.mrb[0].mxu0 %v283
      %v2284 = vpop.f32.mrb[0].mxu0
      %v2285 = vadd.f32 0.0, %v2284
      %v2286 = vpop.f32.mrb[0].mxu0
      %2287 = vmatprep.mubr.f32.mxu0 0.0
      %2288 = vmatmul.mubr.f32.gmra.mrb[0].mxu0 %v286
      %v2289 = vpop.f32.mrb[0].mxu0
      %v2290 = vadd.f32 0.0, %v2289
      %v2291 = vpop.f32.mrb[0].mxu0
      %2292 = vmatprep.mubr.f32.mxu0 0.0
      %2293 = vmatmul.mubr.f32.gmra.mrb[0].mxu0 %v289
      %v2294 = vpop.f32.mrb[0].mxu0
      %v2295 = vadd.f32 0.0, %v2294
      %v2296 = vpop.f32.mrb[0].mxu0
      %2297 = vmatprep.mubr.f32.mxu0 0.0
      %2298 = vmatmul.mubr.f32.gmra.mrb[0].mxu0 %v292
      %v2299 = vpop.f32.mrb[0].mxu0
      %v2300 = vadd.f32 0.0, %v2299
      %v2301 = vpop.f32.mrb[0].mxu0
      %2302 = vdwg.mxu0
      %v2303 = vadd.f32 %v2136, %v2265
      %v2304 = vadd.f32 %v2141, %v2270
      %v2305 = vadd.f32 %v2146, %v2275
      %v2306 = vadd.f32 %v2151, %v2280
      %v2307 = vadd.f32 %v2156, %v2285
      %v2308 = vadd.f32 %v2161, %v2290
      %v2309 = vadd.f32 %v2166, %v2295
      %v2310 = vadd.f32 %v2171, %v2300
      %v2311 = vmax.f32 %v1956, %v2303
      %v2312 = vmax.f32 %v1957, %v2304
      %v2313 = vmax.f32 %v1958, %v2305
      %v2314 = vmax.f32 %v1959, %v2306
      %v2315 = vmax.f32 %v1960, %v2307
      %v2316 = vmax.f32 %v1961, %v2308
      %v2317 = vmax.f32 %v1962, %v2309
      %v2318 = vmax.f32 %v1963, %v2310
      %2319 = vmatprep.subr.mxu0 0.0
      %2320 = vmatpush1.msra.mxu0 %v1820
      %2321 = vmatprep.subr.mxu0 0.0
      %2322 = vmatpush1.msra.mxu0 %v1822
      %2323 = vmatprep.subr.mxu0 0.0
      %2324 = vmatpush1.msra.mxu0 %v1824
      %2325 = vmatprep.subr.mxu0 0.0
      %2326 = vmatpush1.msra.mxu0 %v1826
      %2327 = vmatprep.subr.mxu0 0.0
      %2328 = vmatpush1.msra.mxu0 %v1828
      %2329 = vmatprep.subr.mxu0 0.0
      %2330 = vmatpush1.msra.mxu0 %v1830
      %2331 = vmatprep.subr.mxu0 0.0
      %2332 = vmatpush1.msra.mxu0 %v1832
      %2333 = vmatprep.subr.mxu0 0.0
      %2334 = vmatpush1.msra.mxu0 %v1834
      %2335 = vmatprep.subr.mxu0 0.0
      %2336 = vmatpush1.msra.mxu0 0.0
      %2337 = vmatprep.subr.mxu0 0.0
      %2338 = vmatpush1.msra.mxu0 0.0
      %2339 = vmatprep.subr.mxu0 0.0
      %2340 = vmatpush1.msra.mxu0 0.0
      %2341 = vmatprep.subr.mxu0 0.0
      %2342 = vmatpush1.msra.mxu0 0.0
      %2343 = vmatprep.subr.mxu0 0.0
      %2344 = vmatpush1.msra.mxu0 0.0
      %2345 = vmatprep.subr.mxu0 0.0
      %2346 = vmatpush1.msra.mxu0 0.0
      %2347 = vmatprep.subr.mxu0 0.0
      %2348 = vmatpush1.msra.mxu0 0.0
      %2349 = vmatprep.subr.mxu0 0.0
      %2350 = vmatpush1.msra.mxu0 0.0
      %2351 = vmatprep.subr.mxu0 0.0
      %2352 = vmatpush1.msra.mxu0 0.0
      %2353 = vmatprep.subr.mxu0 0.0
      %2354 = vmatpush1.msra.mxu0 0.0
      %2355 = vmatprep.subr.mxu0 0.0
      %2356 = vmatpush1.msra.mxu0 0.0
      %2357 = vmatprep.subr.mxu0 0.0
      %2358 = vmatpush1.msra.mxu0 0.0
      %2359 = vmatprep.subr.mxu0 0.0
      %2360 = vmatpush1.msra.mxu0 0.0
      %2361 = vmatprep.subr.mxu0 0.0
      %2362 = vmatpush1.msra.mxu0 0.0
      %2363 = vmatprep.subr.mxu0 0.0
      %2364 = vmatpush1.msra.mxu0 0.0
      %2365 = vmatprep.subr.mxu0 0.0
      %2366 = vmatpush1.msra.mxu0 0.0
      %2367 = vmatprep.subr.mxu0 0.0
      %2368 = vmatpush1.msra.mxu0 0.0
      %2369 = vmatprep.subr.mxu0 0.0
      %2370 = vmatpush1.msra.mxu0 0.0
      %2371 = vmatprep.subr.mxu0 0.0
      %2372 = vmatpush1.msra.mxu0 0.0
      %2373 = vmatprep.subr.mxu0 0.0
      %2374 = vmatpush1.msra.mxu0 0.0
      %2375 = vmatprep.subr.mxu0 0.0
      %2376 = vmatpush1.msra.mxu0 0.0
      %2377 = vmatprep.subr.mxu0 0.0
      %2378 = vmatpush1.msra.mxu0 0.0
      %2379 = vmatprep.subr.mxu0 0.0
      %2380 = vmatpush1.msra.mxu0 0.0
      %2381 = vmatprep.subr.mxu0 0.0
      %2382 = vmatpush1.msra.mxu0 0.0
      %2383 = vmatprep.mubr.f32.mxu0 0.0
      %2384 = vmatmul.mubr.f32.gmra.mrb[0].mxu0 %v529
      %v2385 = vpop.f32.mrb[0].mxu0
      %v2386 = vadd.f32 0.0, %v2385
      %v2387 = vpop.f32.mrb[0].mxu0
      %2388 = vmatprep.mubr.f32.mxu0 0.0
      %2389 = vmatmul.mubr.f32.gmra.mrb[0].mxu0 %v532
      %v2390 = vpop.f32.mrb[0].mxu0
      %v2391 = vadd.f32 0.0, %v2390
      %v2392 = vpop.f32.mrb[0].mxu0
      %2393 = vmatprep.mubr.f32.mxu0 0.0
      %2394 = vmatmul.mubr.f32.gmra.mrb[0].mxu0 %v535
      %v2395 = vpop.f32.mrb[0].mxu0
      %v2396 = vadd.f32 0.0, %v2395
      %v2397 = vpop.f32.mrb[0].mxu0
      %2398 = vmatprep.mubr.f32.mxu0 0.0
      %2399 = vmatmul.mubr.f32.gmra.mrb[0].mxu0 %v538
      %v2400 = vpop.f32.mrb[0].mxu0
      %v2401 = vadd.f32 0.0, %v2400
      %v2402 = vpop.f32.mrb[0].mxu0
      %2403 = vmatprep.mubr.f32.mxu0 0.0
      %2404 = vmatmul.mubr.f32.gmra.mrb[0].mxu0 %v541
      %v2405 = vpop.f32.mrb[0].mxu0
      %v2406 = vadd.f32 0.0, %v2405
      %v2407 = vpop.f32.mrb[0].mxu0
      %2408 = vmatprep.mubr.f32.mxu0 0.0
      %2409 = vmatmul.mubr.f32.gmra.mrb[0].mxu0 %v544
      %v2410 = vpop.f32.mrb[0].mxu0
      %v2411 = vadd.f32 0.0, %v2410
      %v2412 = vpop.f32.mrb[0].mxu0
      %2413 = vmatprep.mubr.f32.mxu0 0.0
      %2414 = vmatmul.mubr.f32.gmra.mrb[0].mxu0 %v547
      %v2415 = vpop.f32.mrb[0].mxu0
      %v2416 = vadd.f32 0.0, %v2415
      %v2417 = vpop.f32.mrb[0].mxu0
      %2418 = vmatprep.mubr.f32.mxu0 0.0
      %2419 = vmatmul.mubr.f32.gmra.mrb[0].mxu0 %v550
      %v2420 = vpop.f32.mrb[0].mxu0
      %v2421 = vadd.f32 0.0, %v2420
      %v2422 = vpop.f32.mrb[0].mxu0
      %2423 = vdwg.mxu0
      %2424 = vmatprep.subr.mxu0 0.0
      %2425 = vmatpush1.msra.mxu0 %v2175
      %2426 = vmatprep.subr.mxu0 0.0
      %2427 = vmatpush1.msra.mxu0 %v2177
      %2428 = vmatprep.subr.mxu0 0.0
      %2429 = vmatpush1.msra.mxu0 %v2179
      %2430 = vmatprep.subr.mxu0 0.0
      %2431 = vmatpush1.msra.mxu0 %v2181
      %2432 = vmatprep.subr.mxu0 0.0
      %2433 = vmatpush1.msra.mxu0 %v2183
      %2434 = vmatprep.subr.mxu0 0.0
      %2435 = vmatpush1.msra.mxu0 %v2185
      %2436 = vmatprep.subr.mxu0 0.0
      %2437 = vmatpush1.msra.mxu0 %v2187
      %2438 = vmatprep.subr.mxu0 0.0
      %2439 = vmatpush1.msra.mxu0 %v2189
      %2440 = vmatprep.subr.mxu0 0.0
      %2441 = vmatpush1.msra.mxu0 0.0
      %2442 = vmatprep.subr.mxu0 0.0
      %2443 = vmatpush1.msra.mxu0 0.0
      %2444 = vmatprep.subr.mxu0 0.0
      %2445 = vmatpush1.msra.mxu0 0.0
      %2446 = vmatprep.subr.mxu0 0.0
      %2447 = vmatpush1.msra.mxu0 0.0
      %2448 = vmatprep.subr.mxu0 0.0
      %2449 = vmatpush1.msra.mxu0 0.0
      %2450 = vmatprep.subr.mxu0 0.0
      %2451 = vmatpush1.msra.mxu0 0.0
      %2452 = vmatprep.subr.mxu0 0.0
      %2453 = vmatpush1.msra.mxu0 0.0
      %2454 = vmatprep.subr.mxu0 0.0
      %2455 = vmatpush1.msra.mxu0 0.0
      %2456 = vmatprep.subr.mxu0 0.0
      %2457 = vmatpush1.msra.mxu0 0.0
      %2458 = vmatprep.subr.mxu0 0.0
      %2459 = vmatpush1.msra.mxu0 0.0
      %2460 = vmatprep.subr.mxu0 0.0
      %2461 = vmatpush1.msra.mxu0 0.0
      %2462 = vmatprep.subr.mxu0 0.0
      %2463 = vmatpush1.msra.mxu0 0.0
      %2464 = vmatprep.subr.mxu0 0.0
      %2465 = vmatpush1.msra.mxu0 0.0
      %2466 = vmatprep.subr.mxu0 0.0
      %2467 = vmatpush1.msra.mxu0 0.0
      %2468 = vmatprep.subr.mxu0 0.0
      %2469 = vmatpush1.msra.mxu0 0.0
      %2470 = vmatprep.subr.mxu0 0.0
      %2471 = vmatpush1.msra.mxu0 0.0
      %2472 = vmatprep.subr.mxu0 0.0
      %2473 = vmatpush1.msra.mxu0 0.0
      %2474 = vmatprep.subr.mxu0 0.0
      %2475 = vmatpush1.msra.mxu0 0.0
      %2476 = vmatprep.subr.mxu0 0.0
      %2477 = vmatpush1.msra.mxu0 0.0
      %2478 = vmatprep.subr.mxu0 0.0
      %2479 = vmatpush1.msra.mxu0 0.0
      %2480 = vmatprep.subr.mxu0 0.0
      %2481 = vmatpush1.msra.mxu0 0.0
      %2482 = vmatprep.subr.mxu0 0.0
      %2483 = vmatpush1.msra.mxu0 0.0
      %2484 = vmatprep.subr.mxu0 0.0
      %2485 = vmatpush1.msra.mxu0 0.0
      %2486 = vmatprep.subr.mxu0 0.0
      %2487 = vmatpush1.msra.mxu0 0.0
      %2488 = vmatprep.mubr.f32.mxu0 0.0
      %2489 = vmatmul.mubr.f32.gmra.mrb[0].mxu0 %v400
      %v2490 = vpop.f32.mrb[0].mxu0
      %v2491 = vadd.f32 %v2386, %v2490
      %v2492 = vpop.f32.mrb[0].mxu0
      %2493 = vmatprep.mubr.f32.mxu0 0.0
      %2494 = vmatmul.mubr.f32.gmra.mrb[0].mxu0 %v403
      %v2495 = vpop.f32.mrb[0].mxu0
      %v2496 = vadd.f32 %v2391, %v2495
      %v2497 = vpop.f32.mrb[0].mxu0
      %2498 = vmatprep.mubr.f32.mxu0 0.0
      %2499 = vmatmul.mubr.f32.gmra.mrb[0].mxu0 %v406
      %v2500 = vpop.f32.mrb[0].mxu0
      %v2501 = vadd.f32 %v2396, %v2500
      %v2502 = vpop.f32.mrb[0].mxu0
      %2503 = vmatprep.mubr.f32.mxu0 0.0
      %2504 = vmatmul.mubr.f32.gmra.mrb[0].mxu0 %v409
      %v2505 = vpop.f32.mrb[0].mxu0
      %v2506 = vadd.f32 %v2401, %v2505
      %v2507 = vpop.f32.mrb[0].mxu0
      %2508 = vmatprep.mubr.f32.mxu0 0.0
      %2509 = vmatmul.mubr.f32.gmra.mrb[0].mxu0 %v412
      %v2510 = vpop.f32.mrb[0].mxu0
      %v2511 = vadd.f32 %v2406, %v2510
      %v2512 = vpop.f32.mrb[0].mxu0
      %2513 = vmatprep.mubr.f32.mxu0 0.0
      %2514 = vmatmul.mubr.f32.gmra.mrb[0].mxu0 %v415
      %v2515 = vpop.f32.mrb[0].mxu0
      %v2516 = vadd.f32 %v2411, %v2515
      %v2517 = vpop.f32.mrb[0].mxu0
      %2518 = vmatprep.mubr.f32.mxu0 0.0
      %2519 = vmatmul.mubr.f32.gmra.mrb[0].mxu0 %v418
      %v2520 = vpop.f32.mrb[0].mxu0
      %v2521 = vadd.f32 %v2416, %v2520
      %v2522 = vpop.f32.mrb[0].mxu0
      %2523 = vmatprep.mubr.f32.mxu0 0.0
      %2524 = vmatmul.mubr.f32.gmra.mrb[0].mxu0 %v421
      %v2525 = vpop.f32.mrb[0].mxu0
      %v2526 = vadd.f32 %v2421, %v2525
      %v2527 = vpop.f32.mrb[0].mxu0
      %2528 = vdwg.mxu0
      %2529 = vrot.lane.b32.xlu0 %v229, 16
      %v2530 = vpop.permute.xlu0 %2529
      %2531 = vrot.lane.b32.xlu0 %v230, 16
      %v2532 = vpop.permute.xlu0 %2531
      %2533 = vrot.lane.b32.xlu0 %v231, 16
      %v2534 = vpop.permute.xlu0 %2533
      %2535 = vrot.lane.b32.xlu0 %v232, 16
      %v2536 = vpop.permute.xlu0 %2535
      %2537 = vrot.lane.b32.xlu0 %v233, 16
      %v2538 = vpop.permute.xlu0 %2537
      %2539 = vrot.lane.b32.xlu0 %v234, 16
      %v2540 = vpop.permute.xlu0 %2539
      %2541 = vrot.lane.b32.xlu0 %v235, 16
      %v2542 = vpop.permute.xlu0 %2541
      %2543 = vrot.lane.b32.xlu0 %v236, 16
      %v2544 = vpop.permute.xlu0 %2543
      %2553 = vmatprep.subr.mxu0 0.0
      %2554 = vmatpush1.msra.mxu0 %v2530
      %2555 = vmatprep.subr.mxu0 0.0
      %2556 = vmatpush1.msra.mxu0 %v2532
      %2557 = vmatprep.subr.mxu0 0.0
      %2558 = vmatpush1.msra.mxu0 %v2534
      %2559 = vmatprep.subr.mxu0 0.0
      %2560 = vmatpush1.msra.mxu0 %v2536
      %2561 = vmatprep.subr.mxu0 0.0
      %2562 = vmatpush1.msra.mxu0 %v2538
      %2563 = vmatprep.subr.mxu0 0.0
      %2564 = vmatpush1.msra.mxu0 %v2540
      %2565 = vmatprep.subr.mxu0 0.0
      %2566 = vmatpush1.msra.mxu0 %v2542
      %2567 = vmatprep.subr.mxu0 0.0
      %2568 = vmatpush1.msra.mxu0 %v2544
      %2569 = vmatprep.subr.mxu0 0.0
      %2570 = vmatpush1.msra.mxu0 0.0
      %2571 = vmatprep.subr.mxu0 0.0
      %2572 = vmatpush1.msra.mxu0 0.0
      %2573 = vmatprep.subr.mxu0 0.0
      %2574 = vmatpush1.msra.mxu0 0.0
      %2575 = vmatprep.subr.mxu0 0.0
      %2576 = vmatpush1.msra.mxu0 0.0
      %2577 = vmatprep.subr.mxu0 0.0
      %2578 = vmatpush1.msra.mxu0 0.0
      %2579 = vmatprep.subr.mxu0 0.0
      %2580 = vmatpush1.msra.mxu0 0.0
      %2581 = vmatprep.subr.mxu0 0.0
      %2582 = vmatpush1.msra.mxu0 0.0
      %2583 = vmatprep.subr.mxu0 0.0
      %2584 = vmatpush1.msra.mxu0 0.0
      %2585 = vmatprep.subr.mxu0 0.0
      %2586 = vmatpush1.msra.mxu0 0.0
      %2587 = vmatprep.subr.mxu0 0.0
      %2588 = vmatpush1.msra.mxu0 0.0
      %2589 = vmatprep.subr.mxu0 0.0
      %2590 = vmatpush1.msra.mxu0 0.0
      %2591 = vmatprep.subr.mxu0 0.0
      %2592 = vmatpush1.msra.mxu0 0.0
      %2593 = vmatprep.subr.mxu0 0.0
      %2594 = vmatpush1.msra.mxu0 0.0
      %2595 = vmatprep.subr.mxu0 0.0
      %2596 = vmatpush1.msra.mxu0 0.0
      %2597 = vmatprep.subr.mxu0 0.0
      %2598 = vmatpush1.msra.mxu0 0.0
      %2599 = vmatprep.subr.mxu0 0.0
      %2600 = vmatpush1.msra.mxu0 0.0
      %2601 = vmatprep.subr.mxu0 0.0
      %2602 = vmatpush1.msra.mxu0 0.0
      %2603 = vmatprep.subr.mxu0 0.0
      %2604 = vmatpush1.msra.mxu0 0.0
      %2605 = vmatprep.subr.mxu0 0.0
      %2606 = vmatpush1.msra.mxu0 0.0
      %2607 = vmatprep.subr.mxu0 0.0
      %2608 = vmatpush1.msra.mxu0 0.0
      %2609 = vmatprep.subr.mxu0 0.0
      %2610 = vmatpush1.msra.mxu0 0.0
      %2611 = vmatprep.subr.mxu0 0.0
      %2612 = vmatpush1.msra.mxu0 0.0
      %2613 = vmatprep.subr.mxu0 0.0
      %2614 = vmatpush1.msra.mxu0 0.0
      %2615 = vmatprep.subr.mxu0 0.0
      %2616 = vmatpush1.msra.mxu0 0.0
      %2617 = vmatprep.mubr.f32.mxu0 0.0
      %2618 = vmatmul.mubr.f32.gmra.mrb[0].mxu0 %v271
      %v2619 = vpop.f32.mrb[0].mxu0
      %v2620 = vadd.f32 0.0, %v2619
      %v2621 = vpop.f32.mrb[0].mxu0
      %2622 = vmatprep.mubr.f32.mxu0 0.0
      %2623 = vmatmul.mubr.f32.gmra.mrb[0].mxu0 %v274
      %v2624 = vpop.f32.mrb[0].mxu0
      %v2625 = vadd.f32 0.0, %v2624
      %v2626 = vpop.f32.mrb[0].mxu0
      %2627 = vmatprep.mubr.f32.mxu0 0.0
      %2628 = vmatmul.mubr.f32.gmra.mrb[0].mxu0 %v277
      %v2629 = vpop.f32.mrb[0].mxu0
      %v2630 = vadd.f32 0.0, %v2629
      %v2631 = vpop.f32.mrb[0].mxu0
      %2632 = vmatprep.mubr.f32.mxu0 0.0
      %2633 = vmatmul.mubr.f32.gmra.mrb[0].mxu0 %v280
      %v2634 = vpop.f32.mrb[0].mxu0
      %v2635 = vadd.f32 0.0, %v2634
      %v2636 = vpop.f32.mrb[0].mxu0
      %2637 = vmatprep.mubr.f32.mxu0 0.0
      %2638 = vmatmul.mubr.f32.gmra.mrb[0].mxu0 %v283
      %v2639 = vpop.f32.mrb[0].mxu0
      %v2640 = vadd.f32 0.0, %v2639
      %v2641 = vpop.f32.mrb[0].mxu0
      %2642 = vmatprep.mubr.f32.mxu0 0.0
      %2643 = vmatmul.mubr.f32.gmra.mrb[0].mxu0 %v286
      %v2644 = vpop.f32.mrb[0].mxu0
      %v2645 = vadd.f32 0.0, %v2644
      %v2646 = vpop.f32.mrb[0].mxu0
      %2647 = vmatprep.mubr.f32.mxu0 0.0
      %2648 = vmatmul.mubr.f32.gmra.mrb[0].mxu0 %v289
      %v2649 = vpop.f32.mrb[0].mxu0
      %v2650 = vadd.f32 0.0, %v2649
      %v2651 = vpop.f32.mrb[0].mxu0
      %2652 = vmatprep.mubr.f32.mxu0 0.0
      %2653 = vmatmul.mubr.f32.gmra.mrb[0].mxu0 %v292
      %v2654 = vpop.f32.mrb[0].mxu0
      %v2655 = vadd.f32 0.0, %v2654
      %v2656 = vpop.f32.mrb[0].mxu0
      %2657 = vdwg.mxu0
      %v2658 = vadd.f32 %v2491, %v2620
      %v2659 = vadd.f32 %v2496, %v2625
      %v2660 = vadd.f32 %v2501, %v2630
      %v2661 = vadd.f32 %v2506, %v2635
      %v2662 = vadd.f32 %v2511, %v2640
      %v2663 = vadd.f32 %v2516, %v2645
      %v2664 = vadd.f32 %v2521, %v2650
      %v2665 = vadd.f32 %v2526, %v2655
      %2666 = vmatprep.subr.mxu0 0.0
      %2667 = vmatpush1.msra.mxu0 %v2175
      %2668 = vmatprep.subr.mxu0 0.0
      %2669 = vmatpush1.msra.mxu0 %v2177
      %2670 = vmatprep.subr.mxu0 0.0
      %2671 = vmatpush1.msra.mxu0 %v2179
      %2672 = vmatprep.subr.mxu0 0.0
      %2673 = vmatpush1.msra.mxu0 %v2181
      %2674 = vmatprep.subr.mxu0 0.0
      %2675 = vmatpush1.msra.mxu0 %v2183
      %2676 = vmatprep.subr.mxu0 0.0
      %2677 = vmatpush1.msra.mxu0 %v2185
      %2678 = vmatprep.subr.mxu0 0.0
      %2679 = vmatpush1.msra.mxu0 %v2187
      %2680 = vmatprep.subr.mxu0 0.0
      %2681 = vmatpush1.msra.mxu0 %v2189
      %2682 = vmatprep.subr.mxu0 0.0
      %2683 = vmatpush1.msra.mxu0 0.0
      %2684 = vmatprep.subr.mxu0 0.0
      %2685 = vmatpush1.msra.mxu0 0.0
      %2686 = vmatprep.subr.mxu0 0.0
      %2687 = vmatpush1.msra.mxu0 0.0
      %2688 = vmatprep.subr.mxu0 0.0
      %2689 = vmatpush1.msra.mxu0 0.0
      %2690 = vmatprep.subr.mxu0 0.0
      %2691 = vmatpush1.msra.mxu0 0.0
      %2692 = vmatprep.subr.mxu0 0.0
      %2693 = vmatpush1.msra.mxu0 0.0
      %2694 = vmatprep.subr.mxu0 0.0
      %2695 = vmatpush1.msra.mxu0 0.0
      %2696 = vmatprep.subr.mxu0 0.0
      %2697 = vmatpush1.msra.mxu0 0.0
      %2698 = vmatprep.subr.mxu0 0.0
      %2699 = vmatpush1.msra.mxu0 0.0
      %2700 = vmatprep.subr.mxu0 0.0
      %2701 = vmatpush1.msra.mxu0 0.0
      %2702 = vmatprep.subr.mxu0 0.0
      %2703 = vmatpush1.msra.mxu0 0.0
      %2704 = vmatprep.subr.mxu0 0.0
      %2705 = vmatpush1.msra.mxu0 0.0
      %2706 = vmatprep.subr.mxu0 0.0
      %2707 = vmatpush1.msra.mxu0 0.0
      %2708 = vmatprep.subr.mxu0 0.0
      %2709 = vmatpush1.msra.mxu0 0.0
      %2710 = vmatprep.subr.mxu0 0.0
      %2711 = vmatpush1.msra.mxu0 0.0
      %2712 = vmatprep.subr.mxu0 0.0
      %2713 = vmatpush1.msra.mxu0 0.0
      %2714 = vmatprep.subr.mxu0 0.0
      %2715 = vmatpush1.msra.mxu0 0.0
      %2716 = vmatprep.subr.mxu0 0.0
      %2717 = vmatpush1.msra.mxu0 0.0
      %2718 = vmatprep.subr.mxu0 0.0
      %2719 = vmatpush1.msra.mxu0 0.0
      %2720 = vmatprep.subr.mxu0 0.0
      %2721 = vmatpush1.msra.mxu0 0.0
      %2722 = vmatprep.subr.mxu0 0.0
      %2723 = vmatpush1.msra.mxu0 0.0
      %2724 = vmatprep.subr.mxu0 0.0
      %2725 = vmatpush1.msra.mxu0 0.0
      %2726 = vmatprep.subr.mxu0 0.0
      %2727 = vmatpush1.msra.mxu0 0.0
      %2728 = vmatprep.subr.mxu0 0.0
      %2729 = vmatpush1.msra.mxu0 0.0
      %2730 = vmatprep.mubr.f32.mxu0 0.0
      %2731 = vmatmul.mubr.f32.gmra.mrb[0].mxu0 %v529
      %v2732 = vpop.f32.mrb[0].mxu0
      %v2733 = vadd.f32 0.0, %v2732
      %v2734 = vpop.f32.mrb[0].mxu0
      %2735 = vmatprep.mubr.f32.mxu0 0.0
      %2736 = vmatmul.mubr.f32.gmra.mrb[0].mxu0 %v532
      %v2737 = vpop.f32.mrb[0].mxu0
      %v2738 = vadd.f32 0.0, %v2737
      %v2739 = vpop.f32.mrb[0].mxu0
      %2740 = vmatprep.mubr.f32.mxu0 0.0
      %2741 = vmatmul.mubr.f32.gmra.mrb[0].mxu0 %v535
      %v2742 = vpop.f32.mrb[0].mxu0
      %v2743 = vadd.f32 0.0, %v2742
      %v2744 = vpop.f32.mrb[0].mxu0
      %2745 = vmatprep.mubr.f32.mxu0 0.0
      %2746 = vmatmul.mubr.f32.gmra.mrb[0].mxu0 %v538
      %v2747 = vpop.f32.mrb[0].mxu0
      %v2748 = vadd.f32 0.0, %v2747
      %v2749 = vpop.f32.mrb[0].mxu0
      %2750 = vmatprep.mubr.f32.mxu0 0.0
      %2751 = vmatmul.mubr.f32.gmra.mrb[0].mxu0 %v541
      %v2752 = vpop.f32.mrb[0].mxu0
      %v2753 = vadd.f32 0.0, %v2752
      %v2754 = vpop.f32.mrb[0].mxu0
      %2755 = vmatprep.mubr.f32.mxu0 0.0
      %2756 = vmatmul.mubr.f32.gmra.mrb[0].mxu0 %v544
      %v2757 = vpop.f32.mrb[0].mxu0
      %v2758 = vadd.f32 0.0, %v2757
      %v2759 = vpop.f32.mrb[0].mxu0
      %2760 = vmatprep.mubr.f32.mxu0 0.0
      %2761 = vmatmul.mubr.f32.gmra.mrb[0].mxu0 %v547
      %v2762 = vpop.f32.mrb[0].mxu0
      %v2763 = vadd.f32 0.0, %v2762
      %v2764 = vpop.f32.mrb[0].mxu0
      %2765 = vmatprep.mubr.f32.mxu0 0.0
      %2766 = vmatmul.mubr.f32.gmra.mrb[0].mxu0 %v550
      %v2767 = vpop.f32.mrb[0].mxu0
      %v2768 = vadd.f32 0.0, %v2767
      %v2769 = vpop.f32.mrb[0].mxu0
      %2770 = vdwg.mxu0
      %2771 = vmatprep.subr.mxu0 0.0
      %2772 = vmatpush1.msra.mxu0 %v2530
      %2773 = vmatprep.subr.mxu0 0.0
      %2774 = vmatpush1.msra.mxu0 %v2532
      %2775 = vmatprep.subr.mxu0 0.0
      %2776 = vmatpush1.msra.mxu0 %v2534
      %2777 = vmatprep.subr.mxu0 0.0
      %2778 = vmatpush1.msra.mxu0 %v2536
      %2779 = vmatprep.subr.mxu0 0.0
      %2780 = vmatpush1.msra.mxu0 %v2538
      %2781 = vmatprep.subr.mxu0 0.0
      %2782 = vmatpush1.msra.mxu0 %v2540
      %2783 = vmatprep.subr.mxu0 0.0
      %2784 = vmatpush1.msra.mxu0 %v2542
      %2785 = vmatprep.subr.mxu0 0.0
      %2786 = vmatpush1.msra.mxu0 %v2544
      %2787 = vmatprep.subr.mxu0 0.0
      %2788 = vmatpush1.msra.mxu0 0.0
      %2789 = vmatprep.subr.mxu0 0.0
      %2790 = vmatpush1.msra.mxu0 0.0
      %2791 = vmatprep.subr.mxu0 0.0
      %2792 = vmatpush1.msra.mxu0 0.0
      %2793 = vmatprep.subr.mxu0 0.0
      %2794 = vmatpush1.msra.mxu0 0.0
      %2795 = vmatprep.subr.mxu0 0.0
      %2796 = vmatpush1.msra.mxu0 0.0
      %2797 = vmatprep.subr.mxu0 0.0
      %2798 = vmatpush1.msra.mxu0 0.0
      %2799 = vmatprep.subr.mxu0 0.0
      %2800 = vmatpush1.msra.mxu0 0.0
      %2801 = vmatprep.subr.mxu0 0.0
      %2802 = vmatpush1.msra.mxu0 0.0
      %2803 = vmatprep.subr.mxu0 0.0
      %2804 = vmatpush1.msra.mxu0 0.0
      %2805 = vmatprep.subr.mxu0 0.0
      %2806 = vmatpush1.msra.mxu0 0.0
      %2807 = vmatprep.subr.mxu0 0.0
      %2808 = vmatpush1.msra.mxu0 0.0
      %2809 = vmatprep.subr.mxu0 0.0
      %2810 = vmatpush1.msra.mxu0 0.0
      %2811 = vmatprep.subr.mxu0 0.0
      %2812 = vmatpush1.msra.mxu0 0.0
      %2813 = vmatprep.subr.mxu0 0.0
      %2814 = vmatpush1.msra.mxu0 0.0
      %2815 = vmatprep.subr.mxu0 0.0
      %2816 = vmatpush1.msra.mxu0 0.0
      %2817 = vmatprep.subr.mxu0 0.0
      %2818 = vmatpush1.msra.mxu0 0.0
      %2819 = vmatprep.subr.mxu0 0.0
      %2820 = vmatpush1.msra.mxu0 0.0
      %2821 = vmatprep.subr.mxu0 0.0
      %2822 = vmatpush1.msra.mxu0 0.0
      %2823 = vmatprep.subr.mxu0 0.0
      %2824 = vmatpush1.msra.mxu0 0.0
      %2825 = vmatprep.subr.mxu0 0.0
      %2826 = vmatpush1.msra.mxu0 0.0
      %2827 = vmatprep.subr.mxu0 0.0
      %2828 = vmatpush1.msra.mxu0 0.0
      %2829 = vmatprep.subr.mxu0 0.0
      %2830 = vmatpush1.msra.mxu0 0.0
      %2831 = vmatprep.subr.mxu0 0.0
      %2832 = vmatpush1.msra.mxu0 0.0
      %2833 = vmatprep.subr.mxu0 0.0
      %2834 = vmatpush1.msra.mxu0 0.0
      %2835 = vmatprep.mubr.f32.mxu0 0.0
      %2836 = vmatmul.mubr.f32.gmra.mrb[0].mxu0 %v400
      %v2837 = vpop.f32.mrb[0].mxu0
      %v2838 = vadd.f32 %v2733, %v2837
      %v2839 = vpop.f32.mrb[0].mxu0
      %2840 = vmatprep.mubr.f32.mxu0 0.0
      %2841 = vmatmul.mubr.f32.gmra.mrb[0].mxu0 %v403
      %v2842 = vpop.f32.mrb[0].mxu0
      %v2843 = vadd.f32 %v2738, %v2842
      %v2844 = vpop.f32.mrb[0].mxu0
      %2845 = vmatprep.mubr.f32.mxu0 0.0
      %2846 = vmatmul.mubr.f32.gmra.mrb[0].mxu0 %v406
      %v2847 = vpop.f32.mrb[0].mxu0
      %v2848 = vadd.f32 %v2743, %v2847
      %v2849 = vpop.f32.mrb[0].mxu0
      %2850 = vmatprep.mubr.f32.mxu0 0.0
      %2851 = vmatmul.mubr.f32.gmra.mrb[0].mxu0 %v409
      %v2852 = vpop.f32.mrb[0].mxu0
      %v2853 = vadd.f32 %v2748, %v2852
      %v2854 = vpop.f32.mrb[0].mxu0
      %2855 = vmatprep.mubr.f32.mxu0 0.0
      %2856 = vmatmul.mubr.f32.gmra.mrb[0].mxu0 %v412
      %v2857 = vpop.f32.mrb[0].mxu0
      %v2858 = vadd.f32 %v2753, %v2857
      %v2859 = vpop.f32.mrb[0].mxu0
      %2860 = vmatprep.mubr.f32.mxu0 0.0
      %2861 = vmatmul.mubr.f32.gmra.mrb[0].mxu0 %v415
      %v2862 = vpop.f32.mrb[0].mxu0
      %v2863 = vadd.f32 %v2758, %v2862
      %v2864 = vpop.f32.mrb[0].mxu0
      %2865 = vmatprep.mubr.f32.mxu0 0.0
      %2866 = vmatmul.mubr.f32.gmra.mrb[0].mxu0 %v418
      %v2867 = vpop.f32.mrb[0].mxu0
      %v2868 = vadd.f32 %v2763, %v2867
      %v2869 = vpop.f32.mrb[0].mxu0
      %2870 = vmatprep.mubr.f32.mxu0 0.0
      %2871 = vmatmul.mubr.f32.gmra.mrb[0].mxu0 %v421
      %v2872 = vpop.f32.mrb[0].mxu0
      %v2873 = vadd.f32 %v2768, %v2872
      %v2874 = vpop.f32.mrb[0].mxu0
      %2875 = vdwg.mxu0
      %v2876 = vmax.f32 %v2658, %v2838
      %v2877 = vmax.f32 %v2659, %v2843
      %v2878 = vmax.f32 %v2660, %v2848
      %v2879 = vmax.f32 %v2661, %v2853
      %v2880 = vmax.f32 %v2662, %v2858
      %v2881 = vmax.f32 %v2663, %v2863
      %v2882 = vmax.f32 %v2664, %v2868
      %v2883 = vmax.f32 %v2665, %v2873
      %2892 = vrot.lane.b32.xlu0 %v2311, 16
      %v2893 = vpop.permute.xlu0 %2892
      %2894 = vrot.lane.b32.xlu0 %v2312, 16
      %v2895 = vpop.permute.xlu0 %2894
      %2896 = vrot.lane.b32.xlu0 %v2313, 16
      %v2897 = vpop.permute.xlu0 %2896
      %2898 = vrot.lane.b32.xlu0 %v2314, 16
      %v2899 = vpop.permute.xlu0 %2898
      %2900 = vrot.lane.b32.xlu0 %v2315, 16
      %v2901 = vpop.permute.xlu0 %2900
      %2902 = vrot.lane.b32.xlu0 %v2316, 16
      %v2903 = vpop.permute.xlu0 %2902
      %2904 = vrot.lane.b32.xlu0 %v2317, 16
      %v2905 = vpop.permute.xlu0 %2904
      %2906 = vrot.lane.b32.xlu0 %v2318, 16
      %v2907 = vpop.permute.xlu0 %2906
      %2924 = vrot.lane.b32.xlu0 %v2876, 32
      %v2925 = vpop.permute.xlu0 %2924
      %2926 = vrot.lane.b32.xlu0 %v2877, 32
      %v2927 = vpop.permute.xlu0 %2926
      %2928 = vrot.lane.b32.xlu0 %v2878, 32
      %v2929 = vpop.permute.xlu0 %2928
      %2930 = vrot.lane.b32.xlu0 %v2879, 32
      %v2931 = vpop.permute.xlu0 %2930
      %2932 = vrot.lane.b32.xlu0 %v2880, 32
      %v2933 = vpop.permute.xlu0 %2932
      %2934 = vrot.lane.b32.xlu0 %v2881, 32
      %v2935 = vpop.permute.xlu0 %2934
      %2936 = vrot.lane.b32.xlu0 %v2882, 32
      %v2937 = vpop.permute.xlu0 %2936
      %2938 = vrot.lane.b32.xlu0 %v2883, 32
      %v2939 = vpop.permute.xlu0 %2938
      %vm2948 = vcmask 130048
      %v2949 = vsel %vm2948, %v1254, %v2893
      %v2950 = vsel %vm2948, %v1255, %v2895
      %v2951 = vsel %vm2948, %v1256, %v2897
      %v2952 = vsel %vm2948, %v1257, %v2899
      %v2953 = vsel %vm2948, %v1258, %v2901
      %v2954 = vsel %vm2948, %v1259, %v2903
      %v2955 = vsel %vm2948, %v1260, %v2905
      %v2956 = vsel %vm2948, %v1261, %v2907
      %vm2957 = vcmask 261120
      %v2958 = vsel %vm2957, %v2949, %v2925
      %v2959 = vsel %vm2957, %v2950, %v2927
      %v2960 = vsel %vm2957, %v2951, %v2929
      %v2961 = vsel %vm2957, %v2952, %v2931
      %v2962 = vsel %vm2957, %v2953, %v2933
      %v2963 = vsel %vm2957, %v2954, %v2935
      %v2964 = vsel %vm2957, %v2955, %v2937
      %v2965 = vsel %vm2957, %v2956, %v2939
      %vm2966 = vcmask 392192
      %2967 = vst.msk [vmem:[%s201] sm:$0xff] %vm2966, %v2958
      %2968 = vst.msk [vmem:[%s201 + $0x8] sm:$0xff] %vm2966, %v2959
      %2969 = vst.msk [vmem:[%s201 + $0x10] sm:$0xff] %vm2966, %v2960
      %2970 = vst.msk [vmem:[%s201 + $0x18] sm:$0xff] %vm2966, %v2961
      %2971 = vst.msk [vmem:[%s201 + $0x20] sm:$0xff] %vm2966, %v2962
      %2972 = vst.msk [vmem:[%s201 + $0x28] sm:$0xff] %vm2966, %v2963
      %2973 = vst.msk [vmem:[%s201 + $0x30] sm:$0xff] %vm2966, %v2964
      %2974 = vst.msk [vmem:[%s201 + $0x38] sm:$0xff] %vm2966, %v2965
      %s2975 = smul.u32 8, %s17
      %p2976 = scmp.lt.s32.totalorder %s18, 1
      %s2977 = scalar_select %p2976, %s18, 1
      %p2978 = scmp.lt.s32.totalorder %s2975, 7
      %s2979 = scalar_select %p2978, %s2975, 7
      %s2980 = smul.addr %s2977, 8
      %s2981 = sadd.s32 %s2979, %s2980
      %s2982 = smul.addr %s2981, 8
      %s2983 = scalar_lea.vmem %s2, %s2982
      // Predicated region
      $region29: #{temporal_modulation.1} parent=27 // pred_check
        %p2984 = pneg %p99
      $region30: #{temporal_modulation.1} parent=27 // pred_check_branch
        %2986 = sbr.rel (%p2984) target = $region32
      $region31: #{temporal_modulation.1} parent=27 // pred_region
        %s2987 = smul.u32 8, %s17
      $region32: #{temporal_modulation.1} parent=27 // pred_fallthru
        _
    $region28: #{temporal_modulation.1} parent=5 // pred_fallthru
      _
    %p2988 = scmp.le.s32.totalorder 2, %s8
    // Predicated region
    $region33: #{temporal_modulation.1} parent=5 // pred_check
      %p2989 = pneg %p2988
    $region34: #{temporal_modulation.1} parent=5 // pred_check_branch
      %2991 = sbr.rel (%p2989) target = $region36
    $region35: #{temporal_modulation.1} parent=5 // pred_region
      %s2992 = ssub.s32 %s8, 2
      // Predicated region
      $region37: #{temporal_modulation.1} parent=35 // pred_check
        %p2993 = pneg %p105
      $region38: #{temporal_modulation.1} parent=35 // pred_check_branch
        %2995 = sbr.rel (%p2993) target = $region40
      $region39: #{temporal_modulation.1} parent=35 // pred_region
        %s2996 = smul.u32 8, %s19
        %p2997 = scmp.lt.s32.totalorder %s20, 1
        %s2998 = scalar_select %p2997, %s20, 1
        %p2999 = scmp.lt.s32.totalorder %s2996, 7
        %s3000 = scalar_select %p2999, %s2996, 7
        %s3001 = smul.addr %s2998, 8
        %s3002 = sadd.s32 %s3000, %s3001
        %s3003 = smul.addr %s3002, 8
        %s3004 = scalar_lea.vmem %s2, %s3003
      $region40: #{temporal_modulation.1} parent=35 // pred_fallthru
        _
    $region36: #{temporal_modulation.1} parent=5 // pred_fallthru
      _
  $region6: #{temporal_modulation.1} parent=0 // loop_footer
    %s12 = sadd.s32 1, %s8
  $region7: #{temporal_modulation.1} parent=0 // loop_footer_branch
    %7 = sbr.rel target = $region3
  $region8: #{temporal_modulation.1} parent=0 // loop_exit
    _

</llo_original>
